<compile_context>
chip_gen: v5e
topology: v5e:2x2
jax: 0.10.0
libtpu: 0.0.40
codegen_flags: <defaults>
</compile_context>

<pallas_src>
import jax
import jax.numpy as jnp
from jax.experimental import pallas as pl
from jax.experimental.pallas import tpu as pltpu

LANE = 128


def basic_block_kernel(x_ref, w1_ref, w2_ref, s1_ref, b1_ref, s2_ref, b2_ref,
                       o_ref):
    # x_ref  : (1, H, W, Cp)  f32 NHWC input, channels zero-padded to Cp
    # w*_ref : (3*Cp, 3*Cp)   bf16 fused 3x3 weights, layout [kw*Cp+i, kh*Cp+o]
    # s*/b*  : (1, Cp)        f32 folded BatchNorm scale / bias (0 in pad lanes)
    # o_ref  : (1, H, W, Cp)  f32
    H, W, Cp = x_ref.shape[1], x_ref.shape[2], x_ref.shape[3]
    HW = H * W

    # Flattened row index r = h*W + w, and the masks that implement the
    # 1-pixel zero padding of a 'same' 3x3 convolution.
    r = jax.lax.broadcasted_iota(jnp.int32, (HW, 1), 0)
    if (W & (W - 1)) == 0:                       # static Python branch
        w_in_row = jnp.bitwise_and(r, W - 1)
    else:
        w_in_row = r % W
    has_left = w_in_row >= 1                     # (w-1) exists
    has_right = w_in_row <= W - 2                # (w+1) exists
    has_up = r >= W                              # (h-1) exists
    has_down = r < (H - 1) * W                   # (h+1) exists

    def conv3x3(x2d, w_ref_):
        # x2d: (HW, Cp) f32  ->  (HW, Cp) f32, 3x3 'same' conv.
        # Gather the three width taps into K (one XLU roll each, masked at the
        # border), run a single big bf16 MXU matmul against the fused weight,
        # then resolve the three height taps by shifting the output column
        # blocks by +/- W rows (lane-aligned slices, f32 rolls + masks).
        left = jnp.where(has_left, pltpu.roll(x2d, 1, 0), 0.0)        # x[h, w-1]
        right = jnp.where(has_right, pltpu.roll(x2d, HW - 1, 0), 0.0)  # x[h, w+1]
        xcat = jnp.concatenate([left, x2d, right], axis=-1).astype(jnp.bfloat16)
        p = jnp.dot(xcat, w_ref_[...], preferred_element_type=jnp.float32)
        up = jnp.where(has_up, pltpu.roll(p[:, 0:Cp], W, 0), 0.0)      # kh = 0
        mid = p[:, Cp:2 * Cp]                                          # kh = 1
        down = jnp.where(has_down,
                         pltpu.roll(p[:, 2 * Cp:3 * Cp], HW - W, 0), 0.0)  # kh = 2
        return up + mid + down

    x2d = x_ref[0].reshape(HW, Cp)               # f32; also the residual path
    out1 = jnp.maximum(conv3x3(x2d, w1_ref) * s1_ref[0] + b1_ref[0], 0.0)
    out2 = conv3x3(out1, w2_ref) * s2_ref[0] + b2_ref[0]
    out = jnp.maximum(out2 + x2d, 0.0)           # identity residual + relu
    o_ref[0] = out.reshape(H, W, Cp).astype(o_ref.dtype)


def fold_bn(gamma, beta, running_mean, running_var, eps=1e-5):
    scale = gamma / jnp.sqrt(running_var + eps)
    bias = beta - running_mean * scale
    return scale, bias


def _fuse_conv_weight(w_oihw, c_pad):
    """OIHW 3x3 conv weight -> (3*Cp, 3*Cp) bf16, layout [kw*Cp + i, kh*Cp + o]."""
    c_out, c_in = w_oihw.shape[0], w_oihw.shape[1]
    w = jnp.transpose(w_oihw, (2, 3, 1, 0)).astype(jnp.float32)   # (kh, kw, i, o)
    w = jnp.pad(w, ((0, 0), (0, 0), (0, c_pad - c_in), (0, c_pad - c_out)))
    w = jnp.transpose(w, (1, 2, 0, 3))                            # (kw, i, kh, o)
    return w.reshape(3 * c_pad, 3 * c_pad).astype(jnp.bfloat16)


def _pad_vec(v, c_pad):
    return jnp.pad(v.astype(jnp.float32), (0, c_pad - v.shape[0])).reshape(1, c_pad)


def basic_block_forward(x_nchw, w1_oihw, w2_oihw, bn1, bn2, eps=1e-5):
    """BasicBlock forward (eval-mode BN). x_nchw: (N, C, H, W) f32 -> same shape."""
    N, Cin, H, W = x_nchw.shape
    Cout = w1_oihw.shape[0]
    assert Cin == Cout, "identity residual requires inplanes == planes"
    Cp = ((max(Cin, Cout) + LANE - 1) // LANE) * LANE

    # NCHW -> NHWC with the channel (lane) dim zero-padded to a multiple of 128.
    # TODO(synk): in a full network keep activations NHWC / lane-padded end to
    # end so this transpose does not round-trip HBM around every block.
    x_nhwc = jnp.transpose(x_nchw, (0, 2, 3, 1)).astype(jnp.float32)
    x_nhwc = jnp.pad(x_nhwc, ((0, 0), (0, 0), (0, 0), (0, Cp - Cin)))

    w1 = _fuse_conv_weight(w1_oihw, Cp)
    w2 = _fuse_conv_weight(w2_oihw, Cp)
    s1, b1 = fold_bn(*bn1, eps=eps)
    s2, b2 = fold_bn(*bn2, eps=eps)
    s1, b1, s2, b2 = (_pad_vec(t, Cp) for t in (s1, b1, s2, b2))

    full = lambda shape: pl.BlockSpec(shape, lambda n: (0,) * len(shape))

    out_nhwc = pl.pallas_call(
        basic_block_kernel,
        out_shape=jax.ShapeDtypeStruct((N, H, W, Cp), jnp.float32),
        grid_spec=pltpu.PrefetchScalarGridSpec(
            num_scalar_prefetch=0,
            grid=(N,),
            in_specs=[
                pl.BlockSpec((1, H, W, Cp), lambda n: (n, 0, 0, 0)),
                full((3 * Cp, 3 * Cp)),   # w1 (bf16, fused taps)
                full((3 * Cp, 3 * Cp)),   # w2 (bf16, fused taps)
                full((1, Cp)),            # s1
                full((1, Cp)),            # b1
                full((1, Cp)),            # s2
                full((1, Cp)),            # b2
            ],
            out_specs=pl.BlockSpec((1, H, W, Cp), lambda n: (n, 0, 0, 0)),
        ),
        compiler_params=pltpu.CompilerParams(
            dimension_semantics=("parallel",),
            # Live footprint is a few MiB; 32 MiB is safe on v5e/v6e/v7x
            # (v7x physical VMEM is only 64 MiB per core).
            vmem_limit_bytes=32 * 1024 * 1024),
    )(x_nhwc, w1, w2, s1, b1, s2, b2)

    return jnp.transpose(out_nhwc[..., :Cout], (0, 3, 1, 2))  # back to NCHW


def reference_forward(x_nchw, w1_oihw, w2_oihw, bn1, bn2, eps=1e-5):
    """Plain-JAX reference (NCHW, eval-mode BN).  Conv operands are cast to
    bf16 with f32 accumulation to mirror the kernel's MXU numerics."""
    dn = ("NCHW", "OIHW", "NCHW")

    def conv(x, w):
        return jax.lax.conv_general_dilated(
            x.astype(jnp.bfloat16), w.astype(jnp.bfloat16),
            window_strides=(1, 1), padding=((1, 1), (1, 1)),
            dimension_numbers=dn, preferred_element_type=jnp.float32)

    s1, b1 = fold_bn(*bn1, eps=eps)
    s2, b2 = fold_bn(*bn2, eps=eps)
    out = conv(x_nchw, w1_oihw) * s1[None, :, None, None] + b1[None, :, None, None]
    out = jnp.maximum(out, 0.0)
    out = conv(out, w2_oihw) * s2[None, :, None, None] + b2[None, :, None, None]
    return jnp.maximum(out + x_nchw.astype(jnp.float32), 0.0)


if __name__ == "__main__":
    key = jax.random.PRNGKey(0)
    keys = jax.random.split(key, 12)

    N, C, H, W = 2, 4, 16, 16  # inplanes = planes = 4, stride = 1

    x = jax.random.normal(keys[0], (N, C, H, W), dtype=jnp.float32)

    # conv weights (OIHW), kaiming-ish scale
    w1 = jax.random.normal(keys[1], (C, C, 3, 3), dtype=jnp.float32) * 0.2
    w2 = jax.random.normal(keys[2], (C, C, 3, 3), dtype=jnp.float32) * 0.2

    # BatchNorm params: (gamma, beta, running_mean, running_var)
    bn1 = (jax.random.uniform(keys[3], (C,), minval=0.5, maxval=1.5),
           jax.random.normal(keys[4], (C,)) * 0.1,
           jax.random.normal(keys[5], (C,)) * 0.1,
           jax.random.uniform(keys[6], (C,), minval=0.5, maxval=1.5))
    bn2 = (jax.random.uniform(keys[7], (C,), minval=0.5, maxval=1.5),
           jax.random.normal(keys[8], (C,)) * 0.1,
           jax.random.normal(keys[9], (C,)) * 0.1,
           jax.random.uniform(keys[10], (C,), minval=0.5, maxval=1.5))

    out = jax.block_until_ready(basic_block_forward(x, w1, w2, bn1, bn2))
    ref = reference_forward(x, w1, w2, bn1, bn2)

    assert out.shape == (N, C, H, W)
    max_err = jnp.max(jnp.abs(out - ref))
    # bf16 MXU operands => tolerance above pure-f32 roundoff.
    assert jnp.allclose(out, ref, atol=1e-2, rtol=1e-2), f"max abs err = {max_err}"

    print("KERNEL_OK")
</pallas_src>

<mosaic_0001>
module attributes {stable_mosaic.version = 11 : i64} {
  func.func @basic_block_kernel(%arg0: i32, %arg1: memref<1x16x16x128xf32, #tpu.memory_space<vmem>>, %arg2: memref<384x384xbf16, #tpu.memory_space<vmem>>, %arg3: memref<384x384xbf16, #tpu.memory_space<vmem>>, %arg4: memref<1x128xf32, #tpu.memory_space<vmem>>, %arg5: memref<1x128xf32, #tpu.memory_space<vmem>>, %arg6: memref<1x128xf32, #tpu.memory_space<vmem>>, %arg7: memref<1x128xf32, #tpu.memory_space<vmem>>, %arg8: memref<1x16x16x128xf32, #tpu.memory_space<vmem>>) attributes {dimension_semantics = [#tpu.dimension_semantics<parallel>], iteration_bounds = array<i64: 2>, scalar_prefetch = 0 : i64, scratch_operands = 0 : i64, tpu.core_type = #tpu.core_type<tc>, window_params = [{transform_indices = @transform_0, window_bounds = array<i64: 1, 16, 16, 128>}, {pipeline_mode = #tpu.pipeline_mode<synchronous>, transform_indices = @transform_1, window_bounds = array<i64: 384, 384>}, {pipeline_mode = #tpu.pipeline_mode<synchronous>, transform_indices = @transform_2, window_bounds = array<i64: 384, 384>}, {pipeline_mode = #tpu.pipeline_mode<synchronous>, transform_indices = @transform_3, window_bounds = array<i64: 1, 128>}, {pipeline_mode = #tpu.pipeline_mode<synchronous>, transform_indices = @transform_4, window_bounds = array<i64: 1, 128>}, {pipeline_mode = #tpu.pipeline_mode<synchronous>, transform_indices = @transform_5, window_bounds = array<i64: 1, 128>}, {pipeline_mode = #tpu.pipeline_mode<synchronous>, transform_indices = @transform_6, window_bounds = array<i64: 1, 128>}, {transform_indices = @transform_7, window_bounds = array<i64: 1, 16, 16, 128>}]} {
    %0 = tpu.iota {dimensions = array<i32: 0>} : vector<256x1xi32>
    %c15_i32 = arith.constant 15 : i32
    %1 = vector.broadcast %c15_i32 : i32 to vector<256x1xi32>
    %2 = arith.andi %0, %1 : vector<256x1xi32>
    %c1_i32 = arith.constant 1 : i32
    %3 = vector.broadcast %c1_i32 : i32 to vector<256x1xi32>
    %4 = arith.cmpi sge, %2, %3 : vector<256x1xi32>
    %c14_i32 = arith.constant 14 : i32
    %5 = vector.broadcast %c14_i32 : i32 to vector<256x1xi32>
    %6 = arith.cmpi sle, %2, %5 : vector<256x1xi32>
    %c16_i32 = arith.constant 16 : i32
    %7 = vector.broadcast %c16_i32 : i32 to vector<256x1xi32>
    %8 = arith.cmpi sge, %0, %7 : vector<256x1xi32>
    %c240_i32 = arith.constant 240 : i32
    %9 = vector.broadcast %c240_i32 : i32 to vector<256x1xi32>
    %10 = arith.cmpi slt, %0, %9 : vector<256x1xi32>
    %c0 = arith.constant 0 : index
    %c0_0 = arith.constant 0 : index
    %c0_1 = arith.constant 0 : index
    %c0_2 = arith.constant 0 : index
    %11 = vector.load %arg1[%c0, %c0_0, %c0_1, %c0_2] : memref<1x16x16x128xf32, #tpu.memory_space<vmem>>, vector<1x16x16x128xf32>
    %12 = vector.shape_cast %11 : vector<1x16x16x128xf32> to vector<16x16x128xf32>
    %13 = vector.shape_cast %12 : vector<16x16x128xf32> to vector<256x128xf32>
    %c1_i32_3 = arith.constant 1 : i32
    %14 = tpu.dynamic_rotate %13 by %c1_i32_3 dim 0 : vector<256x128xf32>, i32 -> vector<256x128xf32>
    %cst = arith.constant 0.000000e+00 : f32
    %15 = vector.shape_cast %4 : vector<256x1xi1> to vector<256x1xi1>
    %16 = vector.broadcast %15 : vector<256x1xi1> to vector<256x128xi1>
    %17 = vector.broadcast %cst : f32 to vector<256x128xf32>
    %18 = arith.select %16, %14, %17 : vector<256x128xi1>, vector<256x128xf32>
    %c255_i32 = arith.constant 255 : i32
    %19 = tpu.dynamic_rotate %13 by %c255_i32 dim 0 : vector<256x128xf32>, i32 -> vector<256x128xf32>
    %cst_4 = arith.constant 0.000000e+00 : f32
    %20 = vector.shape_cast %6 : vector<256x1xi1> to vector<256x1xi1>
    %21 = vector.broadcast %20 : vector<256x1xi1> to vector<256x128xi1>
    %22 = vector.broadcast %cst_4 : f32 to vector<256x128xf32>
    %23 = arith.select %21, %19, %22 : vector<256x128xi1>, vector<256x128xf32>
    %24 = tpu.concatenate %18, %13, %23 in 1 : vector<256x128xf32>, vector<256x128xf32>, vector<256x128xf32> -> vector<256x384xf32>
    %25 = arith.truncf %24 : vector<256x384xf32> to vector<256x384xbf16>
    %c0_5 = arith.constant 0 : index
    %c0_6 = arith.constant 0 : index
    %26 = vector.load %arg2[%c0_5, %c0_6] : memref<384x384xbf16, #tpu.memory_space<vmem>>, vector<384x384xbf16>
    %cst_7 = arith.constant dense<0.000000e+00> : vector<256x384xf32>
    %27 = tpu.matmul %25, %26, %cst_7 {dimension_numbers = #tpu.dot_dimension_numbers<[1], [0], [0], [1], [0, 0, 1, 1], [], []>} : vector<256x384xbf16>, vector<384x384xbf16>, vector<256x384xf32> -> vector<256x384xf32>
    %28 = vector.extract_strided_slice %27 {offsets = [0, 0], sizes = [256, 128], strides = [1, 1]} : vector<256x384xf32> to vector<256x128xf32>
    %c16_i32_8 = arith.constant 16 : i32
    %29 = tpu.dynamic_rotate %28 by %c16_i32_8 dim 0 : vector<256x128xf32>, i32 -> vector<256x128xf32>
    %cst_9 = arith.constant 0.000000e+00 : f32
    %30 = vector.shape_cast %8 : vector<256x1xi1> to vector<256x1xi1>
    %31 = vector.broadcast %30 : vector<256x1xi1> to vector<256x128xi1>
    %32 = vector.broadcast %cst_9 : f32 to vector<256x128xf32>
    %33 = arith.select %31, %29, %32 : vector<256x128xi1>, vector<256x128xf32>
    %34 = vector.extract_strided_slice %27 {offsets = [0, 128], sizes = [256, 128], strides = [1, 1]} : vector<256x384xf32> to vector<256x128xf32>
    %35 = vector.extract_strided_slice %27 {offsets = [0, 256], sizes = [256, 128], strides = [1, 1]} : vector<256x384xf32> to vector<256x128xf32>
    %c240_i32_10 = arith.constant 240 : i32
    %36 = tpu.dynamic_rotate %35 by %c240_i32_10 dim 0 : vector<256x128xf32>, i32 -> vector<256x128xf32>
    %cst_11 = arith.constant 0.000000e+00 : f32
    %37 = vector.shape_cast %10 : vector<256x1xi1> to vector<256x1xi1>
    %38 = vector.broadcast %37 : vector<256x1xi1> to vector<256x128xi1>
    %39 = vector.broadcast %cst_11 : f32 to vector<256x128xf32>
    %40 = arith.select %38, %36, %39 : vector<256x128xi1>, vector<256x128xf32>
    %41 = arith.addf %33, %34 : vector<256x128xf32>
    %42 = arith.addf %41, %40 : vector<256x128xf32>
    %c0_12 = arith.constant 0 : index
    %c0_13 = arith.constant 0 : index
    %43 = vector.load %arg4[%c0_12, %c0_13] : memref<1x128xf32, #tpu.memory_space<vmem>>, vector<1x128xf32>
    %44 = vector.shape_cast %43 : vector<1x128xf32> to vector<128xf32>
    %45 = vector.shape_cast %44 : vector<128xf32> to vector<1x128xf32>
    %46 = vector.broadcast %45 : vector<1x128xf32> to vector<256x128xf32>
    %47 = arith.mulf %42, %46 : vector<256x128xf32>
    %c0_14 = arith.constant 0 : index
    %c0_15 = arith.constant 0 : index
    %48 = vector.load %arg5[%c0_14, %c0_15] : memref<1x128xf32, #tpu.memory_space<vmem>>, vector<1x128xf32>
    %49 = vector.shape_cast %48 : vector<1x128xf32> to vector<128xf32>
    %50 = vector.shape_cast %49 : vector<128xf32> to vector<1x128xf32>
    %51 = vector.broadcast %50 : vector<1x128xf32> to vector<256x128xf32>
    %52 = arith.addf %47, %51 : vector<256x128xf32>
    %cst_16 = arith.constant 0.000000e+00 : f32
    %53 = vector.broadcast %cst_16 : f32 to vector<256x128xf32>
    %54 = arith.maximumf %52, %53 : vector<256x128xf32>
    %c1_i32_17 = arith.constant 1 : i32
    %55 = tpu.dynamic_rotate %54 by %c1_i32_17 dim 0 : vector<256x128xf32>, i32 -> vector<256x128xf32>
    %cst_18 = arith.constant 0.000000e+00 : f32
    %56 = vector.shape_cast %4 : vector<256x1xi1> to vector<256x1xi1>
    %57 = vector.broadcast %56 : vector<256x1xi1> to vector<256x128xi1>
    %58 = vector.broadcast %cst_18 : f32 to vector<256x128xf32>
    %59 = arith.select %57, %55, %58 : vector<256x128xi1>, vector<256x128xf32>
    %c255_i32_19 = arith.constant 255 : i32
    %60 = tpu.dynamic_rotate %54 by %c255_i32_19 dim 0 : vector<256x128xf32>, i32 -> vector<256x128xf32>
    %cst_20 = arith.constant 0.000000e+00 : f32
    %61 = vector.shape_cast %6 : vector<256x1xi1> to vector<256x1xi1>
    %62 = vector.broadcast %61 : vector<256x1xi1> to vector<256x128xi1>
    %63 = vector.broadcast %cst_20 : f32 to vector<256x128xf32>
    %64 = arith.select %62, %60, %63 : vector<256x128xi1>, vector<256x128xf32>
    %65 = tpu.concatenate %59, %54, %64 in 1 : vector<256x128xf32>, vector<256x128xf32>, vector<256x128xf32> -> vector<256x384xf32>
    %66 = arith.truncf %65 : vector<256x384xf32> to vector<256x384xbf16>
    %c0_21 = arith.constant 0 : index
    %c0_22 = arith.constant 0 : index
    %67 = vector.load %arg3[%c0_21, %c0_22] : memref<384x384xbf16, #tpu.memory_space<vmem>>, vector<384x384xbf16>
    %cst_23 = arith.constant dense<0.000000e+00> : vector<256x384xf32>
    %68 = tpu.matmul %66, %67, %cst_23 {dimension_numbers = #tpu.dot_dimension_numbers<[1], [0], [0], [1], [0, 0, 1, 1], [], []>} : vector<256x384xbf16>, vector<384x384xbf16>, vector<256x384xf32> -> vector<256x384xf32>
    %69 = vector.extract_strided_slice %68 {offsets = [0, 0], sizes = [256, 128], strides = [1, 1]} : vector<256x384xf32> to vector<256x128xf32>
    %c16_i32_24 = arith.constant 16 : i32
    %70 = tpu.dynamic_rotate %69 by %c16_i32_24 dim 0 : vector<256x128xf32>, i32 -> vector<256x128xf32>
    %cst_25 = arith.constant 0.000000e+00 : f32
    %71 = vector.shape_cast %8 : vector<256x1xi1> to vector<256x1xi1>
    %72 = vector.broadcast %71 : vector<256x1xi1> to vector<256x128xi1>
    %73 = vector.broadcast %cst_25 : f32 to vector<256x128xf32>
    %74 = arith.select %72, %70, %73 : vector<256x128xi1>, vector<256x128xf32>
    %75 = vector.extract_strided_slice %68 {offsets = [0, 128], sizes = [256, 128], strides = [1, 1]} : vector<256x384xf32> to vector<256x128xf32>
    %76 = vector.extract_strided_slice %68 {offsets = [0, 256], sizes = [256, 128], strides = [1, 1]} : vector<256x384xf32> to vector<256x128xf32>
    %c240_i32_26 = arith.constant 240 : i32
    %77 = tpu.dynamic_rotate %76 by %c240_i32_26 dim 0 : vector<256x128xf32>, i32 -> vector<256x128xf32>
    %cst_27 = arith.constant 0.000000e+00 : f32
    %78 = vector.shape_cast %10 : vector<256x1xi1> to vector<256x1xi1>
    %79 = vector.broadcast %78 : vector<256x1xi1> to vector<256x128xi1>
    %80 = vector.broadcast %cst_27 : f32 to vector<256x128xf32>
    %81 = arith.select %79, %77, %80 : vector<256x128xi1>, vector<256x128xf32>
    %82 = arith.addf %74, %75 : vector<256x128xf32>
    %83 = arith.addf %82, %81 : vector<256x128xf32>
    %c0_28 = arith.constant 0 : index
    %c0_29 = arith.constant 0 : index
    %84 = vector.load %arg6[%c0_28, %c0_29] : memref<1x128xf32, #tpu.memory_space<vmem>>, vector<1x128xf32>
    %85 = vector.shape_cast %84 : vector<1x128xf32> to vector<128xf32>
    %86 = vector.shape_cast %85 : vector<128xf32> to vector<1x128xf32>
    %87 = vector.broadcast %86 : vector<1x128xf32> to vector<256x128xf32>
    %88 = arith.mulf %83, %87 : vector<256x128xf32>
    %c0_30 = arith.constant 0 : index
    %c0_31 = arith.constant 0 : index
    %89 = vector.load %arg7[%c0_30, %c0_31] : memref<1x128xf32, #tpu.memory_space<vmem>>, vector<1x128xf32>
    %90 = vector.shape_cast %89 : vector<1x128xf32> to vector<128xf32>
    %91 = vector.shape_cast %90 : vector<128xf32> to vector<1x128xf32>
    %92 = vector.broadcast %91 : vector<1x128xf32> to vector<256x128xf32>
    %93 = arith.addf %88, %92 : vector<256x128xf32>
    %94 = arith.addf %93, %13 : vector<256x128xf32>
    %cst_32 = arith.constant 0.000000e+00 : f32
    %95 = vector.broadcast %cst_32 : f32 to vector<256x128xf32>
    %96 = arith.maximumf %94, %95 : vector<256x128xf32>
    %97 = vector.shape_cast %96 : vector<256x128xf32> to vector<16x16x128xf32>
    %c0_33 = arith.constant 0 : index
    %c0_34 = arith.constant 0 : index
    %c0_35 = arith.constant 0 : index
    %c0_36 = arith.constant 0 : index
    %98 = vector.load %arg8[%c0_33, %c0_34, %c0_35, %c0_36] : memref<1x16x16x128xf32, #tpu.memory_space<vmem>>, vector<1x16x16x128xf32>
    %99 = vector.shape_cast %98 : vector<1x16x16x128xf32> to vector<16x16x128xf32>
    %100 = vector.shape_cast %97 : vector<16x16x128xf32> to vector<1x16x16x128xf32>
    tpu.vector_store %arg8[%c0_33, %c0_34, %c0_35, %c0_36], %100 {strides = array<i32>} : memref<1x16x16x128xf32, #tpu.memory_space<vmem>>, vector<1x16x16x128xf32>,
    return
  }
  func.func @transform_0(%arg0: i32) -> (i32, i32, i32, i32) {
    %c0_i32 = arith.constant 0 : i32
    %c0_i32_0 = arith.constant 0 : i32
    %c0_i32_1 = arith.constant 0 : i32
    %c0_i32_2 = arith.constant 0 : i32
    return %arg0, %c0_i32, %c0_i32_0, %c0_i32_1 : i32, i32, i32, i32
  }
  func.func @transform_1(%arg0: i32) -> (i32, i32) {
    %c0_i32 = arith.constant 0 : i32
    %c0_i32_0 = arith.constant 0 : i32
    %c0_i32_1 = arith.constant 0 : i32
    return %c0_i32, %c0_i32_0 : i32, i32
  }
  func.func @transform_2(%arg0: i32) -> (i32, i32) {
    %c0_i32 = arith.constant 0 : i32
    %c0_i32_0 = arith.constant 0 : i32
    %c0_i32_1 = arith.constant 0 : i32
    return %c0_i32, %c0_i32_0 : i32, i32
  }
  func.func @transform_3(%arg0: i32) -> (i32, i32) {
    %c0_i32 = arith.constant 0 : i32
    %c0_i32_0 = arith.constant 0 : i32
    %c0_i32_1 = arith.constant 0 : i32
    return %c0_i32, %c0_i32_0 : i32, i32
  }
  func.func @transform_4(%arg0: i32) -> (i32, i32) {
    %c0_i32 = arith.constant 0 : i32
    %c0_i32_0 = arith.constant 0 : i32
    %c0_i32_1 = arith.constant 0 : i32
    return %c0_i32, %c0_i32_0 : i32, i32
  }
  func.func @transform_5(%arg0: i32) -> (i32, i32) {
    %c0_i32 = arith.constant 0 : i32
    %c0_i32_0 = arith.constant 0 : i32
    %c0_i32_1 = arith.constant 0 : i32
    return %c0_i32, %c0_i32_0 : i32, i32
  }
  func.func @transform_6(%arg0: i32) -> (i32, i32) {
    %c0_i32 = arith.constant 0 : i32
    %c0_i32_0 = arith.constant 0 : i32
    %c0_i32_1 = arith.constant 0 : i32
    return %c0_i32, %c0_i32_0 : i32, i32
  }
  func.func @transform_7(%arg0: i32) -> (i32, i32, i32, i32) {
    %c0_i32 = arith.constant 0 : i32
    %c0_i32_0 = arith.constant 0 : i32
    %c0_i32_1 = arith.constant 0 : i32
    %c0_i32_2 = arith.constant 0 : i32
    return %arg0, %c0_i32, %c0_i32_0, %c0_i32_1 : i32, i32, i32, i32
  }
}

</mosaic_0001>

<llo_original>
// kernel: tpu_custom_call.1
$region0: #{tpu_custom_call.1}
  #allocation0 [shape = 'u32[]', space=smem, size = 0x4, offset = 0x4, fixed_abs, tag = 'smem constant byte address 0x4 - core index']
  #allocation1 [shape = 'u32[72,128]{1,0:T(1,128)}', space=vmem, size = 0x9000, scoped, tag = 'internal scratch']
  %s0 = inlined_call_operand.hbm [shape: f32[2,16,16,128], index: 0, kind: input, shape index: {}]
  %s1 = inlined_call_operand.hbm [shape: bf16[384,384], index: 1, kind: input, shape index: {}]
  %s2 = inlined_call_operand.hbm [shape: bf16[384,384], index: 2, kind: input, shape index: {}]
  %s3 = inlined_call_operand.vmem [shape: f32[1,128], index: 3, kind: input, shape index: {}]
  %s4 = inlined_call_operand.vmem [shape: f32[1,128], index: 4, kind: input, shape index: {}]
  %s5 = inlined_call_operand.vmem [shape: f32[1,128], index: 5, kind: input, shape index: {}]
  %s6 = inlined_call_operand.vmem [shape: f32[1,128], index: 6, kind: input, shape index: {}]
  %s7 = inlined_call_operand.hbm [shape: f32[2,16,16,128], index: 7, kind: output, shape index: {}]
  %s8 = sld [smem:[#allocation0]]
  $region73: #{tpu_custom_call.1} parent=0
    _
  %s10 = ssub.s32 1, %s8
  %s11 = scalar_select 0, %s10, %s8
  $region1: #{tpu_custom_call.1} parent=0
    #allocation2 [shape = 'u8[262144]{0}', space=vmem, size = 0x40000, scoped, tag = 'input window, operand 0']
    #allocation3 [shape = 's32[2]{0}', space=sflag, size = 0x8, scoped, tag = 'scoped memory for tpu_custom_call.1']
    #allocation4 [shape = 's32[2]{0}', space=sflag, size = 0x8, scoped, tag = 'scoped memory for tpu_custom_call.1']
    #allocation5 [shape = 'u8[294912]{0}', space=vmem, size = 0x48000, scoped, tag = 'input window, operand 1, single buffered']
    #allocation6 [shape = 's32[1]{0}', space=sflag, size = 0x4, scoped, tag = 'scoped memory for tpu_custom_call.1']
    #allocation7 [shape = 'u8[294912]{0}', space=vmem, size = 0x48000, scoped, tag = 'input window, operand 2, single buffered']
    #allocation8 [shape = 'u8[262144]{0}', space=vmem, size = 0x40000, scoped, tag = 'output window, operand 0']
    %12 = vsyncpa [#allocation3], 0
    %s13 = scalar_lea.sflag [#allocation3], 1
    %14 = vsyncpa %s13, 0
    %15 = vsyncpa [#allocation6], 0
    %16 = vsyncpa [#allocation4], 0
    %s17 = scalar_lea.sflag [#allocation4], 1
    %18 = vsyncpa %s17, 0
    loop: start=0, step=1, limit=4
    $region2: #{tpu_custom_call.1} parent=1 // loop_pre_header
      _
    $region3: #{tpu_custom_call.1} parent=1 // loop_header
      %s20 = sphi 0, %s24
      %p21 = scmp.ge.s32.totalorder %s20, 4
      %s30 = sphi 0, %s32
      %s33 = sphi 0, %s30
      %s34 = sphi 0, %s33
      %s50 = sphi 0, %s34
      %s54 = sphi 0, %s54
      %s56 = sphi 0, %s54
      %s57 = sphi 0, %s56
      %s71 = sphi 0, %s57
      %s75 = sphi 0, %s75
      %s77 = sphi 0, %s75
      %s78 = sphi 0, %s77
      %s92 = sphi 0, %s78
      %s96 = sphi 0, %s96
      %s98 = sphi 0, %s96
      %s99 = sphi 0, %s98
      %s113 = sphi 0, %s99
      %s117 = sphi 0, %s117
      %s119 = sphi 0, %s117
      %s120 = sphi 0, %s119
      %s134 = sphi 0, %s120
      %s138 = sphi 0, %s138
      %s140 = sphi 0, %s138
      %s141 = sphi 0, %s140
      %s155 = sphi 0, %s141
      %s159 = sphi 0, %s159
      %s161 = sphi 0, %s159
      %s162 = sphi 0, %s161
      %s176 = sphi 0, %s162
      %s182 = sphi 0, %s184
      %s185 = sphi 0, %s182
      %s186 = sphi 0, %s185
      %s202 = sphi 0, %s186
    $region4: #{tpu_custom_call.1} parent=1 // loop_header_branch
      %23 = sbr.rel (%p21) target = $region8
    $region5: #{tpu_custom_call.1} parent=1 // loop_body
      %s25 = ssub.s32 %s20, 1
      %s26 = ssub.s32 %s20, 2
      %s27 = sadd.s32 %s20, 1
      %s28 = ssub.s32 %s20, %s27
      %p29 = scmp.eq.s32.totalorder %s28, 0
      %s31 = sadd.s32 %s30, 1
      %s32 = scalar_select %p29, %s30, %s31
      %p35 = pneg %p29
      %p36 = scmp.eq.s32.totalorder %s20, 1
      %p37 = por %p35, %p36
      %p38 = scmp.ne.s32.totalorder %s30, %s33
      %p39 = scmp.eq.s32.totalorder %s20, 0
      %p40 = por %p38, %p39
      %p41 = scmp.ne.s32.totalorder %s30, %s33
      %p42 = scmp.eq.s32.totalorder %s25, 1
      %p43 = por %p41, %p42
      %p44 = scmp.ne.s32.totalorder %s33, %s34
      %p45 = scmp.eq.s32.totalorder %s25, 0
      %p46 = por %p44, %p45
      %p47 = scmp.ne.s32.totalorder %s33, %s34
      %p48 = scmp.eq.s32.totalorder %s26, 1
      %p49 = por %p47, %p48
      %p51 = scmp.ne.s32.totalorder %s34, %s50
      %p52 = scmp.eq.s32.totalorder %s26, 0
      %p53 = por %p51, %p52
      %s55 = sadd.s32 %s54, 1
      %p58 = scmp.eq.s32.totalorder %s20, 1
      %p59 = scmp.ne.s32.totalorder %s54, %s56
      %p60 = scmp.eq.s32.totalorder %s20, 0
      %p61 = por %p59, %p60
      %p62 = scmp.ne.s32.totalorder %s54, %s56
      %p63 = scmp.eq.s32.totalorder %s25, 1
      %p64 = por %p62, %p63
      %p65 = scmp.ne.s32.totalorder %s56, %s57
      %p66 = scmp.eq.s32.totalorder %s25, 0
      %p67 = por %p65, %p66
      %p68 = scmp.ne.s32.totalorder %s56, %s57
      %p69 = scmp.eq.s32.totalorder %s26, 1
      %p70 = por %p68, %p69
      %p72 = scmp.ne.s32.totalorder %s57, %s71
      %p73 = scmp.eq.s32.totalorder %s26, 0
      %p74 = por %p72, %p73
      %s76 = sadd.s32 %s75, 1
      %p79 = scmp.eq.s32.totalorder %s20, 1
      %p80 = scmp.ne.s32.totalorder %s75, %s77
      %p81 = scmp.eq.s32.totalorder %s20, 0
      %p82 = por %p80, %p81
      %p83 = scmp.ne.s32.totalorder %s75, %s77
      %p84 = scmp.eq.s32.totalorder %s25, 1
      %p85 = por %p83, %p84
      %p86 = scmp.ne.s32.totalorder %s77, %s78
      %p87 = scmp.eq.s32.totalorder %s25, 0
      %p88 = por %p86, %p87
      %p89 = scmp.ne.s32.totalorder %s77, %s78
      %p90 = scmp.eq.s32.totalorder %s26, 1
      %p91 = por %p89, %p90
      %p93 = scmp.ne.s32.totalorder %s78, %s92
      %p94 = scmp.eq.s32.totalorder %s26, 0
      %p95 = por %p93, %p94
      %s97 = sadd.s32 %s96, 1
      %p100 = scmp.eq.s32.totalorder %s20, 1
      %p101 = scmp.ne.s32.totalorder %s96, %s98
      %p102 = scmp.eq.s32.totalorder %s20, 0
      %p103 = por %p101, %p102
      %p104 = scmp.ne.s32.totalorder %s96, %s98
      %p105 = scmp.eq.s32.totalorder %s25, 1
      %p106 = por %p104, %p105
      %p107 = scmp.ne.s32.totalorder %s98, %s99
      %p108 = scmp.eq.s32.totalorder %s25, 0
      %p109 = por %p107, %p108
      %p110 = scmp.ne.s32.totalorder %s98, %s99
      %p111 = scmp.eq.s32.totalorder %s26, 1
      %p112 = por %p110, %p111
      %p114 = scmp.ne.s32.totalorder %s99, %s113
      %p115 = scmp.eq.s32.totalorder %s26, 0
      %p116 = por %p114, %p115
      %s118 = sadd.s32 %s117, 1
      %p121 = scmp.eq.s32.totalorder %s20, 1
      %p122 = scmp.ne.s32.totalorder %s117, %s119
      %p123 = scmp.eq.s32.totalorder %s20, 0
      %p124 = por %p122, %p123
      %p125 = scmp.ne.s32.totalorder %s117, %s119
      %p126 = scmp.eq.s32.totalorder %s25, 1
      %p127 = por %p125, %p126
      %p128 = scmp.ne.s32.totalorder %s119, %s120
      %p129 = scmp.eq.s32.totalorder %s25, 0
      %p130 = por %p128, %p129
      %p131 = scmp.ne.s32.totalorder %s119, %s120
      %p132 = scmp.eq.s32.totalorder %s26, 1
      %p133 = por %p131, %p132
      %p135 = scmp.ne.s32.totalorder %s120, %s134
      %p136 = scmp.eq.s32.totalorder %s26, 0
      %p137 = por %p135, %p136
      %s139 = sadd.s32 %s138, 1
      %p142 = scmp.eq.s32.totalorder %s20, 1
      %p143 = scmp.ne.s32.totalorder %s138, %s140
      %p144 = scmp.eq.s32.totalorder %s20, 0
      %p145 = por %p143, %p144
      %p146 = scmp.ne.s32.totalorder %s138, %s140
      %p147 = scmp.eq.s32.totalorder %s25, 1
      %p148 = por %p146, %p147
      %p149 = scmp.ne.s32.totalorder %s140, %s141
      %p150 = scmp.eq.s32.totalorder %s25, 0
      %p151 = por %p149, %p150
      %p152 = scmp.ne.s32.totalorder %s140, %s141
      %p153 = scmp.eq.s32.totalorder %s26, 1
      %p154 = por %p152, %p153
      %p156 = scmp.ne.s32.totalorder %s141, %s155
      %p157 = scmp.eq.s32.totalorder %s26, 0
      %p158 = por %p156, %p157
      %s160 = sadd.s32 %s159, 1
      %p163 = scmp.eq.s32.totalorder %s20, 1
      %p164 = scmp.ne.s32.totalorder %s159, %s161
      %p165 = scmp.eq.s32.totalorder %s20, 0
      %p166 = por %p164, %p165
      %p167 = scmp.ne.s32.totalorder %s159, %s161
      %p168 = scmp.eq.s32.totalorder %s25, 1
      %p169 = por %p167, %p168
      %p170 = scmp.ne.s32.totalorder %s161, %s162
      %p171 = scmp.eq.s32.totalorder %s25, 0
      %p172 = por %p170, %p171
      %p173 = scmp.ne.s32.totalorder %s161, %s162
      %p174 = scmp.eq.s32.totalorder %s26, 1
      %p175 = por %p173, %p174
      %p177 = scmp.ne.s32.totalorder %s162, %s176
      %p178 = scmp.eq.s32.totalorder %s26, 0
      %p179 = por %p177, %p178
      %s180 = ssub.s32 %s20, %s27
      %p181 = scmp.eq.s32.totalorder %s180, 0
      %s183 = sadd.s32 %s182, 1
      %s184 = scalar_select %p181, %s182, %s183
      %p187 = pneg %p181
      %p188 = scmp.eq.s32.totalorder %s20, 1
      %p189 = por %p187, %p188
      %p190 = scmp.ne.s32.totalorder %s182, %s185
      %p191 = scmp.eq.s32.totalorder %s20, 0
      %p192 = por %p190, %p191
      %p193 = scmp.ne.s32.totalorder %s182, %s185
      %p194 = scmp.eq.s32.totalorder %s25, 1
      %p195 = por %p193, %p194
      %p196 = scmp.ne.s32.totalorder %s185, %s186
      %p197 = scmp.eq.s32.totalorder %s25, 0
      %p198 = por %p196, %p197
      %p199 = scmp.ne.s32.totalorder %s185, %s186
      %p200 = scmp.eq.s32.totalorder %s26, 1
      %p201 = por %p199, %p200
      %p203 = scmp.ne.s32.totalorder %s186, %s202
      %p204 = scmp.eq.s32.totalorder %s26, 0
      %p205 = por %p203, %p204
      %p206 = scmp.le.s32.totalorder 1, %s20
      %p207 = scmp.lt.s32.totalorder %s20, 3
      %p208 = pnand %p206, %p207
      %p209 = pneg %p208
      // Predicated region
      $region9: #{tpu_custom_call.1} parent=5 // pred_check
        _
      $region10: #{tpu_custom_call.1} parent=5 // pred_check_branch
        %211 = sbr.rel (%p208) target = $region12
      $region11: #{tpu_custom_call.1} parent=5 // pred_region
        %s212 = ssub.s32 %s20, 1
        // Predicated region
        $region13: #{tpu_custom_call.1} parent=11 // pred_check
          %p213 = pneg %p67
        $region14: #{tpu_custom_call.1} parent=11 // pred_check_branch
          %215 = sbr.rel (%p213) target = $region16
        $region15: #{tpu_custom_call.1} parent=11 // pred_region
          %217 = vsyncadd [#allocation6], 0
          %s218 = sshll.u32 %s1, 4
          %s219 = int_to_ptr.hbm [resolvable:$true] %s218
          %s220 = sshll.u32 [#allocation5], 4
          %s221 = int_to_ptr.vmem [resolvable:$true] %s220
          %226 = dma.hbm_to_vmem [thread:$0]  %s219, 9216, %s221, [#allocation6], 192, 192, 12
        $region16: #{tpu_custom_call.1} parent=11 // pred_fallthru
          _
        // Predicated region
        $region17: #{tpu_custom_call.1} parent=11 // pred_check
          %p227 = pneg %p88
        $region18: #{tpu_custom_call.1} parent=11 // pred_check_branch
          %229 = sbr.rel (%p227) target = $region20
        $region19: #{tpu_custom_call.1} parent=11 // pred_region
          %231 = vsyncadd [#allocation6], 0
          %s232 = sshll.u32 %s2, 4
          %s233 = int_to_ptr.hbm [resolvable:$true] %s232
          %s234 = sshll.u32 [#allocation7], 4
          %s235 = int_to_ptr.vmem [resolvable:$true] %s234
          %240 = dma.hbm_to_vmem [thread:$0]  %s233, 9216, %s235, [#allocation6], 192, 192, 12
        $region20: #{tpu_custom_call.1} parent=11 // pred_fallthru
          _
        // Predicated region
        $region21: #{tpu_custom_call.1} parent=11 // pred_check
          %p241 = pneg %p109
        $region22: #{tpu_custom_call.1} parent=11 // pred_check_branch
          %243 = sbr.rel (%p241) target = $region24
        $region23: #{tpu_custom_call.1} parent=11 // pred_region
          _
        $region24: #{tpu_custom_call.1} parent=11 // pred_fallthru
          _
        // Predicated region
        $region25: #{tpu_custom_call.1} parent=11 // pred_check
          %p244 = pneg %p130
        $region26: #{tpu_custom_call.1} parent=11 // pred_check_branch
          %246 = sbr.rel (%p244) target = $region28
        $region27: #{tpu_custom_call.1} parent=11 // pred_region
          _
        $region28: #{tpu_custom_call.1} parent=11 // pred_fallthru
          _
        // Predicated region
        $region29: #{tpu_custom_call.1} parent=11 // pred_check
          %p247 = pneg %p151
        $region30: #{tpu_custom_call.1} parent=11 // pred_check_branch
          %249 = sbr.rel (%p247) target = $region32
        $region31: #{tpu_custom_call.1} parent=11 // pred_region
          _
        $region32: #{tpu_custom_call.1} parent=11 // pred_fallthru
          _
        // Predicated region
        $region33: #{tpu_custom_call.1} parent=11 // pred_check
          %p250 = pneg %p172
        $region34: #{tpu_custom_call.1} parent=11 // pred_check_branch
          %252 = sbr.rel (%p250) target = $region36
        $region35: #{tpu_custom_call.1} parent=11 // pred_region
          _
        $region36: #{tpu_custom_call.1} parent=11 // pred_fallthru
          _
      $region12: #{tpu_custom_call.1} parent=5 // pred_fallthru
        _
      %p253 = scmp.lt.s32.totalorder %s20, 2
      // Predicated region
      $region37: #{tpu_custom_call.1} parent=5 // pred_check
        %p254 = pneg %p253
      $region38: #{tpu_custom_call.1} parent=5 // pred_check_branch
        %256 = sbr.rel (%p254) target = $region40
      $region39: #{tpu_custom_call.1} parent=5 // pred_region
        // Predicated region
        $region41: #{tpu_custom_call.1} parent=39 // pred_check
          %p257 = pneg %p40
        $region42: #{tpu_custom_call.1} parent=39 // pred_check_branch
          %259 = sbr.rel (%p257) target = $region44
        $region43: #{tpu_custom_call.1} parent=39 // pred_region
          %s260 = sand.u32 %s30, 1
          %s261 = scalar_lea.sflag [#allocation3], %s260
          %s262 = sand.u32 %s30, 1
          %s263 = smul.addr %s262, 256
          %s264 = scalar_lea.vmem [#allocation2], %s263
          %266 = vsyncadd %s261, 0
          %s267 = smul.addr %s20, 32
          %s268 = smul.addr %s267, 8
          %s269 = scalar_lea.hbm %s0, %s268
          %s270 = sshll.u32 %s269, 4
          %s271 = int_to_ptr.hbm [resolvable:$true] %s270
          %s272 = sshll.u32 %s264, 4
          %s273 = int_to_ptr.vmem [resolvable:$true] %s272
          %278 = dma.hbm_to_vmem [thread:$0]  %s271, 4096, %s273, %s261, 128, 128, 8
        $region44: #{tpu_custom_call.1} parent=39 // pred_fallthru
          _
      $region40: #{tpu_custom_call.1} parent=5 // pred_fallthru
        _
      %p279 = scmp.le.s32.totalorder 1, %s20
      %p280 = scmp.lt.s32.totalorder %s20, 3
      %p281 = pnand %p279, %p280
      %p282 = pneg %p281
      // Predicated region
      $region45: #{tpu_custom_call.1} parent=5 // pred_check
        _
      $region46: #{tpu_custom_call.1} parent=5 // pred_check_branch
        %284 = sbr.rel (%p281) target = $region48
      $region47: #{tpu_custom_call.1} parent=5 // pred_region
        %s285 = ssub.s32 %s20, 1
        %s286 = sand.u32 %s33, 1
        %s287 = scalar_lea.sflag [#allocation3], %s286
        %s288 = sand.u32 %s33, 1
        %s289 = smul.addr %s288, 256
        %s290 = scalar_lea.vmem [#allocation2], %s289
        // Predicated region
        $region49: #{tpu_custom_call.1} parent=47 // pred_check
          %p291 = pneg %p46
        $region50: #{tpu_custom_call.1} parent=47 // pred_check_branch
          %293 = sbr.rel (%p291) target = $region52
        $region51: #{tpu_custom_call.1} parent=47 // pred_region
          %295 = dma.done %s287, 4096
        $region52: #{tpu_custom_call.1} parent=47 // pred_fallthru
          _
        // Predicated region
        $region53: #{tpu_custom_call.1} parent=47 // pred_check
          %p296 = pneg %p67
        $region54: #{tpu_custom_call.1} parent=47 // pred_check_branch
          %298 = sbr.rel (%p296) target = $region56
        $region55: #{tpu_custom_call.1} parent=47 // pred_region
          %300 = dma.done [#allocation6], 9216
        $region56: #{tpu_custom_call.1} parent=47 // pred_fallthru
          _
        // Predicated region
        $region57: #{tpu_custom_call.1} parent=47 // pred_check
          %p301 = pneg %p88
        $region58: #{tpu_custom_call.1} parent=47 // pred_check_branch
          %303 = sbr.rel (%p301) target = $region60
        $region59: #{tpu_custom_call.1} parent=47 // pred_region
          %305 = dma.done [#allocation6], 9216
        $region60: #{tpu_custom_call.1} parent=47 // pred_fallthru
          _
        %s306 = sand.u32 %s33, 1
        %s307 = scalar_lea.sflag [#allocation3], %s306
        %s308 = sand.u32 %s33, 1
        %s309 = smul.addr %s308, 256
        %s310 = scalar_lea.vmem [#allocation2], %s309
        %p311 = pneg %p46
        %p312 = pneg %p43
        %p313 = pneg %p67
        %p314 = pneg %p64
        %p315 = pneg %p88
        %p316 = pneg %p85
        %p317 = pneg %p109
        %p318 = pneg %p106
        %p319 = pneg %p130
        %p320 = pneg %p127
        %p321 = pneg %p151
        %p322 = pneg %p148
        %p323 = pneg %p172
        %p324 = pneg %p169
        %p325 = pneg %p198
        %p326 = pneg %p195
        %s327 = sand.u32 %s185, 1
        %s328 = scalar_lea.sflag [#allocation4], %s327
        %s329 = sand.u32 %s185, 1
        %s330 = smul.addr %s329, 256
        %s331 = scalar_lea.vmem [#allocation8], %s330
        %v332 = vlaneseq
        %v333 = vshrl.u32 %v332, 7
        %v334 = vadd.s32 %v333, 8
        %v335 = vadd.s32 %v333, 16
        %v336 = vadd.s32 %v333, 24
        %v337 = vadd.s32 %v333, 32
        %v338 = vadd.s32 %v333, 40
        %v339 = vadd.s32 %v333, 48
        %v340 = vadd.s32 %v333, 56
        %v341 = vadd.s32 %v333, 64
        %v342 = vadd.s32 %v333, 72
        %v343 = vadd.s32 %v333, 80
        %v344 = vadd.s32 %v333, 88
        %v345 = vadd.s32 %v333, 96
        %v346 = vadd.s32 %v333, 104
        %v347 = vadd.s32 %v333, 112
        %v348 = vadd.s32 %v333, 120
        %v349 = vadd.s32 %v333, 128
        %v350 = vadd.s32 %v333, 136
        %v351 = vadd.s32 %v333, 144
        %v352 = vadd.s32 %v333, 152
        %v353 = vadd.s32 %v333, 160
        %v354 = vadd.s32 %v333, 168
        %v355 = vadd.s32 %v333, 176
        %v356 = vadd.s32 %v333, 184
        %v357 = vadd.s32 %v333, 192
        %v358 = vadd.s32 %v333, 200
        %v359 = vadd.s32 %v333, 208
        %v360 = vadd.s32 %v333, 216
        %v361 = vadd.s32 %v333, 224
        %v362 = vadd.s32 %v333, 232
        %v363 = vadd.s32 %v333, 240
        %v364 = vadd.s32 %v333, 248
        %v365 = vand.u32 %v333, 15
        %v366 = vand.u32 %v334, 15
        %v367 = vand.u32 %v335, 15
        %v368 = vand.u32 %v336, 15
        %v369 = vand.u32 %v337, 15
        %v370 = vand.u32 %v338, 15
        %v371 = vand.u32 %v339, 15
        %v372 = vand.u32 %v340, 15
        %v373 = vand.u32 %v341, 15
        %v374 = vand.u32 %v342, 15
        %v375 = vand.u32 %v343, 15
        %v376 = vand.u32 %v344, 15
        %v377 = vand.u32 %v345, 15
        %v378 = vand.u32 %v346, 15
        %v379 = vand.u32 %v347, 15
        %v380 = vand.u32 %v348, 15
        %v381 = vand.u32 %v349, 15
        %v382 = vand.u32 %v350, 15
        %v383 = vand.u32 %v351, 15
        %v384 = vand.u32 %v352, 15
        %v385 = vand.u32 %v353, 15
        %v386 = vand.u32 %v354, 15
        %v387 = vand.u32 %v355, 15
        %v388 = vand.u32 %v356, 15
        %v389 = vand.u32 %v357, 15
        %v390 = vand.u32 %v358, 15
        %v391 = vand.u32 %v359, 15
        %v392 = vand.u32 %v360, 15
        %v393 = vand.u32 %v361, 15
        %v394 = vand.u32 %v362, 15
        %v395 = vand.u32 %v363, 15
        %v396 = vand.u32 %v364, 15
        %vm397 = vcmp.ge.s32.totalorder %v365, 1
        %vm398 = vcmp.ge.s32.totalorder %v366, 1
        %vm399 = vcmp.ge.s32.totalorder %v367, 1
        %vm400 = vcmp.ge.s32.totalorder %v368, 1
        %vm401 = vcmp.ge.s32.totalorder %v369, 1
        %vm402 = vcmp.ge.s32.totalorder %v370, 1
        %vm403 = vcmp.ge.s32.totalorder %v371, 1
        %vm404 = vcmp.ge.s32.totalorder %v372, 1
        %vm405 = vcmp.ge.s32.totalorder %v373, 1
        %vm406 = vcmp.ge.s32.totalorder %v374, 1
        %vm407 = vcmp.ge.s32.totalorder %v375, 1
        %vm408 = vcmp.ge.s32.totalorder %v376, 1
        %vm409 = vcmp.ge.s32.totalorder %v377, 1
        %vm410 = vcmp.ge.s32.totalorder %v378, 1
        %vm411 = vcmp.ge.s32.totalorder %v379, 1
        %vm412 = vcmp.ge.s32.totalorder %v380, 1
        %vm413 = vcmp.ge.s32.totalorder %v381, 1
        %vm414 = vcmp.ge.s32.totalorder %v382, 1
        %vm415 = vcmp.ge.s32.totalorder %v383, 1
        %vm416 = vcmp.ge.s32.totalorder %v384, 1
        %vm417 = vcmp.ge.s32.totalorder %v385, 1
        %vm418 = vcmp.ge.s32.totalorder %v386, 1
        %vm419 = vcmp.ge.s32.totalorder %v387, 1
        %vm420 = vcmp.ge.s32.totalorder %v388, 1
        %vm421 = vcmp.ge.s32.totalorder %v389, 1
        %vm422 = vcmp.ge.s32.totalorder %v390, 1
        %vm423 = vcmp.ge.s32.totalorder %v391, 1
        %vm424 = vcmp.ge.s32.totalorder %v392, 1
        %vm425 = vcmp.ge.s32.totalorder %v393, 1
        %vm426 = vcmp.ge.s32.totalorder %v394, 1
        %vm427 = vcmp.ge.s32.totalorder %v395, 1
        %vm428 = vcmp.ge.s32.totalorder %v396, 1
        %vm429 = vcmp.le.s32.totalorder %v365, 14
        %vm430 = vcmp.le.s32.totalorder %v366, 14
        %vm431 = vcmp.le.s32.totalorder %v367, 14
        %vm432 = vcmp.le.s32.totalorder %v368, 14
        %vm433 = vcmp.le.s32.totalorder %v369, 14
        %vm434 = vcmp.le.s32.totalorder %v370, 14
        %vm435 = vcmp.le.s32.totalorder %v371, 14
        %vm436 = vcmp.le.s32.totalorder %v372, 14
        %vm437 = vcmp.le.s32.totalorder %v373, 14
        %vm438 = vcmp.le.s32.totalorder %v374, 14
        %vm439 = vcmp.le.s32.totalorder %v375, 14
        %vm440 = vcmp.le.s32.totalorder %v376, 14
        %vm441 = vcmp.le.s32.totalorder %v377, 14
        %vm442 = vcmp.le.s32.totalorder %v378, 14
        %vm443 = vcmp.le.s32.totalorder %v379, 14
        %vm444 = vcmp.le.s32.totalorder %v380, 14
        %vm445 = vcmp.le.s32.totalorder %v381, 14
        %vm446 = vcmp.le.s32.totalorder %v382, 14
        %vm447 = vcmp.le.s32.totalorder %v383, 14
        %vm448 = vcmp.le.s32.totalorder %v384, 14
        %vm449 = vcmp.le.s32.totalorder %v385, 14
        %vm450 = vcmp.le.s32.totalorder %v386, 14
        %vm451 = vcmp.le.s32.totalorder %v387, 14
        %vm452 = vcmp.le.s32.totalorder %v388, 14
        %vm453 = vcmp.le.s32.totalorder %v389, 14
        %vm454 = vcmp.le.s32.totalorder %v390, 14
        %vm455 = vcmp.le.s32.totalorder %v391, 14
        %vm456 = vcmp.le.s32.totalorder %v392, 14
        %vm457 = vcmp.le.s32.totalorder %v393, 14
        %vm458 = vcmp.le.s32.totalorder %v394, 14
        %vm459 = vcmp.le.s32.totalorder %v395, 14
        %vm460 = vcmp.le.s32.totalorder %v396, 14
        %vm461 = vcmp.ge.s32.totalorder %v333, 16
        %vm462 = vcmp.ge.s32.totalorder %v334, 16
        %vm463 = vcmp.ge.s32.totalorder %v335, 16
        %vm464 = vcmp.ge.s32.totalorder %v336, 16
        %vm465 = vcmp.ge.s32.totalorder %v337, 16
        %vm466 = vcmp.ge.s32.totalorder %v338, 16
        %vm467 = vcmp.ge.s32.totalorder %v339, 16
        %vm468 = vcmp.ge.s32.totalorder %v340, 16
        %vm469 = vcmp.ge.s32.totalorder %v341, 16
        %vm470 = vcmp.ge.s32.totalorder %v342, 16
        %vm471 = vcmp.ge.s32.totalorder %v343, 16
        %vm472 = vcmp.ge.s32.totalorder %v344, 16
        %vm473 = vcmp.ge.s32.totalorder %v345, 16
        %vm474 = vcmp.ge.s32.totalorder %v346, 16
        %vm475 = vcmp.ge.s32.totalorder %v347, 16
        %vm476 = vcmp.ge.s32.totalorder %v348, 16
        %vm477 = vcmp.ge.s32.totalorder %v349, 16
        %vm478 = vcmp.ge.s32.totalorder %v350, 16
        %vm479 = vcmp.ge.s32.totalorder %v351, 16
        %vm480 = vcmp.ge.s32.totalorder %v352, 16
        %vm481 = vcmp.ge.s32.totalorder %v353, 16
        %vm482 = vcmp.ge.s32.totalorder %v354, 16
        %vm483 = vcmp.ge.s32.totalorder %v355, 16
        %vm484 = vcmp.ge.s32.totalorder %v356, 16
        %vm485 = vcmp.ge.s32.totalorder %v357, 16
        %vm486 = vcmp.ge.s32.totalorder %v358, 16
        %vm487 = vcmp.ge.s32.totalorder %v359, 16
        %vm488 = vcmp.ge.s32.totalorder %v360, 16
        %vm489 = vcmp.ge.s32.totalorder %v361, 16
        %vm490 = vcmp.ge.s32.totalorder %v362, 16
        %vm491 = vcmp.ge.s32.totalorder %v363, 16
        %vm492 = vcmp.ge.s32.totalorder %v364, 16
        %vm493 = vcmp.lt.s32.totalorder %v333, 240
        %vm494 = vcmp.lt.s32.totalorder %v334, 240
        %vm495 = vcmp.lt.s32.totalorder %v335, 240
        %vm496 = vcmp.lt.s32.totalorder %v336, 240
        %vm497 = vcmp.lt.s32.totalorder %v337, 240
        %vm498 = vcmp.lt.s32.totalorder %v338, 240
        %vm499 = vcmp.lt.s32.totalorder %v339, 240
        %vm500 = vcmp.lt.s32.totalorder %v340, 240
        %vm501 = vcmp.lt.s32.totalorder %v341, 240
        %vm502 = vcmp.lt.s32.totalorder %v342, 240
        %vm503 = vcmp.lt.s32.totalorder %v343, 240
        %vm504 = vcmp.lt.s32.totalorder %v344, 240
        %vm505 = vcmp.lt.s32.totalorder %v345, 240
        %vm506 = vcmp.lt.s32.totalorder %v346, 240
        %vm507 = vcmp.lt.s32.totalorder %v347, 240
        %vm508 = vcmp.lt.s32.totalorder %v348, 240
        %vm509 = vcmp.lt.s32.totalorder %v349, 240
        %vm510 = vcmp.lt.s32.totalorder %v350, 240
        %vm511 = vcmp.lt.s32.totalorder %v351, 240
        %vm512 = vcmp.lt.s32.totalorder %v352, 240
        %vm513 = vcmp.lt.s32.totalorder %v353, 240
        %vm514 = vcmp.lt.s32.totalorder %v354, 240
        %vm515 = vcmp.lt.s32.totalorder %v355, 240
        %vm516 = vcmp.lt.s32.totalorder %v356, 240
        %vm517 = vcmp.lt.s32.totalorder %v357, 240
        %vm518 = vcmp.lt.s32.totalorder %v358, 240
        %vm519 = vcmp.lt.s32.totalorder %v359, 240
        %vm520 = vcmp.lt.s32.totalorder %v360, 240
        %vm521 = vcmp.lt.s32.totalorder %v361, 240
        %vm522 = vcmp.lt.s32.totalorder %v362, 240
        %vm523 = vcmp.lt.s32.totalorder %v363, 240
        %vm524 = vcmp.lt.s32.totalorder %v364, 240
        %v525 = vld [vmem:[%s290] sm:$0xff]
        %v526 = vld [vmem:[%s290 + $0x8] sm:$0xff]
        %v527 = vld [vmem:[%s290 + $0x10] sm:$0xff]
        %v528 = vld [vmem:[%s290 + $0x18] sm:$0xff]
        %v529 = vld [vmem:[%s290 + $0x20] sm:$0xff]
        %v530 = vld [vmem:[%s290 + $0x28] sm:$0xff]
        %v531 = vld [vmem:[%s290 + $0x30] sm:$0xff]
        %v532 = vld [vmem:[%s290 + $0x38] sm:$0xff]
        %v533 = vld [vmem:[%s290 + $0x40] sm:$0xff]
        %v534 = vld [vmem:[%s290 + $0x48] sm:$0xff]
        %v535 = vld [vmem:[%s290 + $0x50] sm:$0xff]
        %v536 = vld [vmem:[%s290 + $0x58] sm:$0xff]
        %v537 = vld [vmem:[%s290 + $0x60] sm:$0xff]
        %v538 = vld [vmem:[%s290 + $0x68] sm:$0xff]
        %v539 = vld [vmem:[%s290 + $0x70] sm:$0xff]
        %v540 = vld [vmem:[%s290 + $0x78] sm:$0xff]
        %v541 = vld [vmem:[%s290 + $0x80] sm:$0xff]
        %v542 = vld [vmem:[%s290 + $0x88] sm:$0xff]
        %v543 = vld [vmem:[%s290 + $0x90] sm:$0xff]
        %v544 = vld [vmem:[%s290 + $0x98] sm:$0xff]
        %v545 = vld [vmem:[%s290 + $0xa0] sm:$0xff]
        %v546 = vld [vmem:[%s290 + $0xa8] sm:$0xff]
        %v547 = vld [vmem:[%s290 + $0xb0] sm:$0xff]
        %v548 = vld [vmem:[%s290 + $0xb8] sm:$0xff]
        %v549 = vld [vmem:[%s290 + $0xc0] sm:$0xff]
        %v550 = vld [vmem:[%s290 + $0xc8] sm:$0xff]
        %v551 = vld [vmem:[%s290 + $0xd0] sm:$0xff]
        %v552 = vld [vmem:[%s290 + $0xd8] sm:$0xff]
        %v553 = vld [vmem:[%s290 + $0xe0] sm:$0xff]
        %v554 = vld [vmem:[%s290 + $0xe8] sm:$0xff]
        %v555 = vld [vmem:[%s290 + $0xf0] sm:$0xff]
        %v556 = vld [vmem:[%s290 + $0xf8] sm:$0xff]
        %v557 = vrot.slane %v525, 7
        %v558 = vrot.slane %v526, 7
        %v559 = vrot.slane %v527, 7
        %v560 = vrot.slane %v528, 7
        %v561 = vrot.slane %v529, 7
        %v562 = vrot.slane %v530, 7
        %v563 = vrot.slane %v531, 7
        %v564 = vrot.slane %v532, 7
        %v565 = vrot.slane %v533, 7
        %v566 = vrot.slane %v534, 7
        %v567 = vrot.slane %v535, 7
        %v568 = vrot.slane %v536, 7
        %v569 = vrot.slane %v537, 7
        %v570 = vrot.slane %v538, 7
        %v571 = vrot.slane %v539, 7
        %v572 = vrot.slane %v540, 7
        %v573 = vrot.slane %v541, 7
        %v574 = vrot.slane %v542, 7
        %v575 = vrot.slane %v543, 7
        %v576 = vrot.slane %v544, 7
        %v577 = vrot.slane %v545, 7
        %v578 = vrot.slane %v546, 7
        %v579 = vrot.slane %v547, 7
        %v580 = vrot.slane %v548, 7
        %v581 = vrot.slane %v549, 7
        %v582 = vrot.slane %v550, 7
        %v583 = vrot.slane %v551, 7
        %v584 = vrot.slane %v552, 7
        %v585 = vrot.slane %v553, 7
        %v586 = vrot.slane %v554, 7
        %v587 = vrot.slane %v555, 7
        %v588 = vrot.slane %v556, 7
        %vm589 = vcmp.lt.s32.totalorder %v333, 1
        %v590 = vsel %vm589, %v587, %v588
        %v591 = vsel %vm589, %v586, %v587
        %v592 = vsel %vm589, %v585, %v586
        %v593 = vsel %vm589, %v584, %v585
        %v594 = vsel %vm589, %v583, %v584
        %v595 = vsel %vm589, %v582, %v583
        %v596 = vsel %vm589, %v581, %v582
        %v597 = vsel %vm589, %v580, %v581
        %v598 = vsel %vm589, %v579, %v580
        %v599 = vsel %vm589, %v578, %v579
        %v600 = vsel %vm589, %v577, %v578
        %v601 = vsel %vm589, %v576, %v577
        %v602 = vsel %vm589, %v575, %v576
        %v603 = vsel %vm589, %v574, %v575
        %v604 = vsel %vm589, %v573, %v574
        %v605 = vsel %vm589, %v572, %v573
        %v606 = vsel %vm589, %v571, %v572
        %v607 = vsel %vm589, %v570, %v571
        %v608 = vsel %vm589, %v569, %v570
        %v609 = vsel %vm589, %v568, %v569
        %v610 = vsel %vm589, %v567, %v568
        %v611 = vsel %vm589, %v566, %v567
        %v612 = vsel %vm589, %v565, %v566
        %v613 = vsel %vm589, %v564, %v565
        %v614 = vsel %vm589, %v563, %v564
        %v615 = vsel %vm589, %v562, %v563
        %v616 = vsel %vm589, %v561, %v562
        %v617 = vsel %vm589, %v560, %v561
        %v618 = vsel %vm589, %v559, %v560
        %v619 = vsel %vm589, %v558, %v559
        %v620 = vsel %vm589, %v557, %v558
        %v621 = vsel %vm589, %v588, %v557
        %v622 = vsel %vm397, 1, 0
        %v623 = vsel %vm398, 1, 0
        %v624 = vsel %vm399, 1, 0
        %v625 = vsel %vm400, 1, 0
        %v626 = vsel %vm401, 1, 0
        %v627 = vsel %vm402, 1, 0
        %v628 = vsel %vm403, 1, 0
        %v629 = vsel %vm404, 1, 0
        %v630 = vsel %vm405, 1, 0
        %v631 = vsel %vm406, 1, 0
        %v632 = vsel %vm407, 1, 0
        %v633 = vsel %vm408, 1, 0
        %v634 = vsel %vm409, 1, 0
        %v635 = vsel %vm410, 1, 0
        %v636 = vsel %vm411, 1, 0
        %v637 = vsel %vm412, 1, 0
        %v638 = vsel %vm413, 1, 0
        %v639 = vsel %vm414, 1, 0
        %v640 = vsel %vm415, 1, 0
        %v641 = vsel %vm416, 1, 0
        %v642 = vsel %vm417, 1, 0
        %v643 = vsel %vm418, 1, 0
        %v644 = vsel %vm419, 1, 0
        %v645 = vsel %vm420, 1, 0
        %v646 = vsel %vm421, 1, 0
        %v647 = vsel %vm422, 1, 0
        %v648 = vsel %vm423, 1, 0
        %v649 = vsel %vm424, 1, 0
        %v650 = vsel %vm425, 1, 0
        %v651 = vsel %vm426, 1, 0
        %v652 = vsel %vm427, 1, 0
        %v653 = vsel %vm428, 1, 0
        %vm654 = vcmp.eq.s32.totalorder %v622, 1
        %vm655 = vcmp.eq.s32.totalorder %v623, 1
        %vm656 = vcmp.eq.s32.totalorder %v624, 1
        %vm657 = vcmp.eq.s32.totalorder %v625, 1
        %vm658 = vcmp.eq.s32.totalorder %v626, 1
        %vm659 = vcmp.eq.s32.totalorder %v627, 1
        %vm660 = vcmp.eq.s32.totalorder %v628, 1
        %vm661 = vcmp.eq.s32.totalorder %v629, 1
        %vm662 = vcmp.eq.s32.totalorder %v630, 1
        %vm663 = vcmp.eq.s32.totalorder %v631, 1
        %vm664 = vcmp.eq.s32.totalorder %v632, 1
        %vm665 = vcmp.eq.s32.totalorder %v633, 1
        %vm666 = vcmp.eq.s32.totalorder %v634, 1
        %vm667 = vcmp.eq.s32.totalorder %v635, 1
        %vm668 = vcmp.eq.s32.totalorder %v636, 1
        %vm669 = vcmp.eq.s32.totalorder %v637, 1
        %vm670 = vcmp.eq.s32.totalorder %v638, 1
        %vm671 = vcmp.eq.s32.totalorder %v639, 1
        %vm672 = vcmp.eq.s32.totalorder %v640, 1
        %vm673 = vcmp.eq.s32.totalorder %v641, 1
        %vm674 = vcmp.eq.s32.totalorder %v642, 1
        %vm675 = vcmp.eq.s32.totalorder %v643, 1
        %vm676 = vcmp.eq.s32.totalorder %v644, 1
        %vm677 = vcmp.eq.s32.totalorder %v645, 1
        %vm678 = vcmp.eq.s32.totalorder %v646, 1
        %vm679 = vcmp.eq.s32.totalorder %v647, 1
        %vm680 = vcmp.eq.s32.totalorder %v648, 1
        %vm681 = vcmp.eq.s32.totalorder %v649, 1
        %vm682 = vcmp.eq.s32.totalorder %v650, 1
        %vm683 = vcmp.eq.s32.totalorder %v651, 1
        %vm684 = vcmp.eq.s32.totalorder %v652, 1
        %vm685 = vcmp.eq.s32.totalorder %v653, 1
        %v686 = vsel %vm654, %v621, 0.0
        %v687 = vsel %vm655, %v620, 0.0
        %v688 = vsel %vm656, %v619, 0.0
        %v689 = vsel %vm657, %v618, 0.0
        %v690 = vsel %vm658, %v617, 0.0
        %v691 = vsel %vm659, %v616, 0.0
        %v692 = vsel %vm660, %v615, 0.0
        %v693 = vsel %vm661, %v614, 0.0
        %v694 = vsel %vm662, %v613, 0.0
        %v695 = vsel %vm663, %v612, 0.0
        %v696 = vsel %vm664, %v611, 0.0
        %v697 = vsel %vm665, %v610, 0.0
        %v698 = vsel %vm666, %v609, 0.0
        %v699 = vsel %vm667, %v608, 0.0
        %v700 = vsel %vm668, %v607, 0.0
        %v701 = vsel %vm669, %v606, 0.0
        %v702 = vsel %vm670, %v605, 0.0
        %v703 = vsel %vm671, %v604, 0.0
        %v704 = vsel %vm672, %v603, 0.0
        %v705 = vsel %vm673, %v602, 0.0
        %v706 = vsel %vm674, %v601, 0.0
        %v707 = vsel %vm675, %v600, 0.0
        %v708 = vsel %vm676, %v599, 0.0
        %v709 = vsel %vm677, %v598, 0.0
        %v710 = vsel %vm678, %v597, 0.0
        %v711 = vsel %vm679, %v596, 0.0
        %v712 = vsel %vm680, %v595, 0.0
        %v713 = vsel %vm681, %v594, 0.0
        %v714 = vsel %vm682, %v593, 0.0
        %v715 = vsel %vm683, %v592, 0.0
        %v716 = vsel %vm684, %v591, 0.0
        %v717 = vsel %vm685, %v590, 0.0
        %v718 = vrot.slane %v525, 1
        %v719 = vrot.slane %v526, 1
        %v720 = vrot.slane %v527, 1
        %v721 = vrot.slane %v528, 1
        %v722 = vrot.slane %v529, 1
        %v723 = vrot.slane %v530, 1
        %v724 = vrot.slane %v531, 1
        %v725 = vrot.slane %v532, 1
        %v726 = vrot.slane %v533, 1
        %v727 = vrot.slane %v534, 1
        %v728 = vrot.slane %v535, 1
        %v729 = vrot.slane %v536, 1
        %v730 = vrot.slane %v537, 1
        %v731 = vrot.slane %v538, 1
        %v732 = vrot.slane %v539, 1
        %v733 = vrot.slane %v540, 1
        %v734 = vrot.slane %v541, 1
        %v735 = vrot.slane %v542, 1
        %v736 = vrot.slane %v543, 1
        %v737 = vrot.slane %v544, 1
        %v738 = vrot.slane %v545, 1
        %v739 = vrot.slane %v546, 1
        %v740 = vrot.slane %v547, 1
        %v741 = vrot.slane %v548, 1
        %v742 = vrot.slane %v549, 1
        %v743 = vrot.slane %v550, 1
        %v744 = vrot.slane %v551, 1
        %v745 = vrot.slane %v552, 1
        %v746 = vrot.slane %v553, 1
        %v747 = vrot.slane %v554, 1
        %v748 = vrot.slane %v555, 1
        %v749 = vrot.slane %v556, 1
        %vm750 = vcmp.lt.s32.totalorder %v333, 7
        %v751 = vsel %vm750, %v748, %v749
        %v752 = vsel %vm750, %v747, %v748
        %v753 = vsel %vm750, %v746, %v747
        %v754 = vsel %vm750, %v745, %v746
        %v755 = vsel %vm750, %v744, %v745
        %v756 = vsel %vm750, %v743, %v744
        %v757 = vsel %vm750, %v742, %v743
        %v758 = vsel %vm750, %v741, %v742
        %v759 = vsel %vm750, %v740, %v741
        %v760 = vsel %vm750, %v739, %v740
        %v761 = vsel %vm750, %v738, %v739
        %v762 = vsel %vm750, %v737, %v738
        %v763 = vsel %vm750, %v736, %v737
        %v764 = vsel %vm750, %v735, %v736
        %v765 = vsel %vm750, %v734, %v735
        %v766 = vsel %vm750, %v733, %v734
        %v767 = vsel %vm750, %v732, %v733
        %v768 = vsel %vm750, %v731, %v732
        %v769 = vsel %vm750, %v730, %v731
        %v770 = vsel %vm750, %v729, %v730
        %v771 = vsel %vm750, %v728, %v729
        %v772 = vsel %vm750, %v727, %v728
        %v773 = vsel %vm750, %v726, %v727
        %v774 = vsel %vm750, %v725, %v726
        %v775 = vsel %vm750, %v724, %v725
        %v776 = vsel %vm750, %v723, %v724
        %v777 = vsel %vm750, %v722, %v723
        %v778 = vsel %vm750, %v721, %v722
        %v779 = vsel %vm750, %v720, %v721
        %v780 = vsel %vm750, %v719, %v720
        %v781 = vsel %vm750, %v718, %v719
        %v782 = vsel %vm750, %v749, %v718
        %v783 = vsel %vm429, 1, 0
        %v784 = vsel %vm430, 1, 0
        %v785 = vsel %vm431, 1, 0
        %v786 = vsel %vm432, 1, 0
        %v787 = vsel %vm433, 1, 0
        %v788 = vsel %vm434, 1, 0
        %v789 = vsel %vm435, 1, 0
        %v790 = vsel %vm436, 1, 0
        %v791 = vsel %vm437, 1, 0
        %v792 = vsel %vm438, 1, 0
        %v793 = vsel %vm439, 1, 0
        %v794 = vsel %vm440, 1, 0
        %v795 = vsel %vm441, 1, 0
        %v796 = vsel %vm442, 1, 0
        %v797 = vsel %vm443, 1, 0
        %v798 = vsel %vm444, 1, 0
        %v799 = vsel %vm445, 1, 0
        %v800 = vsel %vm446, 1, 0
        %v801 = vsel %vm447, 1, 0
        %v802 = vsel %vm448, 1, 0
        %v803 = vsel %vm449, 1, 0
        %v804 = vsel %vm450, 1, 0
        %v805 = vsel %vm451, 1, 0
        %v806 = vsel %vm452, 1, 0
        %v807 = vsel %vm453, 1, 0
        %v808 = vsel %vm454, 1, 0
        %v809 = vsel %vm455, 1, 0
        %v810 = vsel %vm456, 1, 0
        %v811 = vsel %vm457, 1, 0
        %v812 = vsel %vm458, 1, 0
        %v813 = vsel %vm459, 1, 0
        %v814 = vsel %vm460, 1, 0
        %vm815 = vcmp.eq.s32.totalorder %v783, 1
        %vm816 = vcmp.eq.s32.totalorder %v784, 1
        %vm817 = vcmp.eq.s32.totalorder %v785, 1
        %vm818 = vcmp.eq.s32.totalorder %v786, 1
        %vm819 = vcmp.eq.s32.totalorder %v787, 1
        %vm820 = vcmp.eq.s32.totalorder %v788, 1
        %vm821 = vcmp.eq.s32.totalorder %v789, 1
        %vm822 = vcmp.eq.s32.totalorder %v790, 1
        %vm823 = vcmp.eq.s32.totalorder %v791, 1
        %vm824 = vcmp.eq.s32.totalorder %v792, 1
        %vm825 = vcmp.eq.s32.totalorder %v793, 1
        %vm826 = vcmp.eq.s32.totalorder %v794, 1
        %vm827 = vcmp.eq.s32.totalorder %v795, 1
        %vm828 = vcmp.eq.s32.totalorder %v796, 1
        %vm829 = vcmp.eq.s32.totalorder %v797, 1
        %vm830 = vcmp.eq.s32.totalorder %v798, 1
        %vm831 = vcmp.eq.s32.totalorder %v799, 1
        %vm832 = vcmp.eq.s32.totalorder %v800, 1
        %vm833 = vcmp.eq.s32.totalorder %v801, 1
        %vm834 = vcmp.eq.s32.totalorder %v802, 1
        %vm835 = vcmp.eq.s32.totalorder %v803, 1
        %vm836 = vcmp.eq.s32.totalorder %v804, 1
        %vm837 = vcmp.eq.s32.totalorder %v805, 1
        %vm838 = vcmp.eq.s32.totalorder %v806, 1
        %vm839 = vcmp.eq.s32.totalorder %v807, 1
        %vm840 = vcmp.eq.s32.totalorder %v808, 1
        %vm841 = vcmp.eq.s32.totalorder %v809, 1
        %vm842 = vcmp.eq.s32.totalorder %v810, 1
        %vm843 = vcmp.eq.s32.totalorder %v811, 1
        %vm844 = vcmp.eq.s32.totalorder %v812, 1
        %vm845 = vcmp.eq.s32.totalorder %v813, 1
        %vm846 = vcmp.eq.s32.totalorder %v814, 1
        %v847 = vsel %vm815, %v781, 0.0
        %v848 = vsel %vm816, %v780, 0.0
        %v849 = vsel %vm817, %v779, 0.0
        %v850 = vsel %vm818, %v778, 0.0
        %v851 = vsel %vm819, %v777, 0.0
        %v852 = vsel %vm820, %v776, 0.0
        %v853 = vsel %vm821, %v775, 0.0
        %v854 = vsel %vm822, %v774, 0.0
        %v855 = vsel %vm823, %v773, 0.0
        %v856 = vsel %vm824, %v772, 0.0
        %v857 = vsel %vm825, %v771, 0.0
        %v858 = vsel %vm826, %v770, 0.0
        %v859 = vsel %vm827, %v769, 0.0
        %v860 = vsel %vm828, %v768, 0.0
        %v861 = vsel %vm829, %v767, 0.0
        %v862 = vsel %vm830, %v766, 0.0
        %v863 = vsel %vm831, %v765, 0.0
        %v864 = vsel %vm832, %v764, 0.0
        %v865 = vsel %vm833, %v763, 0.0
        %v866 = vsel %vm834, %v762, 0.0
        %v867 = vsel %vm835, %v761, 0.0
        %v868 = vsel %vm836, %v760, 0.0
        %v869 = vsel %vm837, %v759, 0.0
        %v870 = vsel %vm838, %v758, 0.0
        %v871 = vsel %vm839, %v757, 0.0
        %v872 = vsel %vm840, %v756, 0.0
        %v873 = vsel %vm841, %v755, 0.0
        %v874 = vsel %vm842, %v754, 0.0
        %v875 = vsel %vm843, %v753, 0.0
        %v876 = vsel %vm844, %v752, 0.0
        %v877 = vsel %vm845, %v751, 0.0
        %v878 = vsel %vm846, %v782, 0.0
        %v879 = vpack.c.bf16 %v687, %v686
        %v880 = vpack.c.bf16 %v526, %v525
        %v881 = vpack.c.bf16 %v848, %v847
        %v882 = vpack.c.bf16 %v689, %v688
        %v883 = vpack.c.bf16 %v528, %v527
        %v884 = vpack.c.bf16 %v850, %v849
        %v885 = vpack.c.bf16 %v691, %v690
        %v886 = vpack.c.bf16 %v530, %v529
        %v887 = vpack.c.bf16 %v852, %v851
        %v888 = vpack.c.bf16 %v693, %v692
        %v889 = vpack.c.bf16 %v532, %v531
        %v890 = vpack.c.bf16 %v854, %v853
        %v891 = vpack.c.bf16 %v695, %v694
        %v892 = vpack.c.bf16 %v534, %v533
        %v893 = vpack.c.bf16 %v856, %v855
        %v894 = vpack.c.bf16 %v697, %v696
        %v895 = vpack.c.bf16 %v536, %v535
        %v896 = vpack.c.bf16 %v858, %v857
        %v897 = vpack.c.bf16 %v699, %v698
        %v898 = vpack.c.bf16 %v538, %v537
        %v899 = vpack.c.bf16 %v860, %v859
        %v900 = vpack.c.bf16 %v701, %v700
        %v901 = vpack.c.bf16 %v540, %v539
        %v902 = vpack.c.bf16 %v862, %v861
        %v903 = vpack.c.bf16 %v703, %v702
        %v904 = vpack.c.bf16 %v542, %v541
        %v905 = vpack.c.bf16 %v864, %v863
        %v906 = vpack.c.bf16 %v705, %v704
        %v907 = vpack.c.bf16 %v544, %v543
        %v908 = vpack.c.bf16 %v866, %v865
        %v909 = vpack.c.bf16 %v707, %v706
        %v910 = vpack.c.bf16 %v546, %v545
        %v911 = vpack.c.bf16 %v868, %v867
        %v912 = vpack.c.bf16 %v709, %v708
        %v913 = vpack.c.bf16 %v548, %v547
        %v914 = vpack.c.bf16 %v870, %v869
        %v915 = vpack.c.bf16 %v711, %v710
        %v916 = vpack.c.bf16 %v550, %v549
        %v917 = vpack.c.bf16 %v872, %v871
        %v918 = vpack.c.bf16 %v713, %v712
        %v919 = vpack.c.bf16 %v552, %v551
        %v920 = vpack.c.bf16 %v874, %v873
        %v921 = vpack.c.bf16 %v715, %v714
        %v922 = vpack.c.bf16 %v554, %v553
        %v923 = vpack.c.bf16 %v876, %v875
        %v924 = vpack.c.bf16 %v717, %v716
        %v925 = vpack.c.bf16 %v556, %v555
        %v926 = vpack.c.bf16 %v878, %v877
        %v927 = vld [vmem:[#allocation5] sm:$0xff]
        %v928 = vld [vmem:[#allocation5 + $0x8] sm:$0xf]
        %v929 = vld [vmem:[#allocation5 + $0xc] sm:$0xff]
        %v930 = vld [vmem:[#allocation5 + $0x14] sm:$0xf]
        %v931 = vld [vmem:[#allocation5 + $0x18] sm:$0xff]
        %v932 = vld [vmem:[#allocation5 + $0x20] sm:$0xf]
        %v933 = vld [vmem:[#allocation5 + $0x24] sm:$0xff]
        %v934 = vld [vmem:[#allocation5 + $0x2c] sm:$0xf]
        %v935 = vld [vmem:[#allocation5 + $0x30] sm:$0xff]
        %v936 = vld [vmem:[#allocation5 + $0x38] sm:$0xf]
        %v937 = vld [vmem:[#allocation5 + $0x3c] sm:$0xff]
        %v938 = vld [vmem:[#allocation5 + $0x44] sm:$0xf]
        %v939 = vld [vmem:[#allocation5 + $0x48] sm:$0xff]
        %v940 = vld [vmem:[#allocation5 + $0x50] sm:$0xf]
        %v941 = vld [vmem:[#allocation5 + $0x54] sm:$0xff]
        %v942 = vld [vmem:[#allocation5 + $0x5c] sm:$0xf]
        %v943 = vld [vmem:[#allocation5 + $0x60] sm:$0xff]
        %v944 = vld [vmem:[#allocation5 + $0x68] sm:$0xf]
        %v945 = vld [vmem:[#allocation5 + $0x6c] sm:$0xff]
        %v946 = vld [vmem:[#allocation5 + $0x74] sm:$0xf]
        %v947 = vld [vmem:[#allocation5 + $0x78] sm:$0xff]
        %v948 = vld [vmem:[#allocation5 + $0x80] sm:$0xf]
        %v949 = vld [vmem:[#allocation5 + $0x84] sm:$0xff]
        %v950 = vld [vmem:[#allocation5 + $0x8c] sm:$0xf]
        %v951 = vld [vmem:[#allocation5 + $0x90] sm:$0xff]
        %v952 = vld [vmem:[#allocation5 + $0x98] sm:$0xf]
        %v953 = vld [vmem:[#allocation5 + $0x9c] sm:$0xff]
        %v954 = vld [vmem:[#allocation5 + $0xa4] sm:$0xf]
        %v955 = vld [vmem:[#allocation5 + $0xa8] sm:$0xff]
        %v956 = vld [vmem:[#allocation5 + $0xb0] sm:$0xf]
        %v957 = vld [vmem:[#allocation5 + $0xb4] sm:$0xff]
        %v958 = vld [vmem:[#allocation5 + $0xbc] sm:$0xf]
        %v959 = vld [vmem:[#allocation5 + $0xc0] sm:$0xff]
        %v960 = vld [vmem:[#allocation5 + $0xc8] sm:$0xf]
        %v961 = vld [vmem:[#allocation5 + $0xcc] sm:$0xff]
        %v962 = vld [vmem:[#allocation5 + $0xd4] sm:$0xf]
        %v963 = vld [vmem:[#allocation5 + $0xd8] sm:$0xff]
        %v964 = vld [vmem:[#allocation5 + $0xe0] sm:$0xf]
        %v965 = vld [vmem:[#allocation5 + $0xe4] sm:$0xff]
        %v966 = vld [vmem:[#allocation5 + $0xec] sm:$0xf]
        %v967 = vld [vmem:[#allocation5 + $0xf0] sm:$0xff]
        %v968 = vld [vmem:[#allocation5 + $0xf8] sm:$0xf]
        %v969 = vld [vmem:[#allocation5 + $0xfc] sm:$0xff]
        %v970 = vld [vmem:[#allocation5 + $0x104] sm:$0xf]
        %v971 = vld [vmem:[#allocation5 + $0x108] sm:$0xff]
        %v972 = vld [vmem:[#allocation5 + $0x110] sm:$0xf]
        %v973 = vld [vmem:[#allocation5 + $0x114] sm:$0xff]
        %v974 = vld [vmem:[#allocation5 + $0x11c] sm:$0xf]
        %v975 = vld [vmem:[#allocation5 + $0x120] sm:$0xff]
        %v976 = vld [vmem:[#allocation5 + $0x128] sm:$0xf]
        %v977 = vld [vmem:[#allocation5 + $0x12c] sm:$0xff]
        %v978 = vld [vmem:[#allocation5 + $0x134] sm:$0xf]
        %v979 = vld [vmem:[#allocation5 + $0x138] sm:$0xff]
        %v980 = vld [vmem:[#allocation5 + $0x140] sm:$0xf]
        %v981 = vld [vmem:[#allocation5 + $0x144] sm:$0xff]
        %v982 = vld [vmem:[#allocation5 + $0x14c] sm:$0xf]
        %v983 = vld [vmem:[#allocation5 + $0x150] sm:$0xff]
        %v984 = vld [vmem:[#allocation5 + $0x158] sm:$0xf]
        %v985 = vld [vmem:[#allocation5 + $0x15c] sm:$0xff]
        %v986 = vld [vmem:[#allocation5 + $0x164] sm:$0xf]
        %v987 = vld [vmem:[#allocation5 + $0x168] sm:$0xff]
        %v988 = vld [vmem:[#allocation5 + $0x170] sm:$0xf]
        %v989 = vld [vmem:[#allocation5 + $0x174] sm:$0xff]
        %v990 = vld [vmem:[#allocation5 + $0x17c] sm:$0xf]
        %v991 = vld [vmem:[#allocation5 + $0x180] sm:$0xff]
        %v992 = vld [vmem:[#allocation5 + $0x188] sm:$0xf]
        %v993 = vld [vmem:[#allocation5 + $0x18c] sm:$0xff]
        %v994 = vld [vmem:[#allocation5 + $0x194] sm:$0xf]
        %v995 = vld [vmem:[#allocation5 + $0x198] sm:$0xff]
        %v996 = vld [vmem:[#allocation5 + $0x1a0] sm:$0xf]
        %v997 = vld [vmem:[#allocation5 + $0x1a4] sm:$0xff]
        %v998 = vld [vmem:[#allocation5 + $0x1ac] sm:$0xf]
        %v999 = vld [vmem:[#allocation5 + $0x1b0] sm:$0xff]
        %v1000 = vld [vmem:[#allocation5 + $0x1b8] sm:$0xf]
        %v1001 = vld [vmem:[#allocation5 + $0x1bc] sm:$0xff]
        %v1002 = vld [vmem:[#allocation5 + $0x1c4] sm:$0xf]
        %v1003 = vld [vmem:[#allocation5 + $0x1c8] sm:$0xff]
        %v1004 = vld [vmem:[#allocation5 + $0x1d0] sm:$0xf]
        %v1005 = vld [vmem:[#allocation5 + $0x1d4] sm:$0xff]
        %v1006 = vld [vmem:[#allocation5 + $0x1dc] sm:$0xf]
        %v1007 = vld [vmem:[#allocation5 + $0x1e0] sm:$0xff]
        %v1008 = vld [vmem:[#allocation5 + $0x1e8] sm:$0xf]
        %v1009 = vld [vmem:[#allocation5 + $0x1ec] sm:$0xff]
        %v1010 = vld [vmem:[#allocation5 + $0x1f4] sm:$0xf]
        %v1011 = vld [vmem:[#allocation5 + $0x1f8] sm:$0xff]
        %v1012 = vld [vmem:[#allocation5 + $0x200] sm:$0xf]
        %v1013 = vld [vmem:[#allocation5 + $0x204] sm:$0xff]
        %v1014 = vld [vmem:[#allocation5 + $0x20c] sm:$0xf]
        %v1015 = vld [vmem:[#allocation5 + $0x210] sm:$0xff]
        %v1016 = vld [vmem:[#allocation5 + $0x218] sm:$0xf]
        %v1017 = vld [vmem:[#allocation5 + $0x21c] sm:$0xff]
        %v1018 = vld [vmem:[#allocation5 + $0x224] sm:$0xf]
        %v1019 = vld [vmem:[#allocation5 + $0x228] sm:$0xff]
        %v1020 = vld [vmem:[#allocation5 + $0x230] sm:$0xf]
        %v1021 = vld [vmem:[#allocation5 + $0x234] sm:$0xff]
        %v1022 = vld [vmem:[#allocation5 + $0x23c] sm:$0xf]
        %v1119 = vunpack.c.l.b16 %v927
        %v1120 = vunpack.c.h.b16 %v927
        %v1121 = vunpack.c.l.b16 %v928
        %v1122 = vunpack.c.l.b16 %v929
        %v1123 = vunpack.c.h.b16 %v929
        %v1124 = vunpack.c.l.b16 %v930
        %v1125 = vunpack.c.l.b16 %v931
        %v1126 = vunpack.c.h.b16 %v931
        %v1127 = vunpack.c.l.b16 %v932
        %v1128 = vunpack.c.l.b16 %v933
        %v1129 = vunpack.c.h.b16 %v933
        %v1130 = vunpack.c.l.b16 %v934
        %v1131 = vunpack.c.l.b16 %v935
        %v1132 = vunpack.c.h.b16 %v935
        %v1133 = vunpack.c.l.b16 %v936
        %v1134 = vunpack.c.l.b16 %v937
        %v1135 = vunpack.c.h.b16 %v937
        %v1136 = vunpack.c.l.b16 %v938
        %v1137 = vunpack.c.l.b16 %v939
        %v1138 = vunpack.c.h.b16 %v939
        %v1139 = vunpack.c.l.b16 %v940
        %v1140 = vunpack.c.l.b16 %v941
        %v1141 = vunpack.c.h.b16 %v941
        %v1142 = vunpack.c.l.b16 %v942
        %v1143 = vunpack.c.l.b16 %v943
        %v1144 = vunpack.c.h.b16 %v943
        %v1145 = vunpack.c.l.b16 %v944
        %v1146 = vunpack.c.l.b16 %v945
        %v1147 = vunpack.c.h.b16 %v945
        %v1148 = vunpack.c.l.b16 %v946
        %v1149 = vunpack.c.l.b16 %v947
        %v1150 = vunpack.c.h.b16 %v947
        %v1151 = vunpack.c.l.b16 %v948
        %v1152 = vunpack.c.l.b16 %v949
        %v1153 = vunpack.c.h.b16 %v949
        %v1154 = vunpack.c.l.b16 %v950
        %v1155 = vunpack.c.l.b16 %v951
        %v1156 = vunpack.c.h.b16 %v951
        %v1157 = vunpack.c.l.b16 %v952
        %v1158 = vunpack.c.l.b16 %v953
        %v1159 = vunpack.c.h.b16 %v953
        %v1160 = vunpack.c.l.b16 %v954
        %v1161 = vunpack.c.l.b16 %v955
        %v1162 = vunpack.c.h.b16 %v955
        %v1163 = vunpack.c.l.b16 %v956
        %v1164 = vunpack.c.l.b16 %v957
        %v1165 = vunpack.c.h.b16 %v957
        %v1166 = vunpack.c.l.b16 %v958
        %v1167 = vunpack.c.l.b16 %v959
        %v1168 = vunpack.c.h.b16 %v959
        %v1169 = vunpack.c.l.b16 %v960
        %v1170 = vunpack.c.l.b16 %v961
        %v1171 = vunpack.c.h.b16 %v961
        %v1172 = vunpack.c.l.b16 %v962
        %v1173 = vunpack.c.l.b16 %v963
        %v1174 = vunpack.c.h.b16 %v963
        %v1175 = vunpack.c.l.b16 %v964
        %v1176 = vunpack.c.l.b16 %v965
        %v1177 = vunpack.c.h.b16 %v965
        %v1178 = vunpack.c.l.b16 %v966
        %v1179 = vunpack.c.l.b16 %v967
        %v1180 = vunpack.c.h.b16 %v967
        %v1181 = vunpack.c.l.b16 %v968
        %v1182 = vunpack.c.l.b16 %v969
        %v1183 = vunpack.c.h.b16 %v969
        %v1184 = vunpack.c.l.b16 %v970
        %v1185 = vunpack.c.l.b16 %v971
        %v1186 = vunpack.c.h.b16 %v971
        %v1187 = vunpack.c.l.b16 %v972
        %v1188 = vunpack.c.l.b16 %v973
        %v1189 = vunpack.c.h.b16 %v973
        %v1190 = vunpack.c.l.b16 %v974
        %v1191 = vunpack.c.l.b16 %v975
        %v1192 = vunpack.c.h.b16 %v975
        %v1193 = vunpack.c.l.b16 %v976
        %v1194 = vunpack.c.l.b16 %v977
        %v1195 = vunpack.c.h.b16 %v977
        %v1196 = vunpack.c.l.b16 %v978
        %v1197 = vunpack.c.l.b16 %v979
        %v1198 = vunpack.c.h.b16 %v979
        %v1199 = vunpack.c.l.b16 %v980
        %v1200 = vunpack.c.l.b16 %v981
        %v1201 = vunpack.c.h.b16 %v981
        %v1202 = vunpack.c.l.b16 %v982
        %v1203 = vunpack.c.l.b16 %v983
        %v1204 = vunpack.c.h.b16 %v983
        %v1205 = vunpack.c.l.b16 %v984
        %v1206 = vunpack.c.l.b16 %v985
        %v1207 = vunpack.c.h.b16 %v985
        %v1208 = vunpack.c.l.b16 %v986
        %v1209 = vunpack.c.l.b16 %v987
        %v1210 = vunpack.c.h.b16 %v987
        %v1211 = vunpack.c.l.b16 %v988
        %v1212 = vunpack.c.l.b16 %v989
        %v1213 = vunpack.c.h.b16 %v989
        %v1214 = vunpack.c.l.b16 %v990
        %v1215 = vunpack.c.l.b16 %v991
        %v1216 = vunpack.c.h.b16 %v991
        %v1217 = vunpack.c.l.b16 %v992
        %v1218 = vunpack.c.l.b16 %v993
        %v1219 = vunpack.c.h.b16 %v993
        %v1220 = vunpack.c.l.b16 %v994
        %v1221 = vunpack.c.l.b16 %v995
        %v1222 = vunpack.c.h.b16 %v995
        %v1223 = vunpack.c.l.b16 %v996
        %v1224 = vunpack.c.l.b16 %v997
        %v1225 = vunpack.c.h.b16 %v997
        %v1226 = vunpack.c.l.b16 %v998
        %v1227 = vunpack.c.l.b16 %v999
        %v1228 = vunpack.c.h.b16 %v999
        %v1229 = vunpack.c.l.b16 %v1000
        %v1230 = vunpack.c.l.b16 %v1001
        %v1231 = vunpack.c.h.b16 %v1001
        %v1232 = vunpack.c.l.b16 %v1002
        %v1233 = vunpack.c.l.b16 %v1003
        %v1234 = vunpack.c.h.b16 %v1003
        %v1235 = vunpack.c.l.b16 %v1004
        %v1236 = vunpack.c.l.b16 %v1005
        %v1237 = vunpack.c.h.b16 %v1005
        %v1238 = vunpack.c.l.b16 %v1006
        %v1239 = vunpack.c.l.b16 %v1007
        %v1240 = vunpack.c.h.b16 %v1007
        %v1241 = vunpack.c.l.b16 %v1008
        %v1242 = vunpack.c.l.b16 %v1009
        %v1243 = vunpack.c.h.b16 %v1009
        %v1244 = vunpack.c.l.b16 %v1010
        %v1245 = vunpack.c.l.b16 %v1011
        %v1246 = vunpack.c.h.b16 %v1011
        %v1247 = vunpack.c.l.b16 %v1012
        %v1248 = vunpack.c.l.b16 %v1013
        %v1249 = vunpack.c.h.b16 %v1013
        %v1250 = vunpack.c.l.b16 %v1014
        %v1251 = vunpack.c.l.b16 %v1015
        %v1252 = vunpack.c.h.b16 %v1015
        %v1253 = vunpack.c.l.b16 %v1016
        %v1254 = vunpack.c.l.b16 %v1017
        %v1255 = vunpack.c.h.b16 %v1017
        %v1256 = vunpack.c.l.b16 %v1018
        %v1257 = vunpack.c.l.b16 %v1019
        %v1258 = vunpack.c.h.b16 %v1019
        %v1259 = vunpack.c.l.b16 %v1020
        %v1260 = vunpack.c.l.b16 %v1021
        %v1261 = vunpack.c.h.b16 %v1021
        %v1262 = vunpack.c.l.b16 %v1022
        %v1263 = vpack.c.b16 %v1122, %v1119
        %v1264 = vpack.c.b16 %v1123, %v1120
        %v1265 = vpack.c.b16 %v1124, %v1121
        %v1266 = vpack.c.b16 %v1128, %v1125
        %v1267 = vpack.c.b16 %v1129, %v1126
        %v1268 = vpack.c.b16 %v1130, %v1127
        %v1269 = vpack.c.b16 %v1134, %v1131
        %v1270 = vpack.c.b16 %v1135, %v1132
        %v1271 = vpack.c.b16 %v1136, %v1133
        %v1272 = vpack.c.b16 %v1140, %v1137
        %v1273 = vpack.c.b16 %v1141, %v1138
        %v1274 = vpack.c.b16 %v1142, %v1139
        %v1275 = vpack.c.b16 %v1146, %v1143
        %v1276 = vpack.c.b16 %v1147, %v1144
        %v1277 = vpack.c.b16 %v1148, %v1145
        %v1278 = vpack.c.b16 %v1152, %v1149
        %v1279 = vpack.c.b16 %v1153, %v1150
        %v1280 = vpack.c.b16 %v1154, %v1151
        %v1281 = vpack.c.b16 %v1158, %v1155
        %v1282 = vpack.c.b16 %v1159, %v1156
        %v1283 = vpack.c.b16 %v1160, %v1157
        %v1284 = vpack.c.b16 %v1164, %v1161
        %v1285 = vpack.c.b16 %v1165, %v1162
        %v1286 = vpack.c.b16 %v1166, %v1163
        %v1287 = vpack.c.b16 %v1170, %v1167
        %v1288 = vpack.c.b16 %v1171, %v1168
        %v1289 = vpack.c.b16 %v1172, %v1169
        %v1290 = vpack.c.b16 %v1176, %v1173
        %v1291 = vpack.c.b16 %v1177, %v1174
        %v1292 = vpack.c.b16 %v1178, %v1175
        %v1293 = vpack.c.b16 %v1182, %v1179
        %v1294 = vpack.c.b16 %v1183, %v1180
        %v1295 = vpack.c.b16 %v1184, %v1181
        %v1296 = vpack.c.b16 %v1188, %v1185
        %v1297 = vpack.c.b16 %v1189, %v1186
        %v1298 = vpack.c.b16 %v1190, %v1187
        %v1299 = vpack.c.b16 %v1194, %v1191
        %v1300 = vpack.c.b16 %v1195, %v1192
        %v1301 = vpack.c.b16 %v1196, %v1193
        %v1302 = vpack.c.b16 %v1200, %v1197
        %v1303 = vpack.c.b16 %v1201, %v1198
        %v1304 = vpack.c.b16 %v1202, %v1199
        %v1305 = vpack.c.b16 %v1206, %v1203
        %v1306 = vpack.c.b16 %v1207, %v1204
        %v1307 = vpack.c.b16 %v1208, %v1205
        %v1308 = vpack.c.b16 %v1212, %v1209
        %v1309 = vpack.c.b16 %v1213, %v1210
        %v1310 = vpack.c.b16 %v1214, %v1211
        %v1311 = vpack.c.b16 %v1218, %v1215
        %v1312 = vpack.c.b16 %v1219, %v1216
        %v1313 = vpack.c.b16 %v1220, %v1217
        %v1314 = vpack.c.b16 %v1224, %v1221
        %v1315 = vpack.c.b16 %v1225, %v1222
        %v1316 = vpack.c.b16 %v1226, %v1223
        %v1317 = vpack.c.b16 %v1230, %v1227
        %v1318 = vpack.c.b16 %v1231, %v1228
        %v1319 = vpack.c.b16 %v1232, %v1229
        %v1320 = vpack.c.b16 %v1236, %v1233
        %v1321 = vpack.c.b16 %v1237, %v1234
        %v1322 = vpack.c.b16 %v1238, %v1235
        %v1323 = vpack.c.b16 %v1242, %v1239
        %v1324 = vpack.c.b16 %v1243, %v1240
        %v1325 = vpack.c.b16 %v1244, %v1241
        %v1326 = vpack.c.b16 %v1248, %v1245
        %v1327 = vpack.c.b16 %v1249, %v1246
        %v1328 = vpack.c.b16 %v1250, %v1247
        %v1329 = vpack.c.b16 %v1254, %v1251
        %v1330 = vpack.c.b16 %v1255, %v1252
        %v1331 = vpack.c.b16 %v1256, %v1253
        %v1332 = vpack.c.b16 %v1260, %v1257
        %v1333 = vpack.c.b16 %v1261, %v1258
        %v1334 = vpack.c.b16 %v1262, %v1259
        %1407 = vmatpush.bf16.msra.mxu0 %v1284
        %1408 = vmatpush.bf16.msra.mxu0 %v1281
        %1409 = vmatpush.bf16.msra.mxu0 %v1278
        %1410 = vmatpush.bf16.msra.mxu0 %v1275
        %1411 = vmatpush.bf16.msra.mxu0 %v1272
        %1412 = vmatpush.bf16.msra.mxu0 %v1269
        %1413 = vmatpush.bf16.msra.mxu0 %v1266
        %1414 = vmatpush.bf16.msra.mxu0 %v1263
        %1415 = vmatmul.bf16.gmra.mxu0 %v879
        %v1416 = vpop.f32.mrf.mxu0
        %v1417 = vadd.f32 0.0, %v1416
        %v1418 = vpop.f32.mrf.mxu0
        %v1419 = vadd.f32 0.0, %v1418
        %1420 = vmatmul.bf16.gmra.mxu0 %v882
        %v1421 = vpop.f32.mrf.mxu0
        %v1422 = vadd.f32 0.0, %v1421
        %v1423 = vpop.f32.mrf.mxu0
        %v1424 = vadd.f32 0.0, %v1423
        %1425 = vmatmul.bf16.gmra.mxu0 %v885
        %v1426 = vpop.f32.mrf.mxu0
        %v1427 = vadd.f32 0.0, %v1426
        %v1428 = vpop.f32.mrf.mxu0
        %v1429 = vadd.f32 0.0, %v1428
        %1430 = vmatmul.bf16.gmra.mxu0 %v888
        %v1431 = vpop.f32.mrf.mxu0
        %v1432 = vadd.f32 0.0, %v1431
        %v1433 = vpop.f32.mrf.mxu0
        %v1434 = vadd.f32 0.0, %v1433
        %1435 = vmatmul.bf16.gmra.mxu0 %v891
        %v1436 = vpop.f32.mrf.mxu0
        %v1437 = vadd.f32 0.0, %v1436
        %v1438 = vpop.f32.mrf.mxu0
        %v1439 = vadd.f32 0.0, %v1438
        %1440 = vmatmul.bf16.gmra.mxu0 %v894
        %v1441 = vpop.f32.mrf.mxu0
        %v1442 = vadd.f32 0.0, %v1441
        %v1443 = vpop.f32.mrf.mxu0
        %v1444 = vadd.f32 0.0, %v1443
        %1445 = vmatmul.bf16.gmra.mxu0 %v897
        %v1446 = vpop.f32.mrf.mxu0
        %v1447 = vadd.f32 0.0, %v1446
        %v1448 = vpop.f32.mrf.mxu0
        %v1449 = vadd.f32 0.0, %v1448
        %1450 = vmatmul.bf16.gmra.mxu0 %v900
        %v1451 = vpop.f32.mrf.mxu0
        %v1452 = vadd.f32 0.0, %v1451
        %v1453 = vpop.f32.mrf.mxu0
        %v1454 = vadd.f32 0.0, %v1453
        %1455 = vmatmul.bf16.gmra.mxu0 %v903
        %v1456 = vpop.f32.mrf.mxu0
        %v1457 = vadd.f32 0.0, %v1456
        %v1458 = vpop.f32.mrf.mxu0
        %v1459 = vadd.f32 0.0, %v1458
        %1460 = vmatmul.bf16.gmra.mxu0 %v906
        %v1461 = vpop.f32.mrf.mxu0
        %v1462 = vadd.f32 0.0, %v1461
        %v1463 = vpop.f32.mrf.mxu0
        %v1464 = vadd.f32 0.0, %v1463
        %1465 = vmatmul.bf16.gmra.mxu0 %v909
        %v1466 = vpop.f32.mrf.mxu0
        %v1467 = vadd.f32 0.0, %v1466
        %v1468 = vpop.f32.mrf.mxu0
        %v1469 = vadd.f32 0.0, %v1468
        %1470 = vmatmul.bf16.gmra.mxu0 %v912
        %v1471 = vpop.f32.mrf.mxu0
        %v1472 = vadd.f32 0.0, %v1471
        %v1473 = vpop.f32.mrf.mxu0
        %v1474 = vadd.f32 0.0, %v1473
        %1475 = vmatmul.bf16.gmra.mxu0 %v915
        %v1476 = vpop.f32.mrf.mxu0
        %v1477 = vadd.f32 0.0, %v1476
        %v1478 = vpop.f32.mrf.mxu0
        %v1479 = vadd.f32 0.0, %v1478
        %1480 = vmatmul.bf16.gmra.mxu0 %v918
        %v1481 = vpop.f32.mrf.mxu0
        %v1482 = vadd.f32 0.0, %v1481
        %v1483 = vpop.f32.mrf.mxu0
        %v1484 = vadd.f32 0.0, %v1483
        %1485 = vmatmul.bf16.gmra.mxu0 %v921
        %v1486 = vpop.f32.mrf.mxu0
        %v1487 = vadd.f32 0.0, %v1486
        %v1488 = vpop.f32.mrf.mxu0
        %v1489 = vadd.f32 0.0, %v1488
        %1490 = vmatmul.bf16.gmra.mxu0 %v924
        %v1491 = vpop.f32.mrf.mxu0
        %v1492 = vadd.f32 0.0, %v1491
        %v1493 = vpop.f32.mrf.mxu0
        %v1494 = vadd.f32 0.0, %v1493
        %1495 = vdwg.mxu0
        %1496 = vmatpush.bf16.msra.mxu0 %v1308
        %1497 = vmatpush.bf16.msra.mxu0 %v1305
        %1498 = vmatpush.bf16.msra.mxu0 %v1302
        %1499 = vmatpush.bf16.msra.mxu0 %v1299
        %1500 = vmatpush.bf16.msra.mxu0 %v1296
        %1501 = vmatpush.bf16.msra.mxu0 %v1293
        %1502 = vmatpush.bf16.msra.mxu0 %v1290
        %1503 = vmatpush.bf16.msra.mxu0 %v1287
        %1504 = vmatmul.bf16.gmra.mxu0 %v880
        %v1505 = vpop.f32.mrf.mxu0
        %v1506 = vadd.f32 %v1417, %v1505
        %v1507 = vpop.f32.mrf.mxu0
        %v1508 = vadd.f32 %v1419, %v1507
        %1509 = vmatmul.bf16.gmra.mxu0 %v883
        %v1510 = vpop.f32.mrf.mxu0
        %v1511 = vadd.f32 %v1422, %v1510
        %v1512 = vpop.f32.mrf.mxu0
        %v1513 = vadd.f32 %v1424, %v1512
        %1514 = vmatmul.bf16.gmra.mxu0 %v886
        %v1515 = vpop.f32.mrf.mxu0
        %v1516 = vadd.f32 %v1427, %v1515
        %v1517 = vpop.f32.mrf.mxu0
        %v1518 = vadd.f32 %v1429, %v1517
        %1519 = vmatmul.bf16.gmra.mxu0 %v889
        %v1520 = vpop.f32.mrf.mxu0
        %v1521 = vadd.f32 %v1432, %v1520
        %v1522 = vpop.f32.mrf.mxu0
        %v1523 = vadd.f32 %v1434, %v1522
        %1524 = vmatmul.bf16.gmra.mxu0 %v892
        %v1525 = vpop.f32.mrf.mxu0
        %v1526 = vadd.f32 %v1437, %v1525
        %v1527 = vpop.f32.mrf.mxu0
        %v1528 = vadd.f32 %v1439, %v1527
        %1529 = vmatmul.bf16.gmra.mxu0 %v895
        %v1530 = vpop.f32.mrf.mxu0
        %v1531 = vadd.f32 %v1442, %v1530
        %v1532 = vpop.f32.mrf.mxu0
        %v1533 = vadd.f32 %v1444, %v1532
        %1534 = vmatmul.bf16.gmra.mxu0 %v898
        %v1535 = vpop.f32.mrf.mxu0
        %v1536 = vadd.f32 %v1447, %v1535
        %v1537 = vpop.f32.mrf.mxu0
        %v1538 = vadd.f32 %v1449, %v1537
        %1539 = vmatmul.bf16.gmra.mxu0 %v901
        %v1540 = vpop.f32.mrf.mxu0
        %v1541 = vadd.f32 %v1452, %v1540
        %v1542 = vpop.f32.mrf.mxu0
        %v1543 = vadd.f32 %v1454, %v1542
        %1544 = vmatmul.bf16.gmra.mxu0 %v904
        %v1545 = vpop.f32.mrf.mxu0
        %v1546 = vadd.f32 %v1457, %v1545
        %v1547 = vpop.f32.mrf.mxu0
        %v1548 = vadd.f32 %v1459, %v1547
        %1549 = vmatmul.bf16.gmra.mxu0 %v907
        %v1550 = vpop.f32.mrf.mxu0
        %v1551 = vadd.f32 %v1462, %v1550
        %v1552 = vpop.f32.mrf.mxu0
        %v1553 = vadd.f32 %v1464, %v1552
        %1554 = vmatmul.bf16.gmra.mxu0 %v910
        %v1555 = vpop.f32.mrf.mxu0
        %v1556 = vadd.f32 %v1467, %v1555
        %v1557 = vpop.f32.mrf.mxu0
        %v1558 = vadd.f32 %v1469, %v1557
        %1559 = vmatmul.bf16.gmra.mxu0 %v913
        %v1560 = vpop.f32.mrf.mxu0
        %v1561 = vadd.f32 %v1472, %v1560
        %v1562 = vpop.f32.mrf.mxu0
        %v1563 = vadd.f32 %v1474, %v1562
        %1564 = vmatmul.bf16.gmra.mxu0 %v916
        %v1565 = vpop.f32.mrf.mxu0
        %v1566 = vadd.f32 %v1477, %v1565
        %v1567 = vpop.f32.mrf.mxu0
        %v1568 = vadd.f32 %v1479, %v1567
        %1569 = vmatmul.bf16.gmra.mxu0 %v919
        %v1570 = vpop.f32.mrf.mxu0
        %v1571 = vadd.f32 %v1482, %v1570
        %v1572 = vpop.f32.mrf.mxu0
        %v1573 = vadd.f32 %v1484, %v1572
        %1574 = vmatmul.bf16.gmra.mxu0 %v922
        %v1575 = vpop.f32.mrf.mxu0
        %v1576 = vadd.f32 %v1487, %v1575
        %v1577 = vpop.f32.mrf.mxu0
        %v1578 = vadd.f32 %v1489, %v1577
        %1579 = vmatmul.bf16.gmra.mxu0 %v925
        %v1580 = vpop.f32.mrf.mxu0
        %v1581 = vadd.f32 %v1492, %v1580
        %v1582 = vpop.f32.mrf.mxu0
        %v1583 = vadd.f32 %v1494, %v1582
        %1584 = vdwg.mxu0
        %1585 = vmatpush.bf16.msra.mxu0 %v1332
        %1586 = vmatpush.bf16.msra.mxu0 %v1329
        %1587 = vmatpush.bf16.msra.mxu0 %v1326
        %1588 = vmatpush.bf16.msra.mxu0 %v1323
        %1589 = vmatpush.bf16.msra.mxu0 %v1320
        %1590 = vmatpush.bf16.msra.mxu0 %v1317
        %1591 = vmatpush.bf16.msra.mxu0 %v1314
        %1592 = vmatpush.bf16.msra.mxu0 %v1311
        %1593 = vmatmul.bf16.gmra.mxu0 %v881
        %v1594 = vpop.f32.mrf.mxu0
        %v1595 = vadd.f32 %v1506, %v1594
        %v1596 = vpop.f32.mrf.mxu0
        %v1597 = vadd.f32 %v1508, %v1596
        %1598 = vmatmul.bf16.gmra.mxu0 %v884
        %v1599 = vpop.f32.mrf.mxu0
        %v1600 = vadd.f32 %v1511, %v1599
        %v1601 = vpop.f32.mrf.mxu0
        %v1602 = vadd.f32 %v1513, %v1601
        %1603 = vmatmul.bf16.gmra.mxu0 %v887
        %v1604 = vpop.f32.mrf.mxu0
        %v1605 = vadd.f32 %v1516, %v1604
        %v1606 = vpop.f32.mrf.mxu0
        %v1607 = vadd.f32 %v1518, %v1606
        %1608 = vmatmul.bf16.gmra.mxu0 %v890
        %v1609 = vpop.f32.mrf.mxu0
        %v1610 = vadd.f32 %v1521, %v1609
        %v1611 = vpop.f32.mrf.mxu0
        %v1612 = vadd.f32 %v1523, %v1611
        %1613 = vmatmul.bf16.gmra.mxu0 %v893
        %v1614 = vpop.f32.mrf.mxu0
        %v1615 = vadd.f32 %v1526, %v1614
        %v1616 = vpop.f32.mrf.mxu0
        %v1617 = vadd.f32 %v1528, %v1616
        %1618 = vmatmul.bf16.gmra.mxu0 %v896
        %v1619 = vpop.f32.mrf.mxu0
        %v1620 = vadd.f32 %v1531, %v1619
        %v1621 = vpop.f32.mrf.mxu0
        %v1622 = vadd.f32 %v1533, %v1621
        %1623 = vmatmul.bf16.gmra.mxu0 %v899
        %v1624 = vpop.f32.mrf.mxu0
        %v1625 = vadd.f32 %v1536, %v1624
        %v1626 = vpop.f32.mrf.mxu0
        %v1627 = vadd.f32 %v1538, %v1626
        %1628 = vmatmul.bf16.gmra.mxu0 %v902
        %v1629 = vpop.f32.mrf.mxu0
        %v1630 = vadd.f32 %v1541, %v1629
        %v1631 = vpop.f32.mrf.mxu0
        %v1632 = vadd.f32 %v1543, %v1631
        %1633 = vmatmul.bf16.gmra.mxu0 %v905
        %v1634 = vpop.f32.mrf.mxu0
        %v1635 = vadd.f32 %v1546, %v1634
        %v1636 = vpop.f32.mrf.mxu0
        %v1637 = vadd.f32 %v1548, %v1636
        %1638 = vmatmul.bf16.gmra.mxu0 %v908
        %v1639 = vpop.f32.mrf.mxu0
        %v1640 = vadd.f32 %v1551, %v1639
        %v1641 = vpop.f32.mrf.mxu0
        %v1642 = vadd.f32 %v1553, %v1641
        %1643 = vmatmul.bf16.gmra.mxu0 %v911
        %v1644 = vpop.f32.mrf.mxu0
        %v1645 = vadd.f32 %v1556, %v1644
        %v1646 = vpop.f32.mrf.mxu0
        %v1647 = vadd.f32 %v1558, %v1646
        %1648 = vmatmul.bf16.gmra.mxu0 %v914
        %v1649 = vpop.f32.mrf.mxu0
        %v1650 = vadd.f32 %v1561, %v1649
        %v1651 = vpop.f32.mrf.mxu0
        %v1652 = vadd.f32 %v1563, %v1651
        %1653 = vmatmul.bf16.gmra.mxu0 %v917
        %v1654 = vpop.f32.mrf.mxu0
        %v1655 = vadd.f32 %v1566, %v1654
        %v1656 = vpop.f32.mrf.mxu0
        %v1657 = vadd.f32 %v1568, %v1656
        %1658 = vmatmul.bf16.gmra.mxu0 %v920
        %v1659 = vpop.f32.mrf.mxu0
        %v1660 = vadd.f32 %v1571, %v1659
        %v1661 = vpop.f32.mrf.mxu0
        %v1662 = vadd.f32 %v1573, %v1661
        %1663 = vmatmul.bf16.gmra.mxu0 %v923
        %v1664 = vpop.f32.mrf.mxu0
        %v1665 = vadd.f32 %v1576, %v1664
        %v1666 = vpop.f32.mrf.mxu0
        %v1667 = vadd.f32 %v1578, %v1666
        %1668 = vmatmul.bf16.gmra.mxu0 %v926
        %v1669 = vpop.f32.mrf.mxu0
        %v1670 = vadd.f32 %v1581, %v1669
        %v1671 = vpop.f32.mrf.mxu0
        %v1672 = vadd.f32 %v1583, %v1671
        %1673 = vdwg.mxu0
        %1674 = vmatpush.bf16.msra.mxu0 %v1285
        %1675 = vmatpush.bf16.msra.mxu0 %v1282
        %1676 = vmatpush.bf16.msra.mxu0 %v1279
        %1677 = vmatpush.bf16.msra.mxu0 %v1276
        %1678 = vmatpush.bf16.msra.mxu0 %v1273
        %1679 = vmatpush.bf16.msra.mxu0 %v1270
        %1680 = vmatpush.bf16.msra.mxu0 %v1267
        %1681 = vmatpush.bf16.msra.mxu0 %v1264
        %1682 = vmatmul.bf16.gmra.mxu0 %v879
        %v1683 = vpop.f32.mrf.mxu0
        %v1684 = vadd.f32 0.0, %v1683
        %v1685 = vpop.f32.mrf.mxu0
        %v1686 = vadd.f32 0.0, %v1685
        %1687 = vmatmul.bf16.gmra.mxu0 %v882
        %v1688 = vpop.f32.mrf.mxu0
        %v1689 = vadd.f32 0.0, %v1688
        %v1690 = vpop.f32.mrf.mxu0
        %v1691 = vadd.f32 0.0, %v1690
        %1692 = vmatmul.bf16.gmra.mxu0 %v885
        %v1693 = vpop.f32.mrf.mxu0
        %v1694 = vadd.f32 0.0, %v1693
        %v1695 = vpop.f32.mrf.mxu0
        %v1696 = vadd.f32 0.0, %v1695
        %1697 = vmatmul.bf16.gmra.mxu0 %v888
        %v1698 = vpop.f32.mrf.mxu0
        %v1699 = vadd.f32 0.0, %v1698
        %v1700 = vpop.f32.mrf.mxu0
        %v1701 = vadd.f32 0.0, %v1700
        %1702 = vmatmul.bf16.gmra.mxu0 %v891
        %v1703 = vpop.f32.mrf.mxu0
        %v1704 = vadd.f32 0.0, %v1703
        %v1705 = vpop.f32.mrf.mxu0
        %v1706 = vadd.f32 0.0, %v1705
        %1707 = vmatmul.bf16.gmra.mxu0 %v894
        %v1708 = vpop.f32.mrf.mxu0
        %v1709 = vadd.f32 0.0, %v1708
        %v1710 = vpop.f32.mrf.mxu0
        %v1711 = vadd.f32 0.0, %v1710
        %1712 = vmatmul.bf16.gmra.mxu0 %v897
        %v1713 = vpop.f32.mrf.mxu0
        %v1714 = vadd.f32 0.0, %v1713
        %v1715 = vpop.f32.mrf.mxu0
        %v1716 = vadd.f32 0.0, %v1715
        %1717 = vmatmul.bf16.gmra.mxu0 %v900
        %v1718 = vpop.f32.mrf.mxu0
        %v1719 = vadd.f32 0.0, %v1718
        %v1720 = vpop.f32.mrf.mxu0
        %v1721 = vadd.f32 0.0, %v1720
        %1722 = vmatmul.bf16.gmra.mxu0 %v903
        %v1723 = vpop.f32.mrf.mxu0
        %v1724 = vadd.f32 0.0, %v1723
        %v1725 = vpop.f32.mrf.mxu0
        %v1726 = vadd.f32 0.0, %v1725
        %1727 = vmatmul.bf16.gmra.mxu0 %v906
        %v1728 = vpop.f32.mrf.mxu0
        %v1729 = vadd.f32 0.0, %v1728
        %v1730 = vpop.f32.mrf.mxu0
        %v1731 = vadd.f32 0.0, %v1730
        %1732 = vmatmul.bf16.gmra.mxu0 %v909
        %v1733 = vpop.f32.mrf.mxu0
        %v1734 = vadd.f32 0.0, %v1733
        %v1735 = vpop.f32.mrf.mxu0
        %v1736 = vadd.f32 0.0, %v1735
        %1737 = vmatmul.bf16.gmra.mxu0 %v912
        %v1738 = vpop.f32.mrf.mxu0
        %v1739 = vadd.f32 0.0, %v1738
        %v1740 = vpop.f32.mrf.mxu0
        %v1741 = vadd.f32 0.0, %v1740
        %1742 = vmatmul.bf16.gmra.mxu0 %v915
        %v1743 = vpop.f32.mrf.mxu0
        %v1744 = vadd.f32 0.0, %v1743
        %v1745 = vpop.f32.mrf.mxu0
        %v1746 = vadd.f32 0.0, %v1745
        %1747 = vmatmul.bf16.gmra.mxu0 %v918
        %v1748 = vpop.f32.mrf.mxu0
        %v1749 = vadd.f32 0.0, %v1748
        %v1750 = vpop.f32.mrf.mxu0
        %v1751 = vadd.f32 0.0, %v1750
        %1752 = vmatmul.bf16.gmra.mxu0 %v921
        %v1753 = vpop.f32.mrf.mxu0
        %v1754 = vadd.f32 0.0, %v1753
        %v1755 = vpop.f32.mrf.mxu0
        %v1756 = vadd.f32 0.0, %v1755
        %1757 = vmatmul.bf16.gmra.mxu0 %v924
        %v1758 = vpop.f32.mrf.mxu0
        %v1759 = vadd.f32 0.0, %v1758
        %v1760 = vpop.f32.mrf.mxu0
        %v1761 = vadd.f32 0.0, %v1760
        %1762 = vdwg.mxu0
        %1763 = vmatpush.bf16.msra.mxu0 %v1309
        %1764 = vmatpush.bf16.msra.mxu0 %v1306
        %1765 = vmatpush.bf16.msra.mxu0 %v1303
        %1766 = vmatpush.bf16.msra.mxu0 %v1300
        %1767 = vmatpush.bf16.msra.mxu0 %v1297
        %1768 = vmatpush.bf16.msra.mxu0 %v1294
        %1769 = vmatpush.bf16.msra.mxu0 %v1291
        %1770 = vmatpush.bf16.msra.mxu0 %v1288
        %1771 = vmatmul.bf16.gmra.mxu0 %v880
        %v1772 = vpop.f32.mrf.mxu0
        %v1773 = vadd.f32 %v1684, %v1772
        %v1774 = vpop.f32.mrf.mxu0
        %v1775 = vadd.f32 %v1686, %v1774
        %1776 = vmatmul.bf16.gmra.mxu0 %v883
        %v1777 = vpop.f32.mrf.mxu0
        %v1778 = vadd.f32 %v1689, %v1777
        %v1779 = vpop.f32.mrf.mxu0
        %v1780 = vadd.f32 %v1691, %v1779
        %1781 = vmatmul.bf16.gmra.mxu0 %v886
        %v1782 = vpop.f32.mrf.mxu0
        %v1783 = vadd.f32 %v1694, %v1782
        %v1784 = vpop.f32.mrf.mxu0
        %v1785 = vadd.f32 %v1696, %v1784
        %1786 = vmatmul.bf16.gmra.mxu0 %v889
        %v1787 = vpop.f32.mrf.mxu0
        %v1788 = vadd.f32 %v1699, %v1787
        %v1789 = vpop.f32.mrf.mxu0
        %v1790 = vadd.f32 %v1701, %v1789
        %1791 = vmatmul.bf16.gmra.mxu0 %v892
        %v1792 = vpop.f32.mrf.mxu0
        %v1793 = vadd.f32 %v1704, %v1792
        %v1794 = vpop.f32.mrf.mxu0
        %v1795 = vadd.f32 %v1706, %v1794
        %1796 = vmatmul.bf16.gmra.mxu0 %v895
        %v1797 = vpop.f32.mrf.mxu0
        %v1798 = vadd.f32 %v1709, %v1797
        %v1799 = vpop.f32.mrf.mxu0
        %v1800 = vadd.f32 %v1711, %v1799
        %1801 = vmatmul.bf16.gmra.mxu0 %v898
        %v1802 = vpop.f32.mrf.mxu0
        %v1803 = vadd.f32 %v1714, %v1802
        %v1804 = vpop.f32.mrf.mxu0
        %v1805 = vadd.f32 %v1716, %v1804
        %1806 = vmatmul.bf16.gmra.mxu0 %v901
        %v1807 = vpop.f32.mrf.mxu0
        %v1808 = vadd.f32 %v1719, %v1807
        %v1809 = vpop.f32.mrf.mxu0
        %v1810 = vadd.f32 %v1721, %v1809
        %1811 = vmatmul.bf16.gmra.mxu0 %v904
        %v1812 = vpop.f32.mrf.mxu0
        %v1813 = vadd.f32 %v1724, %v1812
        %v1814 = vpop.f32.mrf.mxu0
        %v1815 = vadd.f32 %v1726, %v1814
        %1816 = vmatmul.bf16.gmra.mxu0 %v907
        %v1817 = vpop.f32.mrf.mxu0
        %v1818 = vadd.f32 %v1729, %v1817
        %v1819 = vpop.f32.mrf.mxu0
        %v1820 = vadd.f32 %v1731, %v1819
        %1821 = vmatmul.bf16.gmra.mxu0 %v910
        %v1822 = vpop.f32.mrf.mxu0
        %v1823 = vadd.f32 %v1734, %v1822
        %v1824 = vpop.f32.mrf.mxu0
        %v1825 = vadd.f32 %v1736, %v1824
        %1826 = vmatmul.bf16.gmra.mxu0 %v913
        %v1827 = vpop.f32.mrf.mxu0
        %v1828 = vadd.f32 %v1739, %v1827
        %v1829 = vpop.f32.mrf.mxu0
        %v1830 = vadd.f32 %v1741, %v1829
        %1831 = vmatmul.bf16.gmra.mxu0 %v916
        %v1832 = vpop.f32.mrf.mxu0
        %v1833 = vadd.f32 %v1744, %v1832
        %v1834 = vpop.f32.mrf.mxu0
        %v1835 = vadd.f32 %v1746, %v1834
        %1836 = vmatmul.bf16.gmra.mxu0 %v919
        %v1837 = vpop.f32.mrf.mxu0
        %v1838 = vadd.f32 %v1749, %v1837
        %v1839 = vpop.f32.mrf.mxu0
        %v1840 = vadd.f32 %v1751, %v1839
        %1841 = vmatmul.bf16.gmra.mxu0 %v922
        %v1842 = vpop.f32.mrf.mxu0
        %v1843 = vadd.f32 %v1754, %v1842
        %v1844 = vpop.f32.mrf.mxu0
        %v1845 = vadd.f32 %v1756, %v1844
        %1846 = vmatmul.bf16.gmra.mxu0 %v925
        %v1847 = vpop.f32.mrf.mxu0
        %v1848 = vadd.f32 %v1759, %v1847
        %v1849 = vpop.f32.mrf.mxu0
        %v1850 = vadd.f32 %v1761, %v1849
        %1851 = vdwg.mxu0
        %1852 = vmatpush.bf16.msra.mxu0 %v1333
        %1853 = vmatpush.bf16.msra.mxu0 %v1330
        %1854 = vmatpush.bf16.msra.mxu0 %v1327
        %1855 = vmatpush.bf16.msra.mxu0 %v1324
        %1856 = vmatpush.bf16.msra.mxu0 %v1321
        %1857 = vmatpush.bf16.msra.mxu0 %v1318
        %1858 = vmatpush.bf16.msra.mxu0 %v1315
        %1859 = vmatpush.bf16.msra.mxu0 %v1312
        %1860 = vmatmul.bf16.gmra.mxu0 %v881
        %v1861 = vpop.f32.mrf.mxu0
        %v1862 = vadd.f32 %v1773, %v1861
        %v1863 = vpop.f32.mrf.mxu0
        %v1864 = vadd.f32 %v1775, %v1863
        %1865 = vmatmul.bf16.gmra.mxu0 %v884
        %v1866 = vpop.f32.mrf.mxu0
        %v1867 = vadd.f32 %v1778, %v1866
        %v1868 = vpop.f32.mrf.mxu0
        %v1869 = vadd.f32 %v1780, %v1868
        %1870 = vmatmul.bf16.gmra.mxu0 %v887
        %v1871 = vpop.f32.mrf.mxu0
        %v1872 = vadd.f32 %v1783, %v1871
        %v1873 = vpop.f32.mrf.mxu0
        %v1874 = vadd.f32 %v1785, %v1873
        %1875 = vmatmul.bf16.gmra.mxu0 %v890
        %v1876 = vpop.f32.mrf.mxu0
        %v1877 = vadd.f32 %v1788, %v1876
        %v1878 = vpop.f32.mrf.mxu0
        %v1879 = vadd.f32 %v1790, %v1878
        %1880 = vmatmul.bf16.gmra.mxu0 %v893
        %v1881 = vpop.f32.mrf.mxu0
        %v1882 = vadd.f32 %v1793, %v1881
        %v1883 = vpop.f32.mrf.mxu0
        %v1884 = vadd.f32 %v1795, %v1883
        %1885 = vmatmul.bf16.gmra.mxu0 %v896
        %v1886 = vpop.f32.mrf.mxu0
        %v1887 = vadd.f32 %v1798, %v1886
        %v1888 = vpop.f32.mrf.mxu0
        %v1889 = vadd.f32 %v1800, %v1888
        %1890 = vmatmul.bf16.gmra.mxu0 %v899
        %v1891 = vpop.f32.mrf.mxu0
        %v1892 = vadd.f32 %v1803, %v1891
        %v1893 = vpop.f32.mrf.mxu0
        %v1894 = vadd.f32 %v1805, %v1893
        %1895 = vmatmul.bf16.gmra.mxu0 %v902
        %v1896 = vpop.f32.mrf.mxu0
        %v1897 = vadd.f32 %v1808, %v1896
        %v1898 = vpop.f32.mrf.mxu0
        %v1899 = vadd.f32 %v1810, %v1898
        %1900 = vmatmul.bf16.gmra.mxu0 %v905
        %v1901 = vpop.f32.mrf.mxu0
        %v1902 = vadd.f32 %v1813, %v1901
        %v1903 = vpop.f32.mrf.mxu0
        %v1904 = vadd.f32 %v1815, %v1903
        %1905 = vmatmul.bf16.gmra.mxu0 %v908
        %v1906 = vpop.f32.mrf.mxu0
        %v1907 = vadd.f32 %v1818, %v1906
        %v1908 = vpop.f32.mrf.mxu0
        %v1909 = vadd.f32 %v1820, %v1908
        %1910 = vmatmul.bf16.gmra.mxu0 %v911
        %v1911 = vpop.f32.mrf.mxu0
        %v1912 = vadd.f32 %v1823, %v1911
        %v1913 = vpop.f32.mrf.mxu0
        %v1914 = vadd.f32 %v1825, %v1913
        %1915 = vmatmul.bf16.gmra.mxu0 %v914
        %v1916 = vpop.f32.mrf.mxu0
        %v1917 = vadd.f32 %v1828, %v1916
        %v1918 = vpop.f32.mrf.mxu0
        %v1919 = vadd.f32 %v1830, %v1918
        %1920 = vmatmul.bf16.gmra.mxu0 %v917
        %v1921 = vpop.f32.mrf.mxu0
        %v1922 = vadd.f32 %v1833, %v1921
        %v1923 = vpop.f32.mrf.mxu0
        %v1924 = vadd.f32 %v1835, %v1923
        %1925 = vmatmul.bf16.gmra.mxu0 %v920
        %v1926 = vpop.f32.mrf.mxu0
        %v1927 = vadd.f32 %v1838, %v1926
        %v1928 = vpop.f32.mrf.mxu0
        %v1929 = vadd.f32 %v1840, %v1928
        %1930 = vmatmul.bf16.gmra.mxu0 %v923
        %v1931 = vpop.f32.mrf.mxu0
        %v1932 = vadd.f32 %v1843, %v1931
        %v1933 = vpop.f32.mrf.mxu0
        %v1934 = vadd.f32 %v1845, %v1933
        %1935 = vmatmul.bf16.gmra.mxu0 %v926
        %v1936 = vpop.f32.mrf.mxu0
        %v1937 = vadd.f32 %v1848, %v1936
        %v1938 = vpop.f32.mrf.mxu0
        %v1939 = vadd.f32 %v1850, %v1938
        %1940 = vdwg.mxu0
        %1941 = vmatpush.bf16.msra.mxu0 %v1286
        %1942 = vmatpush.bf16.msra.mxu0 %v1283
        %1943 = vmatpush.bf16.msra.mxu0 %v1280
        %1944 = vmatpush.bf16.msra.mxu0 %v1277
        %1945 = vmatpush.bf16.msra.mxu0 %v1274
        %1946 = vmatpush.bf16.msra.mxu0 %v1271
        %1947 = vmatpush.bf16.msra.mxu0 %v1268
        %1948 = vmatpush.bf16.msra.mxu0 %v1265
        %1949 = vmatmul.bf16.gmra.mxu0 %v879
        %v1950 = vpop.f32.mrf.mxu0
        %v1951 = vadd.f32 0.0, %v1950
        %v1952 = vpop.f32.mrf.mxu0
        %v1953 = vadd.f32 0.0, %v1952
        %1954 = vmatmul.bf16.gmra.mxu0 %v882
        %v1955 = vpop.f32.mrf.mxu0
        %v1956 = vadd.f32 0.0, %v1955
        %v1957 = vpop.f32.mrf.mxu0
        %v1958 = vadd.f32 0.0, %v1957
        %1959 = vmatmul.bf16.gmra.mxu0 %v885
        %v1960 = vpop.f32.mrf.mxu0
        %v1961 = vadd.f32 0.0, %v1960
        %v1962 = vpop.f32.mrf.mxu0
        %v1963 = vadd.f32 0.0, %v1962
        %1964 = vmatmul.bf16.gmra.mxu0 %v888
        %v1965 = vpop.f32.mrf.mxu0
        %v1966 = vadd.f32 0.0, %v1965
        %v1967 = vpop.f32.mrf.mxu0
        %v1968 = vadd.f32 0.0, %v1967
        %1969 = vmatmul.bf16.gmra.mxu0 %v891
        %v1970 = vpop.f32.mrf.mxu0
        %v1971 = vadd.f32 0.0, %v1970
        %v1972 = vpop.f32.mrf.mxu0
        %v1973 = vadd.f32 0.0, %v1972
        %1974 = vmatmul.bf16.gmra.mxu0 %v894
        %v1975 = vpop.f32.mrf.mxu0
        %v1976 = vadd.f32 0.0, %v1975
        %v1977 = vpop.f32.mrf.mxu0
        %v1978 = vadd.f32 0.0, %v1977
        %1979 = vmatmul.bf16.gmra.mxu0 %v897
        %v1980 = vpop.f32.mrf.mxu0
        %v1981 = vadd.f32 0.0, %v1980
        %v1982 = vpop.f32.mrf.mxu0
        %v1983 = vadd.f32 0.0, %v1982
        %1984 = vmatmul.bf16.gmra.mxu0 %v900
        %v1985 = vpop.f32.mrf.mxu0
        %v1986 = vadd.f32 0.0, %v1985
        %v1987 = vpop.f32.mrf.mxu0
        %v1988 = vadd.f32 0.0, %v1987
        %1989 = vmatmul.bf16.gmra.mxu0 %v903
        %v1990 = vpop.f32.mrf.mxu0
        %v1991 = vadd.f32 0.0, %v1990
        %v1992 = vpop.f32.mrf.mxu0
        %v1993 = vadd.f32 0.0, %v1992
        %1994 = vmatmul.bf16.gmra.mxu0 %v906
        %v1995 = vpop.f32.mrf.mxu0
        %v1996 = vadd.f32 0.0, %v1995
        %v1997 = vpop.f32.mrf.mxu0
        %v1998 = vadd.f32 0.0, %v1997
        %1999 = vmatmul.bf16.gmra.mxu0 %v909
        %v2000 = vpop.f32.mrf.mxu0
        %v2001 = vadd.f32 0.0, %v2000
        %v2002 = vpop.f32.mrf.mxu0
        %v2003 = vadd.f32 0.0, %v2002
        %2004 = vmatmul.bf16.gmra.mxu0 %v912
        %v2005 = vpop.f32.mrf.mxu0
        %v2006 = vadd.f32 0.0, %v2005
        %v2007 = vpop.f32.mrf.mxu0
        %v2008 = vadd.f32 0.0, %v2007
        %2009 = vmatmul.bf16.gmra.mxu0 %v915
        %v2010 = vpop.f32.mrf.mxu0
        %v2011 = vadd.f32 0.0, %v2010
        %v2012 = vpop.f32.mrf.mxu0
        %v2013 = vadd.f32 0.0, %v2012
        %2014 = vmatmul.bf16.gmra.mxu0 %v918
        %v2015 = vpop.f32.mrf.mxu0
        %v2016 = vadd.f32 0.0, %v2015
        %v2017 = vpop.f32.mrf.mxu0
        %v2018 = vadd.f32 0.0, %v2017
        %2019 = vmatmul.bf16.gmra.mxu0 %v921
        %v2020 = vpop.f32.mrf.mxu0
        %v2021 = vadd.f32 0.0, %v2020
        %v2022 = vpop.f32.mrf.mxu0
        %v2023 = vadd.f32 0.0, %v2022
        %2024 = vmatmul.bf16.gmra.mxu0 %v924
        %v2025 = vpop.f32.mrf.mxu0
        %v2026 = vadd.f32 0.0, %v2025
        %v2027 = vpop.f32.mrf.mxu0
        %v2028 = vadd.f32 0.0, %v2027
        %2029 = vdwg.mxu0
        %2030 = vmatpush.bf16.msra.mxu0 %v1310
        %2031 = vmatpush.bf16.msra.mxu0 %v1307
        %2032 = vmatpush.bf16.msra.mxu0 %v1304
        %2033 = vmatpush.bf16.msra.mxu0 %v1301
        %2034 = vmatpush.bf16.msra.mxu0 %v1298
        %2035 = vmatpush.bf16.msra.mxu0 %v1295
        %2036 = vmatpush.bf16.msra.mxu0 %v1292
        %2037 = vmatpush.bf16.msra.mxu0 %v1289
        %2038 = vmatmul.bf16.gmra.mxu0 %v880
        %v2039 = vpop.f32.mrf.mxu0
        %v2040 = vadd.f32 %v1951, %v2039
        %v2041 = vpop.f32.mrf.mxu0
        %v2042 = vadd.f32 %v1953, %v2041
        %2043 = vmatmul.bf16.gmra.mxu0 %v883
        %v2044 = vpop.f32.mrf.mxu0
        %v2045 = vadd.f32 %v1956, %v2044
        %v2046 = vpop.f32.mrf.mxu0
        %v2047 = vadd.f32 %v1958, %v2046
        %2048 = vmatmul.bf16.gmra.mxu0 %v886
        %v2049 = vpop.f32.mrf.mxu0
        %v2050 = vadd.f32 %v1961, %v2049
        %v2051 = vpop.f32.mrf.mxu0
        %v2052 = vadd.f32 %v1963, %v2051
        %2053 = vmatmul.bf16.gmra.mxu0 %v889
        %v2054 = vpop.f32.mrf.mxu0
        %v2055 = vadd.f32 %v1966, %v2054
        %v2056 = vpop.f32.mrf.mxu0
        %v2057 = vadd.f32 %v1968, %v2056
        %2058 = vmatmul.bf16.gmra.mxu0 %v892
        %v2059 = vpop.f32.mrf.mxu0
        %v2060 = vadd.f32 %v1971, %v2059
        %v2061 = vpop.f32.mrf.mxu0
        %v2062 = vadd.f32 %v1973, %v2061
        %2063 = vmatmul.bf16.gmra.mxu0 %v895
        %v2064 = vpop.f32.mrf.mxu0
        %v2065 = vadd.f32 %v1976, %v2064
        %v2066 = vpop.f32.mrf.mxu0
        %v2067 = vadd.f32 %v1978, %v2066
        %2068 = vmatmul.bf16.gmra.mxu0 %v898
        %v2069 = vpop.f32.mrf.mxu0
        %v2070 = vadd.f32 %v1981, %v2069
        %v2071 = vpop.f32.mrf.mxu0
        %v2072 = vadd.f32 %v1983, %v2071
        %2073 = vmatmul.bf16.gmra.mxu0 %v901
        %v2074 = vpop.f32.mrf.mxu0
        %v2075 = vadd.f32 %v1986, %v2074
        %v2076 = vpop.f32.mrf.mxu0
        %v2077 = vadd.f32 %v1988, %v2076
        %2078 = vmatmul.bf16.gmra.mxu0 %v904
        %v2079 = vpop.f32.mrf.mxu0
        %v2080 = vadd.f32 %v1991, %v2079
        %v2081 = vpop.f32.mrf.mxu0
        %v2082 = vadd.f32 %v1993, %v2081
        %2083 = vmatmul.bf16.gmra.mxu0 %v907
        %v2084 = vpop.f32.mrf.mxu0
        %v2085 = vadd.f32 %v1996, %v2084
        %v2086 = vpop.f32.mrf.mxu0
        %v2087 = vadd.f32 %v1998, %v2086
        %2088 = vmatmul.bf16.gmra.mxu0 %v910
        %v2089 = vpop.f32.mrf.mxu0
        %v2090 = vadd.f32 %v2001, %v2089
        %v2091 = vpop.f32.mrf.mxu0
        %v2092 = vadd.f32 %v2003, %v2091
        %2093 = vmatmul.bf16.gmra.mxu0 %v913
        %v2094 = vpop.f32.mrf.mxu0
        %v2095 = vadd.f32 %v2006, %v2094
        %v2096 = vpop.f32.mrf.mxu0
        %v2097 = vadd.f32 %v2008, %v2096
        %2098 = vmatmul.bf16.gmra.mxu0 %v916
        %v2099 = vpop.f32.mrf.mxu0
        %v2100 = vadd.f32 %v2011, %v2099
        %v2101 = vpop.f32.mrf.mxu0
        %v2102 = vadd.f32 %v2013, %v2101
        %2103 = vmatmul.bf16.gmra.mxu0 %v919
        %v2104 = vpop.f32.mrf.mxu0
        %v2105 = vadd.f32 %v2016, %v2104
        %v2106 = vpop.f32.mrf.mxu0
        %v2107 = vadd.f32 %v2018, %v2106
        %2108 = vmatmul.bf16.gmra.mxu0 %v922
        %v2109 = vpop.f32.mrf.mxu0
        %v2110 = vadd.f32 %v2021, %v2109
        %v2111 = vpop.f32.mrf.mxu0
        %v2112 = vadd.f32 %v2023, %v2111
        %2113 = vmatmul.bf16.gmra.mxu0 %v925
        %v2114 = vpop.f32.mrf.mxu0
        %v2115 = vadd.f32 %v2026, %v2114
        %v2116 = vpop.f32.mrf.mxu0
        %v2117 = vadd.f32 %v2028, %v2116
        %2118 = vdwg.mxu0
        %2119 = vmatpush.bf16.msra.mxu0 %v1334
        %2120 = vmatpush.bf16.msra.mxu0 %v1331
        %2121 = vmatpush.bf16.msra.mxu0 %v1328
        %2122 = vmatpush.bf16.msra.mxu0 %v1325
        %2123 = vmatpush.bf16.msra.mxu0 %v1322
        %2124 = vmatpush.bf16.msra.mxu0 %v1319
        %2125 = vmatpush.bf16.msra.mxu0 %v1316
        %2126 = vmatpush.bf16.msra.mxu0 %v1313
        %2127 = vmatmul.bf16.gmra.mxu0 %v881
        %v2128 = vpop.f32.mrf.mxu0
        %v2129 = vadd.f32 %v2040, %v2128
        %v2130 = vpop.f32.mrf.mxu0
        %v2131 = vadd.f32 %v2042, %v2130
        %2132 = vmatmul.bf16.gmra.mxu0 %v884
        %v2133 = vpop.f32.mrf.mxu0
        %v2134 = vadd.f32 %v2045, %v2133
        %v2135 = vpop.f32.mrf.mxu0
        %v2136 = vadd.f32 %v2047, %v2135
        %2137 = vmatmul.bf16.gmra.mxu0 %v887
        %v2138 = vpop.f32.mrf.mxu0
        %v2139 = vadd.f32 %v2050, %v2138
        %v2140 = vpop.f32.mrf.mxu0
        %v2141 = vadd.f32 %v2052, %v2140
        %2142 = vmatmul.bf16.gmra.mxu0 %v890
        %v2143 = vpop.f32.mrf.mxu0
        %v2144 = vadd.f32 %v2055, %v2143
        %v2145 = vpop.f32.mrf.mxu0
        %v2146 = vadd.f32 %v2057, %v2145
        %2147 = vmatmul.bf16.gmra.mxu0 %v893
        %v2148 = vpop.f32.mrf.mxu0
        %v2149 = vadd.f32 %v2060, %v2148
        %v2150 = vpop.f32.mrf.mxu0
        %v2151 = vadd.f32 %v2062, %v2150
        %2152 = vmatmul.bf16.gmra.mxu0 %v896
        %v2153 = vpop.f32.mrf.mxu0
        %v2154 = vadd.f32 %v2065, %v2153
        %v2155 = vpop.f32.mrf.mxu0
        %v2156 = vadd.f32 %v2067, %v2155
        %2157 = vmatmul.bf16.gmra.mxu0 %v899
        %v2158 = vpop.f32.mrf.mxu0
        %v2159 = vadd.f32 %v2070, %v2158
        %v2160 = vpop.f32.mrf.mxu0
        %v2161 = vadd.f32 %v2072, %v2160
        %2162 = vmatmul.bf16.gmra.mxu0 %v902
        %v2163 = vpop.f32.mrf.mxu0
        %v2164 = vadd.f32 %v2075, %v2163
        %v2165 = vpop.f32.mrf.mxu0
        %v2166 = vadd.f32 %v2077, %v2165
        %2167 = vmatmul.bf16.gmra.mxu0 %v905
        %v2168 = vpop.f32.mrf.mxu0
        %v2169 = vadd.f32 %v2080, %v2168
        %v2170 = vpop.f32.mrf.mxu0
        %v2171 = vadd.f32 %v2082, %v2170
        %2172 = vmatmul.bf16.gmra.mxu0 %v908
        %v2173 = vpop.f32.mrf.mxu0
        %v2174 = vadd.f32 %v2085, %v2173
        %v2175 = vpop.f32.mrf.mxu0
        %v2176 = vadd.f32 %v2087, %v2175
        %2177 = vmatmul.bf16.gmra.mxu0 %v911
        %v2178 = vpop.f32.mrf.mxu0
        %v2179 = vadd.f32 %v2090, %v2178
        %v2180 = vpop.f32.mrf.mxu0
        %v2181 = vadd.f32 %v2092, %v2180
        %2182 = vmatmul.bf16.gmra.mxu0 %v914
        %v2183 = vpop.f32.mrf.mxu0
        %v2184 = vadd.f32 %v2095, %v2183
        %v2185 = vpop.f32.mrf.mxu0
        %v2186 = vadd.f32 %v2097, %v2185
        %2187 = vmatmul.bf16.gmra.mxu0 %v917
        %v2188 = vpop.f32.mrf.mxu0
        %v2189 = vadd.f32 %v2100, %v2188
        %v2190 = vpop.f32.mrf.mxu0
        %v2191 = vadd.f32 %v2102, %v2190
        %2192 = vmatmul.bf16.gmra.mxu0 %v920
        %v2193 = vpop.f32.mrf.mxu0
        %v2194 = vadd.f32 %v2105, %v2193
        %v2195 = vpop.f32.mrf.mxu0
        %v2196 = vadd.f32 %v2107, %v2195
        %2197 = vmatmul.bf16.gmra.mxu0 %v923
        %v2198 = vpop.f32.mrf.mxu0
        %v2199 = vadd.f32 %v2110, %v2198
        %v2200 = vpop.f32.mrf.mxu0
        %v2201 = vadd.f32 %v2112, %v2200
        %2202 = vmatmul.bf16.gmra.mxu0 %v926
        %v2203 = vpop.f32.mrf.mxu0
        %v2204 = vadd.f32 %v2115, %v2203
        %v2205 = vpop.f32.mrf.mxu0
        %v2206 = vadd.f32 %v2117, %v2205
        %2207 = vdwg.mxu0
        %v2208 = vsel %vm461, 1, 0
        %v2209 = vsel %vm462, 1, 0
        %v2210 = vsel %vm463, 1, 0
        %v2211 = vsel %vm464, 1, 0
        %v2212 = vsel %vm465, 1, 0
        %v2213 = vsel %vm466, 1, 0
        %v2214 = vsel %vm467, 1, 0
        %v2215 = vsel %vm468, 1, 0
        %v2216 = vsel %vm469, 1, 0
        %v2217 = vsel %vm470, 1, 0
        %v2218 = vsel %vm471, 1, 0
        %v2219 = vsel %vm472, 1, 0
        %v2220 = vsel %vm473, 1, 0
        %v2221 = vsel %vm474, 1, 0
        %v2222 = vsel %vm475, 1, 0
        %v2223 = vsel %vm476, 1, 0
        %v2224 = vsel %vm477, 1, 0
        %v2225 = vsel %vm478, 1, 0
        %v2226 = vsel %vm479, 1, 0
        %v2227 = vsel %vm480, 1, 0
        %v2228 = vsel %vm481, 1, 0
        %v2229 = vsel %vm482, 1, 0
        %v2230 = vsel %vm483, 1, 0
        %v2231 = vsel %vm484, 1, 0
        %v2232 = vsel %vm485, 1, 0
        %v2233 = vsel %vm486, 1, 0
        %v2234 = vsel %vm487, 1, 0
        %v2235 = vsel %vm488, 1, 0
        %v2236 = vsel %vm489, 1, 0
        %v2237 = vsel %vm490, 1, 0
        %v2238 = vsel %vm491, 1, 0
        %v2239 = vsel %vm492, 1, 0
        %vm2240 = vcmp.eq.s32.totalorder %v2208, 1
        %vm2241 = vcmp.eq.s32.totalorder %v2209, 1
        %vm2242 = vcmp.eq.s32.totalorder %v2210, 1
        %vm2243 = vcmp.eq.s32.totalorder %v2211, 1
        %vm2244 = vcmp.eq.s32.totalorder %v2212, 1
        %vm2245 = vcmp.eq.s32.totalorder %v2213, 1
        %vm2246 = vcmp.eq.s32.totalorder %v2214, 1
        %vm2247 = vcmp.eq.s32.totalorder %v2215, 1
        %vm2248 = vcmp.eq.s32.totalorder %v2216, 1
        %vm2249 = vcmp.eq.s32.totalorder %v2217, 1
        %vm2250 = vcmp.eq.s32.totalorder %v2218, 1
        %vm2251 = vcmp.eq.s32.totalorder %v2219, 1
        %vm2252 = vcmp.eq.s32.totalorder %v2220, 1
        %vm2253 = vcmp.eq.s32.totalorder %v2221, 1
        %vm2254 = vcmp.eq.s32.totalorder %v2222, 1
        %vm2255 = vcmp.eq.s32.totalorder %v2223, 1
        %vm2256 = vcmp.eq.s32.totalorder %v2224, 1
        %vm2257 = vcmp.eq.s32.totalorder %v2225, 1
        %vm2258 = vcmp.eq.s32.totalorder %v2226, 1
        %vm2259 = vcmp.eq.s32.totalorder %v2227, 1
        %vm2260 = vcmp.eq.s32.totalorder %v2228, 1
        %vm2261 = vcmp.eq.s32.totalorder %v2229, 1
        %vm2262 = vcmp.eq.s32.totalorder %v2230, 1
        %vm2263 = vcmp.eq.s32.totalorder %v2231, 1
        %vm2264 = vcmp.eq.s32.totalorder %v2232, 1
        %vm2265 = vcmp.eq.s32.totalorder %v2233, 1
        %vm2266 = vcmp.eq.s32.totalorder %v2234, 1
        %vm2267 = vcmp.eq.s32.totalorder %v2235, 1
        %vm2268 = vcmp.eq.s32.totalorder %v2236, 1
        %vm2269 = vcmp.eq.s32.totalorder %v2237, 1
        %vm2270 = vcmp.eq.s32.totalorder %v2238, 1
        %vm2271 = vcmp.eq.s32.totalorder %v2239, 1
        %v2272 = vsel %vm2240, %v1670, 0.0
        %v2273 = vsel %vm2241, %v1672, 0.0
        %v2274 = vsel %vm2242, %v1595, 0.0
        %v2275 = vsel %vm2243, %v1597, 0.0
        %v2276 = vsel %vm2244, %v1600, 0.0
        %v2277 = vsel %vm2245, %v1602, 0.0
        %v2278 = vsel %vm2246, %v1605, 0.0
        %v2279 = vsel %vm2247, %v1607, 0.0
        %v2280 = vsel %vm2248, %v1610, 0.0
        %v2281 = vsel %vm2249, %v1612, 0.0
        %v2282 = vsel %vm2250, %v1615, 0.0
        %v2283 = vsel %vm2251, %v1617, 0.0
        %v2284 = vsel %vm2252, %v1620, 0.0
        %v2285 = vsel %vm2253, %v1622, 0.0
        %v2286 = vsel %vm2254, %v1625, 0.0
        %v2287 = vsel %vm2255, %v1627, 0.0
        %v2288 = vsel %vm2256, %v1630, 0.0
        %v2289 = vsel %vm2257, %v1632, 0.0
        %v2290 = vsel %vm2258, %v1635, 0.0
        %v2291 = vsel %vm2259, %v1637, 0.0
        %v2292 = vsel %vm2260, %v1640, 0.0
        %v2293 = vsel %vm2261, %v1642, 0.0
        %v2294 = vsel %vm2262, %v1645, 0.0
        %v2295 = vsel %vm2263, %v1647, 0.0
        %v2296 = vsel %vm2264, %v1650, 0.0
        %v2297 = vsel %vm2265, %v1652, 0.0
        %v2298 = vsel %vm2266, %v1655, 0.0
        %v2299 = vsel %vm2267, %v1657, 0.0
        %v2300 = vsel %vm2268, %v1660, 0.0
        %v2301 = vsel %vm2269, %v1662, 0.0
        %v2302 = vsel %vm2270, %v1665, 0.0
        %v2303 = vsel %vm2271, %v1667, 0.0
        %v2304 = vsel %vm493, 1, 0
        %v2305 = vsel %vm494, 1, 0
        %v2306 = vsel %vm495, 1, 0
        %v2307 = vsel %vm496, 1, 0
        %v2308 = vsel %vm497, 1, 0
        %v2309 = vsel %vm498, 1, 0
        %v2310 = vsel %vm499, 1, 0
        %v2311 = vsel %vm500, 1, 0
        %v2312 = vsel %vm501, 1, 0
        %v2313 = vsel %vm502, 1, 0
        %v2314 = vsel %vm503, 1, 0
        %v2315 = vsel %vm504, 1, 0
        %v2316 = vsel %vm505, 1, 0
        %v2317 = vsel %vm506, 1, 0
        %v2318 = vsel %vm507, 1, 0
        %v2319 = vsel %vm508, 1, 0
        %v2320 = vsel %vm509, 1, 0
        %v2321 = vsel %vm510, 1, 0
        %v2322 = vsel %vm511, 1, 0
        %v2323 = vsel %vm512, 1, 0
        %v2324 = vsel %vm513, 1, 0
        %v2325 = vsel %vm514, 1, 0
        %v2326 = vsel %vm515, 1, 0
        %v2327 = vsel %vm516, 1, 0
        %v2328 = vsel %vm517, 1, 0
        %v2329 = vsel %vm518, 1, 0
        %v2330 = vsel %vm519, 1, 0
        %v2331 = vsel %vm520, 1, 0
        %v2332 = vsel %vm521, 1, 0
        %v2333 = vsel %vm522, 1, 0
        %v2334 = vsel %vm523, 1, 0
        %v2335 = vsel %vm524, 1, 0
        %vm2336 = vcmp.eq.s32.totalorder %v2304, 1
        %vm2337 = vcmp.eq.s32.totalorder %v2305, 1
        %vm2338 = vcmp.eq.s32.totalorder %v2306, 1
        %vm2339 = vcmp.eq.s32.totalorder %v2307, 1
        %vm2340 = vcmp.eq.s32.totalorder %v2308, 1
        %vm2341 = vcmp.eq.s32.totalorder %v2309, 1
        %vm2342 = vcmp.eq.s32.totalorder %v2310, 1
        %vm2343 = vcmp.eq.s32.totalorder %v2311, 1
        %vm2344 = vcmp.eq.s32.totalorder %v2312, 1
        %vm2345 = vcmp.eq.s32.totalorder %v2313, 1
        %vm2346 = vcmp.eq.s32.totalorder %v2314, 1
        %vm2347 = vcmp.eq.s32.totalorder %v2315, 1
        %vm2348 = vcmp.eq.s32.totalorder %v2316, 1
        %vm2349 = vcmp.eq.s32.totalorder %v2317, 1
        %vm2350 = vcmp.eq.s32.totalorder %v2318, 1
        %vm2351 = vcmp.eq.s32.totalorder %v2319, 1
        %vm2352 = vcmp.eq.s32.totalorder %v2320, 1
        %vm2353 = vcmp.eq.s32.totalorder %v2321, 1
        %vm2354 = vcmp.eq.s32.totalorder %v2322, 1
        %vm2355 = vcmp.eq.s32.totalorder %v2323, 1
        %vm2356 = vcmp.eq.s32.totalorder %v2324, 1
        %vm2357 = vcmp.eq.s32.totalorder %v2325, 1
        %vm2358 = vcmp.eq.s32.totalorder %v2326, 1
        %vm2359 = vcmp.eq.s32.totalorder %v2327, 1
        %vm2360 = vcmp.eq.s32.totalorder %v2328, 1
        %vm2361 = vcmp.eq.s32.totalorder %v2329, 1
        %vm2362 = vcmp.eq.s32.totalorder %v2330, 1
        %vm2363 = vcmp.eq.s32.totalorder %v2331, 1
        %vm2364 = vcmp.eq.s32.totalorder %v2332, 1
        %vm2365 = vcmp.eq.s32.totalorder %v2333, 1
        %vm2366 = vcmp.eq.s32.totalorder %v2334, 1
        %vm2367 = vcmp.eq.s32.totalorder %v2335, 1
        %v2368 = vsel %vm2336, %v2134, 0.0
        %v2369 = vsel %vm2337, %v2136, 0.0
        %v2370 = vsel %vm2338, %v2139, 0.0
        %v2371 = vsel %vm2339, %v2141, 0.0
        %v2372 = vsel %vm2340, %v2144, 0.0
        %v2373 = vsel %vm2341, %v2146, 0.0
        %v2374 = vsel %vm2342, %v2149, 0.0
        %v2375 = vsel %vm2343, %v2151, 0.0
        %v2376 = vsel %vm2344, %v2154, 0.0
        %v2377 = vsel %vm2345, %v2156, 0.0
        %v2378 = vsel %vm2346, %v2159, 0.0
        %v2379 = vsel %vm2347, %v2161, 0.0
        %v2380 = vsel %vm2348, %v2164, 0.0
        %v2381 = vsel %vm2349, %v2166, 0.0
        %v2382 = vsel %vm2350, %v2169, 0.0
        %v2383 = vsel %vm2351, %v2171, 0.0
        %v2384 = vsel %vm2352, %v2174, 0.0
        %v2385 = vsel %vm2353, %v2176, 0.0
        %v2386 = vsel %vm2354, %v2179, 0.0
        %v2387 = vsel %vm2355, %v2181, 0.0
        %v2388 = vsel %vm2356, %v2184, 0.0
        %v2389 = vsel %vm2357, %v2186, 0.0
        %v2390 = vsel %vm2358, %v2189, 0.0
        %v2391 = vsel %vm2359, %v2191, 0.0
        %v2392 = vsel %vm2360, %v2194, 0.0
        %v2393 = vsel %vm2361, %v2196, 0.0
        %v2394 = vsel %vm2362, %v2199, 0.0
        %v2395 = vsel %vm2363, %v2201, 0.0
        %v2396 = vsel %vm2364, %v2204, 0.0
        %v2397 = vsel %vm2365, %v2206, 0.0
        %v2398 = vsel %vm2366, %v2129, 0.0
        %v2399 = vsel %vm2367, %v2131, 0.0
        %v2400 = vadd.f32 %v2272, %v1862
        %v2401 = vadd.f32 %v2273, %v1864
        %v2402 = vadd.f32 %v2274, %v1867
        %v2403 = vadd.f32 %v2275, %v1869
        %v2404 = vadd.f32 %v2276, %v1872
        %v2405 = vadd.f32 %v2277, %v1874
        %v2406 = vadd.f32 %v2278, %v1877
        %v2407 = vadd.f32 %v2279, %v1879
        %v2408 = vadd.f32 %v2280, %v1882
        %v2409 = vadd.f32 %v2281, %v1884
        %v2410 = vadd.f32 %v2282, %v1887
        %v2411 = vadd.f32 %v2283, %v1889
        %v2412 = vadd.f32 %v2284, %v1892
        %v2413 = vadd.f32 %v2285, %v1894
        %v2414 = vadd.f32 %v2286, %v1897
        %v2415 = vadd.f32 %v2287, %v1899
        %v2416 = vadd.f32 %v2288, %v1902
        %v2417 = vadd.f32 %v2289, %v1904
        %v2418 = vadd.f32 %v2290, %v1907
        %v2419 = vadd.f32 %v2291, %v1909
        %v2420 = vadd.f32 %v2292, %v1912
        %v2421 = vadd.f32 %v2293, %v1914
        %v2422 = vadd.f32 %v2294, %v1917
        %v2423 = vadd.f32 %v2295, %v1919
        %v2424 = vadd.f32 %v2296, %v1922
        %v2425 = vadd.f32 %v2297, %v1924
        %v2426 = vadd.f32 %v2298, %v1927
        %v2427 = vadd.f32 %v2299, %v1929
        %v2428 = vadd.f32 %v2300, %v1932
        %v2429 = vadd.f32 %v2301, %v1934
        %v2430 = vadd.f32 %v2302, %v1937
        %v2431 = vadd.f32 %v2303, %v1939
        %v2432 = vadd.f32 %v2400, %v2368
        %v2433 = vadd.f32 %v2401, %v2369
        %v2434 = vadd.f32 %v2402, %v2370
        %v2435 = vadd.f32 %v2403, %v2371
        %v2436 = vadd.f32 %v2404, %v2372
        %v2437 = vadd.f32 %v2405, %v2373
        %v2438 = vadd.f32 %v2406, %v2374
        %v2439 = vadd.f32 %v2407, %v2375
        %v2440 = vadd.f32 %v2408, %v2376
        %v2441 = vadd.f32 %v2409, %v2377
        %v2442 = vadd.f32 %v2410, %v2378
        %v2443 = vadd.f32 %v2411, %v2379
        %v2444 = vadd.f32 %v2412, %v2380
        %v2445 = vadd.f32 %v2413, %v2381
        %v2446 = vadd.f32 %v2414, %v2382
        %v2447 = vadd.f32 %v2415, %v2383
        %v2448 = vadd.f32 %v2416, %v2384
        %v2449 = vadd.f32 %v2417, %v2385
        %v2450 = vadd.f32 %v2418, %v2386
        %v2451 = vadd.f32 %v2419, %v2387
        %v2452 = vadd.f32 %v2420, %v2388
        %v2453 = vadd.f32 %v2421, %v2389
        %v2454 = vadd.f32 %v2422, %v2390
        %v2455 = vadd.f32 %v2423, %v2391
        %v2456 = vadd.f32 %v2424, %v2392
        %v2457 = vadd.f32 %v2425, %v2393
        %v2458 = vadd.f32 %v2426, %v2394
        %v2459 = vadd.f32 %v2427, %v2395
        %v2460 = vadd.f32 %v2428, %v2396
        %v2461 = vadd.f32 %v2429, %v2397
        %v2462 = vadd.f32 %v2430, %v2398
        %v2463 = vadd.f32 %v2431, %v2399
        %v2464 = vld [vmem:[%s3] sm:$0x1]
        %v2466 = vperm.slane %v2464, 0
        %v2468 = vmul.f32 %v2432, %v2466
        %v2469 = vmul.f32 %v2433, %v2466
        %v2470 = vmul.f32 %v2434, %v2466
        %v2471 = vmul.f32 %v2435, %v2466
        %v2472 = vmul.f32 %v2436, %v2466
        %v2473 = vmul.f32 %v2437, %v2466
        %v2474 = vmul.f32 %v2438, %v2466
        %v2475 = vmul.f32 %v2439, %v2466
        %v2476 = vmul.f32 %v2440, %v2466
        %v2477 = vmul.f32 %v2441, %v2466
        %v2478 = vmul.f32 %v2442, %v2466
        %v2479 = vmul.f32 %v2443, %v2466
        %v2480 = vmul.f32 %v2444, %v2466
        %v2481 = vmul.f32 %v2445, %v2466
        %v2482 = vmul.f32 %v2446, %v2466
        %v2483 = vmul.f32 %v2447, %v2466
        %v2484 = vmul.f32 %v2448, %v2466
        %v2485 = vmul.f32 %v2449, %v2466
        %v2486 = vmul.f32 %v2450, %v2466
        %v2487 = vmul.f32 %v2451, %v2466
        %v2488 = vmul.f32 %v2452, %v2466
        %v2489 = vmul.f32 %v2453, %v2466
        %v2490 = vmul.f32 %v2454, %v2466
        %v2491 = vmul.f32 %v2455, %v2466
        %v2492 = vmul.f32 %v2456, %v2466
        %v2493 = vmul.f32 %v2457, %v2466
        %v2494 = vmul.f32 %v2458, %v2466
        %v2495 = vmul.f32 %v2459, %v2466
        %v2496 = vmul.f32 %v2460, %v2466
        %v2497 = vmul.f32 %v2461, %v2466
        %v2498 = vmul.f32 %v2462, %v2466
        %v2499 = vmul.f32 %v2463, %v2466
        %v2500 = vld [vmem:[%s4] sm:$0x1]
        %v2502 = vperm.slane %v2500, 0
        %v2504 = vadd.f32 %v2468, %v2502
        %v2505 = vadd.f32 %v2469, %v2502
        %v2506 = vadd.f32 %v2470, %v2502
        %v2507 = vadd.f32 %v2471, %v2502
        %v2508 = vadd.f32 %v2472, %v2502
        %v2509 = vadd.f32 %v2473, %v2502
        %v2510 = vadd.f32 %v2474, %v2502
        %v2511 = vadd.f32 %v2475, %v2502
        %v2512 = vadd.f32 %v2476, %v2502
        %v2513 = vadd.f32 %v2477, %v2502
        %v2514 = vadd.f32 %v2478, %v2502
        %v2515 = vadd.f32 %v2479, %v2502
        %v2516 = vadd.f32 %v2480, %v2502
        %v2517 = vadd.f32 %v2481, %v2502
        %v2518 = vadd.f32 %v2482, %v2502
        %v2519 = vadd.f32 %v2483, %v2502
        %v2520 = vadd.f32 %v2484, %v2502
        %v2521 = vadd.f32 %v2485, %v2502
        %v2522 = vadd.f32 %v2486, %v2502
        %v2523 = vadd.f32 %v2487, %v2502
        %v2524 = vadd.f32 %v2488, %v2502
        %v2525 = vadd.f32 %v2489, %v2502
        %v2526 = vadd.f32 %v2490, %v2502
        %v2527 = vadd.f32 %v2491, %v2502
        %v2528 = vadd.f32 %v2492, %v2502
        %v2529 = vadd.f32 %v2493, %v2502
        %v2530 = vadd.f32 %v2494, %v2502
        %v2531 = vadd.f32 %v2495, %v2502
        %v2532 = vadd.f32 %v2496, %v2502
        %v2533 = vadd.f32 %v2497, %v2502
        %v2534 = vadd.f32 %v2498, %v2502
        %v2535 = vadd.f32 %v2499, %v2502
        %v2536 = vmax.f32 %v2504, 0.0
        %v2537 = vmax.f32 %v2505, 0.0
        %v2538 = vmax.f32 %v2506, 0.0
        %v2539 = vmax.f32 %v2507, 0.0
        %v2540 = vmax.f32 %v2508, 0.0
        %v2541 = vmax.f32 %v2509, 0.0
        %v2542 = vmax.f32 %v2510, 0.0
        %v2543 = vmax.f32 %v2511, 0.0
        %v2544 = vmax.f32 %v2512, 0.0
        %v2545 = vmax.f32 %v2513, 0.0
        %v2546 = vmax.f32 %v2514, 0.0
        %v2547 = vmax.f32 %v2515, 0.0
        %v2548 = vmax.f32 %v2516, 0.0
        %v2549 = vmax.f32 %v2517, 0.0
        %v2550 = vmax.f32 %v2518, 0.0
        %v2551 = vmax.f32 %v2519, 0.0
        %v2552 = vmax.f32 %v2520, 0.0
        %v2553 = vmax.f32 %v2521, 0.0
        %v2554 = vmax.f32 %v2522, 0.0
        %v2555 = vmax.f32 %v2523, 0.0
        %v2556 = vmax.f32 %v2524, 0.0
        %v2557 = vmax.f32 %v2525, 0.0
        %v2558 = vmax.f32 %v2526, 0.0
        %v2559 = vmax.f32 %v2527, 0.0
        %v2560 = vmax.f32 %v2528, 0.0
        %v2561 = vmax.f32 %v2529, 0.0
        %v2562 = vmax.f32 %v2530, 0.0
        %v2563 = vmax.f32 %v2531, 0.0
        %v2564 = vmax.f32 %v2532, 0.0
        %v2565 = vmax.f32 %v2533, 0.0
        %v2566 = vmax.f32 %v2534, 0.0
        %v2567 = vmax.f32 %v2535, 0.0
        %v2568 = vrot.slane %v2536, 7
        %v2569 = vrot.slane %v2537, 7
        %v2570 = vrot.slane %v2538, 7
        %v2571 = vrot.slane %v2539, 7
        %v2572 = vrot.slane %v2540, 7
        %v2573 = vrot.slane %v2541, 7
        %v2574 = vrot.slane %v2542, 7
        %v2575 = vrot.slane %v2543, 7
        %v2576 = vrot.slane %v2544, 7
        %v2577 = vrot.slane %v2545, 7
        %v2578 = vrot.slane %v2546, 7
        %v2579 = vrot.slane %v2547, 7
        %v2580 = vrot.slane %v2548, 7
        %v2581 = vrot.slane %v2549, 7
        %v2582 = vrot.slane %v2550, 7
        %v2583 = vrot.slane %v2551, 7
        %v2584 = vrot.slane %v2552, 7
        %v2585 = vrot.slane %v2553, 7
        %v2586 = vrot.slane %v2554, 7
        %v2587 = vrot.slane %v2555, 7
        %v2588 = vrot.slane %v2556, 7
        %v2589 = vrot.slane %v2557, 7
        %v2590 = vrot.slane %v2558, 7
        %v2591 = vrot.slane %v2559, 7
        %v2592 = vrot.slane %v2560, 7
        %v2593 = vrot.slane %v2561, 7
        %v2594 = vrot.slane %v2562, 7
        %v2595 = vrot.slane %v2563, 7
        %v2596 = vrot.slane %v2564, 7
        %v2597 = vrot.slane %v2565, 7
        %v2598 = vrot.slane %v2566, 7
        %v2599 = vrot.slane %v2567, 7
        %v2600 = vsel %vm589, %v2598, %v2599
        %v2601 = vsel %vm589, %v2597, %v2598
        %v2602 = vsel %vm589, %v2596, %v2597
        %v2603 = vsel %vm589, %v2595, %v2596
        %v2604 = vsel %vm589, %v2594, %v2595
        %v2605 = vsel %vm589, %v2593, %v2594
        %v2606 = vsel %vm589, %v2592, %v2593
        %v2607 = vsel %vm589, %v2591, %v2592
        %v2608 = vsel %vm589, %v2590, %v2591
        %v2609 = vsel %vm589, %v2589, %v2590
        %v2610 = vsel %vm589, %v2588, %v2589
        %v2611 = vsel %vm589, %v2587, %v2588
        %v2612 = vsel %vm589, %v2586, %v2587
        %v2613 = vsel %vm589, %v2585, %v2586
        %v2614 = vsel %vm589, %v2584, %v2585
        %v2615 = vsel %vm589, %v2583, %v2584
        %v2616 = vsel %vm589, %v2582, %v2583
        %v2617 = vsel %vm589, %v2581, %v2582
        %v2618 = vsel %vm589, %v2580, %v2581
        %v2619 = vsel %vm589, %v2579, %v2580
        %v2620 = vsel %vm589, %v2578, %v2579
        %v2621 = vsel %vm589, %v2577, %v2578
        %v2622 = vsel %vm589, %v2576, %v2577
        %v2623 = vsel %vm589, %v2575, %v2576
        %v2624 = vsel %vm589, %v2574, %v2575
        %v2625 = vsel %vm589, %v2573, %v2574
        %v2626 = vsel %vm589, %v2572, %v2573
        %v2627 = vsel %vm589, %v2571, %v2572
        %v2628 = vsel %vm589, %v2570, %v2571
        %v2629 = vsel %vm589, %v2569, %v2570
        %v2630 = vsel %vm589, %v2568, %v2569
        %v2631 = vsel %vm589, %v2599, %v2568
        %v2632 = vsel %vm654, %v2631, 0.0
        %v2633 = vsel %vm655, %v2630, 0.0
        %v2634 = vsel %vm656, %v2629, 0.0
        %v2635 = vsel %vm657, %v2628, 0.0
        %v2636 = vsel %vm658, %v2627, 0.0
        %v2637 = vsel %vm659, %v2626, 0.0
        %v2638 = vsel %vm660, %v2625, 0.0
        %v2639 = vsel %vm661, %v2624, 0.0
        %v2640 = vsel %vm662, %v2623, 0.0
        %v2641 = vsel %vm663, %v2622, 0.0
        %v2642 = vsel %vm664, %v2621, 0.0
        %v2643 = vsel %vm665, %v2620, 0.0
        %v2644 = vsel %vm666, %v2619, 0.0
        %v2645 = vsel %vm667, %v2618, 0.0
        %v2646 = vsel %vm668, %v2617, 0.0
        %v2647 = vsel %vm669, %v2616, 0.0
        %v2648 = vsel %vm670, %v2615, 0.0
        %v2649 = vsel %vm671, %v2614, 0.0
        %v2650 = vsel %vm672, %v2613, 0.0
        %v2651 = vsel %vm673, %v2612, 0.0
        %v2652 = vsel %vm674, %v2611, 0.0
        %v2653 = vsel %vm675, %v2610, 0.0
        %v2654 = vsel %vm676, %v2609, 0.0
        %v2655 = vsel %vm677, %v2608, 0.0
        %v2656 = vsel %vm678, %v2607, 0.0
        %v2657 = vsel %vm679, %v2606, 0.0
        %v2658 = vsel %vm680, %v2605, 0.0
        %v2659 = vsel %vm681, %v2604, 0.0
        %v2660 = vsel %vm682, %v2603, 0.0
        %v2661 = vsel %vm683, %v2602, 0.0
        %v2662 = vsel %vm684, %v2601, 0.0
        %v2663 = vsel %vm685, %v2600, 0.0
        %v2664 = vrot.slane %v2536, 1
        %v2665 = vrot.slane %v2537, 1
        %v2666 = vrot.slane %v2538, 1
        %v2667 = vrot.slane %v2539, 1
        %v2668 = vrot.slane %v2540, 1
        %v2669 = vrot.slane %v2541, 1
        %v2670 = vrot.slane %v2542, 1
        %v2671 = vrot.slane %v2543, 1
        %v2672 = vrot.slane %v2544, 1
        %v2673 = vrot.slane %v2545, 1
        %v2674 = vrot.slane %v2546, 1
        %v2675 = vrot.slane %v2547, 1
        %v2676 = vrot.slane %v2548, 1
        %v2677 = vrot.slane %v2549, 1
        %v2678 = vrot.slane %v2550, 1
        %v2679 = vrot.slane %v2551, 1
        %v2680 = vrot.slane %v2552, 1
        %v2681 = vrot.slane %v2553, 1
        %v2682 = vrot.slane %v2554, 1
        %v2683 = vrot.slane %v2555, 1
        %v2684 = vrot.slane %v2556, 1
        %v2685 = vrot.slane %v2557, 1
        %v2686 = vrot.slane %v2558, 1
        %v2687 = vrot.slane %v2559, 1
        %v2688 = vrot.slane %v2560, 1
        %v2689 = vrot.slane %v2561, 1
        %v2690 = vrot.slane %v2562, 1
        %v2691 = vrot.slane %v2563, 1
        %v2692 = vrot.slane %v2564, 1
        %v2693 = vrot.slane %v2565, 1
        %v2694 = vrot.slane %v2566, 1
        %v2695 = vrot.slane %v2567, 1
        %v2696 = vsel %vm750, %v2694, %v2695
        %v2697 = vsel %vm750, %v2693, %v2694
        %v2698 = vsel %vm750, %v2692, %v2693
        %v2699 = vsel %vm750, %v2691, %v2692
        %v2700 = vsel %vm750, %v2690, %v2691
        %v2701 = vsel %vm750, %v2689, %v2690
        %v2702 = vsel %vm750, %v2688, %v2689
        %v2703 = vsel %vm750, %v2687, %v2688
        %v2704 = vsel %vm750, %v2686, %v2687
        %v2705 = vsel %vm750, %v2685, %v2686
        %v2706 = vsel %vm750, %v2684, %v2685
        %v2707 = vsel %vm750, %v2683, %v2684
        %v2708 = vsel %vm750, %v2682, %v2683
        %v2709 = vsel %vm750, %v2681, %v2682
        %v2710 = vsel %vm750, %v2680, %v2681
        %v2711 = vsel %vm750, %v2679, %v2680
        %v2712 = vsel %vm750, %v2678, %v2679
        %v2713 = vsel %vm750, %v2677, %v2678
        %v2714 = vsel %vm750, %v2676, %v2677
        %v2715 = vsel %vm750, %v2675, %v2676
        %v2716 = vsel %vm750, %v2674, %v2675
        %v2717 = vsel %vm750, %v2673, %v2674
        %v2718 = vsel %vm750, %v2672, %v2673
        %v2719 = vsel %vm750, %v2671, %v2672
        %v2720 = vsel %vm750, %v2670, %v2671
        %v2721 = vsel %vm750, %v2669, %v2670
        %v2722 = vsel %vm750, %v2668, %v2669
        %v2723 = vsel %vm750, %v2667, %v2668
        %v2724 = vsel %vm750, %v2666, %v2667
        %v2725 = vsel %vm750, %v2665, %v2666
        %v2726 = vsel %vm750, %v2664, %v2665
        %v2727 = vsel %vm750, %v2695, %v2664
        %v2728 = vsel %vm815, %v2726, 0.0
        %v2729 = vsel %vm816, %v2725, 0.0
        %v2730 = vsel %vm817, %v2724, 0.0
        %v2731 = vsel %vm818, %v2723, 0.0
        %v2732 = vsel %vm819, %v2722, 0.0
        %v2733 = vsel %vm820, %v2721, 0.0
        %v2734 = vsel %vm821, %v2720, 0.0
        %v2735 = vsel %vm822, %v2719, 0.0
        %v2736 = vsel %vm823, %v2718, 0.0
        %v2737 = vsel %vm824, %v2717, 0.0
        %v2738 = vsel %vm825, %v2716, 0.0
        %v2739 = vsel %vm826, %v2715, 0.0
        %v2740 = vsel %vm827, %v2714, 0.0
        %v2741 = vsel %vm828, %v2713, 0.0
        %v2742 = vsel %vm829, %v2712, 0.0
        %v2743 = vsel %vm830, %v2711, 0.0
        %v2744 = vsel %vm831, %v2710, 0.0
        %v2745 = vsel %vm832, %v2709, 0.0
        %v2746 = vsel %vm833, %v2708, 0.0
        %v2747 = vsel %vm834, %v2707, 0.0
        %v2748 = vsel %vm835, %v2706, 0.0
        %v2749 = vsel %vm836, %v2705, 0.0
        %v2750 = vsel %vm837, %v2704, 0.0
        %v2751 = vsel %vm838, %v2703, 0.0
        %v2752 = vsel %vm839, %v2702, 0.0
        %v2753 = vsel %vm840, %v2701, 0.0
        %v2754 = vsel %vm841, %v2700, 0.0
        %v2755 = vsel %vm842, %v2699, 0.0
        %v2756 = vsel %vm843, %v2698, 0.0
        %v2757 = vsel %vm844, %v2697, 0.0
        %v2758 = vsel %vm845, %v2696, 0.0
        %v2759 = vsel %vm846, %v2727, 0.0
        %v2760 = vpack.c.bf16 %v2633, %v2632
        %v2761 = vpack.c.bf16 %v2537, %v2536
        %v2762 = vpack.c.bf16 %v2729, %v2728
        %v2763 = vpack.c.bf16 %v2635, %v2634
        %v2764 = vpack.c.bf16 %v2539, %v2538
        %v2765 = vpack.c.bf16 %v2731, %v2730
        %v2766 = vpack.c.bf16 %v2637, %v2636
        %v2767 = vpack.c.bf16 %v2541, %v2540
        %v2768 = vpack.c.bf16 %v2733, %v2732
        %v2769 = vpack.c.bf16 %v2639, %v2638
        %v2770 = vpack.c.bf16 %v2543, %v2542
        %v2771 = vpack.c.bf16 %v2735, %v2734
        %v2772 = vpack.c.bf16 %v2641, %v2640
        %v2773 = vpack.c.bf16 %v2545, %v2544
        %v2774 = vpack.c.bf16 %v2737, %v2736
        %v2775 = vpack.c.bf16 %v2643, %v2642
        %v2776 = vpack.c.bf16 %v2547, %v2546
        %v2777 = vpack.c.bf16 %v2739, %v2738
        %v2778 = vpack.c.bf16 %v2645, %v2644
        %v2779 = vpack.c.bf16 %v2549, %v2548
        %v2780 = vpack.c.bf16 %v2741, %v2740
        %v2781 = vpack.c.bf16 %v2647, %v2646
        %v2782 = vpack.c.bf16 %v2551, %v2550
        %v2783 = vpack.c.bf16 %v2743, %v2742
        %v2784 = vpack.c.bf16 %v2649, %v2648
        %v2785 = vpack.c.bf16 %v2553, %v2552
        %v2786 = vpack.c.bf16 %v2745, %v2744
        %v2787 = vpack.c.bf16 %v2651, %v2650
        %v2788 = vpack.c.bf16 %v2555, %v2554
        %v2789 = vpack.c.bf16 %v2747, %v2746
        %v2790 = vpack.c.bf16 %v2653, %v2652
        %v2791 = vpack.c.bf16 %v2557, %v2556
        %v2792 = vpack.c.bf16 %v2749, %v2748
        %v2793 = vpack.c.bf16 %v2655, %v2654
        %v2794 = vpack.c.bf16 %v2559, %v2558
        %v2795 = vpack.c.bf16 %v2751, %v2750
        %v2796 = vpack.c.bf16 %v2657, %v2656
        %v2797 = vpack.c.bf16 %v2561, %v2560
        %v2798 = vpack.c.bf16 %v2753, %v2752
        %v2799 = vpack.c.bf16 %v2659, %v2658
        %v2800 = vpack.c.bf16 %v2563, %v2562
        %v2801 = vpack.c.bf16 %v2755, %v2754
        %v2802 = vpack.c.bf16 %v2661, %v2660
        %v2803 = vpack.c.bf16 %v2565, %v2564
        %v2804 = vpack.c.bf16 %v2757, %v2756
        %v2805 = vpack.c.bf16 %v2663, %v2662
        %v2806 = vpack.c.bf16 %v2567, %v2566
        %v2807 = vpack.c.bf16 %v2759, %v2758
        %v2808 = vld [vmem:[#allocation7] sm:$0xff]
        %v2809 = vld [vmem:[#allocation7 + $0x8] sm:$0xf]
        %v2810 = vld [vmem:[#allocation7 + $0xc] sm:$0xff]
        %v2811 = vld [vmem:[#allocation7 + $0x14] sm:$0xf]
        %v2812 = vld [vmem:[#allocation7 + $0x18] sm:$0xff]
        %v2813 = vld [vmem:[#allocation7 + $0x20] sm:$0xf]
        %v2814 = vld [vmem:[#allocation7 + $0x24] sm:$0xff]
        %v2815 = vld [vmem:[#allocation7 + $0x2c] sm:$0xf]
        %v2816 = vld [vmem:[#allocation7 + $0x30] sm:$0xff]
        %v2817 = vld [vmem:[#allocation7 + $0x38] sm:$0xf]
        %v2818 = vld [vmem:[#allocation7 + $0x3c] sm:$0xff]
        %v2819 = vld [vmem:[#allocation7 + $0x44] sm:$0xf]
        %v2820 = vld [vmem:[#allocation7 + $0x48] sm:$0xff]
        %v2821 = vld [vmem:[#allocation7 + $0x50] sm:$0xf]
        %v2822 = vld [vmem:[#allocation7 + $0x54] sm:$0xff]
        %v2823 = vld [vmem:[#allocation7 + $0x5c] sm:$0xf]
        %v2824 = vld [vmem:[#allocation7 + $0x60] sm:$0xff]
        %v2825 = vld [vmem:[#allocation7 + $0x68] sm:$0xf]
        %v2826 = vld [vmem:[#allocation7 + $0x6c] sm:$0xff]
        %v2827 = vld [vmem:[#allocation7 + $0x74] sm:$0xf]
        %v2828 = vld [vmem:[#allocation7 + $0x78] sm:$0xff]
        %v2829 = vld [vmem:[#allocation7 + $0x80] sm:$0xf]
        %v2830 = vld [vmem:[#allocation7 + $0x84] sm:$0xff]
        %v2831 = vld [vmem:[#allocation7 + $0x8c] sm:$0xf]
        %v2832 = vld [vmem:[#allocation7 + $0x90] sm:$0xff]
        %v2833 = vld [vmem:[#allocation7 + $0x98] sm:$0xf]
        %v2834 = vld [vmem:[#allocation7 + $0x9c] sm:$0xff]
        %v2835 = vld [vmem:[#allocation7 + $0xa4] sm:$0xf]
        %v2836 = vld [vmem:[#allocation7 + $0xa8] sm:$0xff]
        %v2837 = vld [vmem:[#allocation7 + $0xb0] sm:$0xf]
        %v2838 = vld [vmem:[#allocation7 + $0xb4] sm:$0xff]
        %v2839 = vld [vmem:[#allocation7 + $0xbc] sm:$0xf]
        %v2840 = vld [vmem:[#allocation7 + $0xc0] sm:$0xff]
        %v2841 = vld [vmem:[#allocation7 + $0xc8] sm:$0xf]
        %v2842 = vld [vmem:[#allocation7 + $0xcc] sm:$0xff]
        %v2843 = vld [vmem:[#allocation7 + $0xd4] sm:$0xf]
        %v2844 = vld [vmem:[#allocation7 + $0xd8] sm:$0xff]
        %v2845 = vld [vmem:[#allocation7 + $0xe0] sm:$0xf]
        %v2846 = vld [vmem:[#allocation7 + $0xe4] sm:$0xff]
        %v2847 = vld [vmem:[#allocation7 + $0xec] sm:$0xf]
        %v2848 = vld [vmem:[#allocation7 + $0xf0] sm:$0xff]
        %v2849 = vld [vmem:[#allocation7 + $0xf8] sm:$0xf]
        %v2850 = vld [vmem:[#allocation7 + $0xfc] sm:$0xff]
        %v2851 = vld [vmem:[#allocation7 + $0x104] sm:$0xf]
        %v2852 = vld [vmem:[#allocation7 + $0x108] sm:$0xff]
        %v2853 = vld [vmem:[#allocation7 + $0x110] sm:$0xf]
        %v2854 = vld [vmem:[#allocation7 + $0x114] sm:$0xff]
        %v2855 = vld [vmem:[#allocation7 + $0x11c] sm:$0xf]
        %v2856 = vld [vmem:[#allocation7 + $0x120] sm:$0xff]
        %v2857 = vld [vmem:[#allocation7 + $0x128] sm:$0xf]
        %v2858 = vld [vmem:[#allocation7 + $0x12c] sm:$0xff]
        %v2859 = vld [vmem:[#allocation7 + $0x134] sm:$0xf]
        %v2860 = vld [vmem:[#allocation7 + $0x138] sm:$0xff]
        %v2861 = vld [vmem:[#allocation7 + $0x140] sm:$0xf]
        %v2862 = vld [vmem:[#allocation7 + $0x144] sm:$0xff]
        %v2863 = vld [vmem:[#allocation7 + $0x14c] sm:$0xf]
        %v2864 = vld [vmem:[#allocation7 + $0x150] sm:$0xff]
        %v2865 = vld [vmem:[#allocation7 + $0x158] sm:$0xf]
        %v2866 = vld [vmem:[#allocation7 + $0x15c] sm:$0xff]
        %v2867 = vld [vmem:[#allocation7 + $0x164] sm:$0xf]
        %v2868 = vld [vmem:[#allocation7 + $0x168] sm:$0xff]
        %v2869 = vld [vmem:[#allocation7 + $0x170] sm:$0xf]
        %v2870 = vld [vmem:[#allocation7 + $0x174] sm:$0xff]
        %v2871 = vld [vmem:[#allocation7 + $0x17c] sm:$0xf]
        %v2872 = vld [vmem:[#allocation7 + $0x180] sm:$0xff]
        %v2873 = vld [vmem:[#allocation7 + $0x188] sm:$0xf]
        %v2874 = vld [vmem:[#allocation7 + $0x18c] sm:$0xff]
        %v2875 = vld [vmem:[#allocation7 + $0x194] sm:$0xf]
        %v2876 = vld [vmem:[#allocation7 + $0x198] sm:$0xff]
        %v2877 = vld [vmem:[#allocation7 + $0x1a0] sm:$0xf]
        %v2878 = vld [vmem:[#allocation7 + $0x1a4] sm:$0xff]
        %v2879 = vld [vmem:[#allocation7 + $0x1ac] sm:$0xf]
        %v2880 = vld [vmem:[#allocation7 + $0x1b0] sm:$0xff]
        %v2881 = vld [vmem:[#allocation7 + $0x1b8] sm:$0xf]
        %v2882 = vld [vmem:[#allocation7 + $0x1bc] sm:$0xff]
        %v2883 = vld [vmem:[#allocation7 + $0x1c4] sm:$0xf]
        %v2884 = vld [vmem:[#allocation7 + $0x1c8] sm:$0xff]
        %v2885 = vld [vmem:[#allocation7 + $0x1d0] sm:$0xf]
        %v2886 = vld [vmem:[#allocation7 + $0x1d4] sm:$0xff]
        %v2887 = vld [vmem:[#allocation7 + $0x1dc] sm:$0xf]
        %v2888 = vld [vmem:[#allocation7 + $0x1e0] sm:$0xff]
        %v2889 = vld [vmem:[#allocation7 + $0x1e8] sm:$0xf]
        %v2890 = vld [vmem:[#allocation7 + $0x1ec] sm:$0xff]
        %v2891 = vld [vmem:[#allocation7 + $0x1f4] sm:$0xf]
        %v2892 = vld [vmem:[#allocation7 + $0x1f8] sm:$0xff]
        %v2893 = vld [vmem:[#allocation7 + $0x200] sm:$0xf]
        %v2894 = vld [vmem:[#allocation7 + $0x204] sm:$0xff]
        %v2895 = vld [vmem:[#allocation7 + $0x20c] sm:$0xf]
        %v2896 = vld [vmem:[#allocation7 + $0x210] sm:$0xff]
        %v2897 = vld [vmem:[#allocation7 + $0x218] sm:$0xf]
        %v2898 = vld [vmem:[#allocation7 + $0x21c] sm:$0xff]
        %v2899 = vld [vmem:[#allocation7 + $0x224] sm:$0xf]
        %v2900 = vld [vmem:[#allocation7 + $0x228] sm:$0xff]
        %v2901 = vld [vmem:[#allocation7 + $0x230] sm:$0xf]
        %v2902 = vld [vmem:[#allocation7 + $0x234] sm:$0xff]
        %v2903 = vld [vmem:[#allocation7 + $0x23c] sm:$0xf]
        %v3000 = vunpack.c.l.b16 %v2808
        %v3001 = vunpack.c.h.b16 %v2808
        %v3002 = vunpack.c.l.b16 %v2809
        %v3003 = vunpack.c.l.b16 %v2810
        %v3004 = vunpack.c.h.b16 %v2810
        %v3005 = vunpack.c.l.b16 %v2811
        %v3006 = vunpack.c.l.b16 %v2812
        %v3007 = vunpack.c.h.b16 %v2812
        %v3008 = vunpack.c.l.b16 %v2813
        %v3009 = vunpack.c.l.b16 %v2814
        %v3010 = vunpack.c.h.b16 %v2814
        %v3011 = vunpack.c.l.b16 %v2815
        %v3012 = vunpack.c.l.b16 %v2816
        %v3013 = vunpack.c.h.b16 %v2816
        %v3014 = vunpack.c.l.b16 %v2817
        %v3015 = vunpack.c.l.b16 %v2818
        %v3016 = vunpack.c.h.b16 %v2818
        %v3017 = vunpack.c.l.b16 %v2819
        %v3018 = vunpack.c.l.b16 %v2820
        %v3019 = vunpack.c.h.b16 %v2820
        %v3020 = vunpack.c.l.b16 %v2821
        %v3021 = vunpack.c.l.b16 %v2822
        %v3022 = vunpack.c.h.b16 %v2822
        %v3023 = vunpack.c.l.b16 %v2823
        %v3024 = vunpack.c.l.b16 %v2824
        %v3025 = vunpack.c.h.b16 %v2824
        %v3026 = vunpack.c.l.b16 %v2825
        %v3027 = vunpack.c.l.b16 %v2826
        %v3028 = vunpack.c.h.b16 %v2826
        %v3029 = vunpack.c.l.b16 %v2827
        %v3030 = vunpack.c.l.b16 %v2828
        %v3031 = vunpack.c.h.b16 %v2828
        %v3032 = vunpack.c.l.b16 %v2829
        %v3033 = vunpack.c.l.b16 %v2830
        %v3034 = vunpack.c.h.b16 %v2830
        %v3035 = vunpack.c.l.b16 %v2831
        %v3036 = vunpack.c.l.b16 %v2832
        %v3037 = vunpack.c.h.b16 %v2832
        %v3038 = vunpack.c.l.b16 %v2833
        %v3039 = vunpack.c.l.b16 %v2834
        %v3040 = vunpack.c.h.b16 %v2834
        %v3041 = vunpack.c.l.b16 %v2835
        %v3042 = vunpack.c.l.b16 %v2836
        %v3043 = vunpack.c.h.b16 %v2836
        %v3044 = vunpack.c.l.b16 %v2837
        %v3045 = vunpack.c.l.b16 %v2838
        %v3046 = vunpack.c.h.b16 %v2838
        %v3047 = vunpack.c.l.b16 %v2839
        %v3048 = vunpack.c.l.b16 %v2840
        %v3049 = vunpack.c.h.b16 %v2840
        %v3050 = vunpack.c.l.b16 %v2841
        %v3051 = vunpack.c.l.b16 %v2842
        %v3052 = vunpack.c.h.b16 %v2842
        %v3053 = vunpack.c.l.b16 %v2843
        %v3054 = vunpack.c.l.b16 %v2844
        %v3055 = vunpack.c.h.b16 %v2844
        %v3056 = vunpack.c.l.b16 %v2845
        %v3057 = vunpack.c.l.b16 %v2846
        %v3058 = vunpack.c.h.b16 %v2846
        %v3059 = vunpack.c.l.b16 %v2847
        %v3060 = vunpack.c.l.b16 %v2848
        %v3061 = vunpack.c.h.b16 %v2848
        %v3062 = vunpack.c.l.b16 %v2849
        %v3063 = vunpack.c.l.b16 %v2850
        %v3064 = vunpack.c.h.b16 %v2850
        %v3065 = vunpack.c.l.b16 %v2851
        %v3066 = vunpack.c.l.b16 %v2852
        %v3067 = vunpack.c.h.b16 %v2852
        %v3068 = vunpack.c.l.b16 %v2853
        %v3069 = vunpack.c.l.b16 %v2854
        %v3070 = vunpack.c.h.b16 %v2854
        %v3071 = vunpack.c.l.b16 %v2855
        %v3072 = vunpack.c.l.b16 %v2856
        %v3073 = vunpack.c.h.b16 %v2856
        %v3074 = vunpack.c.l.b16 %v2857
        %v3075 = vunpack.c.l.b16 %v2858
        %v3076 = vunpack.c.h.b16 %v2858
        %v3077 = vunpack.c.l.b16 %v2859
        %v3078 = vunpack.c.l.b16 %v2860
        %v3079 = vunpack.c.h.b16 %v2860
        %v3080 = vunpack.c.l.b16 %v2861
        %v3081 = vunpack.c.l.b16 %v2862
        %v3082 = vunpack.c.h.b16 %v2862
        %v3083 = vunpack.c.l.b16 %v2863
        %v3084 = vunpack.c.l.b16 %v2864
        %v3085 = vunpack.c.h.b16 %v2864
        %v3086 = vunpack.c.l.b16 %v2865
        %v3087 = vunpack.c.l.b16 %v2866
        %v3088 = vunpack.c.h.b16 %v2866
        %v3089 = vunpack.c.l.b16 %v2867
        %v3090 = vunpack.c.l.b16 %v2868
        %v3091 = vunpack.c.h.b16 %v2868
        %v3092 = vunpack.c.l.b16 %v2869
        %v3093 = vunpack.c.l.b16 %v2870
        %v3094 = vunpack.c.h.b16 %v2870
        %v3095 = vunpack.c.l.b16 %v2871
        %v3096 = vunpack.c.l.b16 %v2872
        %v3097 = vunpack.c.h.b16 %v2872
        %v3098 = vunpack.c.l.b16 %v2873
        %v3099 = vunpack.c.l.b16 %v2874
        %v3100 = vunpack.c.h.b16 %v2874
        %v3101 = vunpack.c.l.b16 %v2875
        %v3102 = vunpack.c.l.b16 %v2876
        %v3103 = vunpack.c.h.b16 %v2876
        %v3104 = vunpack.c.l.b16 %v2877
        %v3105 = vunpack.c.l.b16 %v2878
        %v3106 = vunpack.c.h.b16 %v2878
        %v3107 = vunpack.c.l.b16 %v2879
        %v3108 = vunpack.c.l.b16 %v2880
        %v3109 = vunpack.c.h.b16 %v2880
        %v3110 = vunpack.c.l.b16 %v2881
        %v3111 = vunpack.c.l.b16 %v2882
        %v3112 = vunpack.c.h.b16 %v2882
        %v3113 = vunpack.c.l.b16 %v2883
        %v3114 = vunpack.c.l.b16 %v2884
        %v3115 = vunpack.c.h.b16 %v2884
        %v3116 = vunpack.c.l.b16 %v2885
        %v3117 = vunpack.c.l.b16 %v2886
        %v3118 = vunpack.c.h.b16 %v2886
        %v3119 = vunpack.c.l.b16 %v2887
        %v3120 = vunpack.c.l.b16 %v2888
        %v3121 = vunpack.c.h.b16 %v2888
        %v3122 = vunpack.c.l.b16 %v2889
        %v3123 = vunpack.c.l.b16 %v2890
        %v3124 = vunpack.c.h.b16 %v2890
        %v3125 = vunpack.c.l.b16 %v2891
        %v3126 = vunpack.c.l.b16 %v2892
        %v3127 = vunpack.c.h.b16 %v2892
        %v3128 = vunpack.c.l.b16 %v2893
        %v3129 = vunpack.c.l.b16 %v2894
        %v3130 = vunpack.c.h.b16 %v2894
        %v3131 = vunpack.c.l.b16 %v2895
        %v3132 = vunpack.c.l.b16 %v2896
        %v3133 = vunpack.c.h.b16 %v2896
        %v3134 = vunpack.c.l.b16 %v2897
        %v3135 = vunpack.c.l.b16 %v2898
        %v3136 = vunpack.c.h.b16 %v2898
        %v3137 = vunpack.c.l.b16 %v2899
        %v3138 = vunpack.c.l.b16 %v2900
        %v3139 = vunpack.c.h.b16 %v2900
        %v3140 = vunpack.c.l.b16 %v2901
        %v3141 = vunpack.c.l.b16 %v2902
        %v3142 = vunpack.c.h.b16 %v2902
        %v3143 = vunpack.c.l.b16 %v2903
        %v3144 = vpack.c.b16 %v3003, %v3000
        %v3145 = vpack.c.b16 %v3004, %v3001
        %v3146 = vpack.c.b16 %v3005, %v3002
        %v3147 = vpack.c.b16 %v3009, %v3006
        %v3148 = vpack.c.b16 %v3010, %v3007
        %v3149 = vpack.c.b16 %v3011, %v3008
        %v3150 = vpack.c.b16 %v3015, %v3012
        %v3151 = vpack.c.b16 %v3016, %v3013
        %v3152 = vpack.c.b16 %v3017, %v3014
        %v3153 = vpack.c.b16 %v3021, %v3018
        %v3154 = vpack.c.b16 %v3022, %v3019
        %v3155 = vpack.c.b16 %v3023, %v3020
        %v3156 = vpack.c.b16 %v3027, %v3024
        %v3157 = vpack.c.b16 %v3028, %v3025
        %v3158 = vpack.c.b16 %v3029, %v3026
        %v3159 = vpack.c.b16 %v3033, %v3030
        %v3160 = vpack.c.b16 %v3034, %v3031
        %v3161 = vpack.c.b16 %v3035, %v3032
        %v3162 = vpack.c.b16 %v3039, %v3036
        %v3163 = vpack.c.b16 %v3040, %v3037
        %v3164 = vpack.c.b16 %v3041, %v3038
        %v3165 = vpack.c.b16 %v3045, %v3042
        %v3166 = vpack.c.b16 %v3046, %v3043
        %v3167 = vpack.c.b16 %v3047, %v3044
        %v3168 = vpack.c.b16 %v3051, %v3048
        %v3169 = vpack.c.b16 %v3052, %v3049
        %v3170 = vpack.c.b16 %v3053, %v3050
        %v3171 = vpack.c.b16 %v3057, %v3054
        %v3172 = vpack.c.b16 %v3058, %v3055
        %v3173 = vpack.c.b16 %v3059, %v3056
        %v3174 = vpack.c.b16 %v3063, %v3060
        %v3175 = vpack.c.b16 %v3064, %v3061
        %v3176 = vpack.c.b16 %v3065, %v3062
        %v3177 = vpack.c.b16 %v3069, %v3066
        %v3178 = vpack.c.b16 %v3070, %v3067
        %v3179 = vpack.c.b16 %v3071, %v3068
        %v3180 = vpack.c.b16 %v3075, %v3072
        %v3181 = vpack.c.b16 %v3076, %v3073
        %v3182 = vpack.c.b16 %v3077, %v3074
        %v3183 = vpack.c.b16 %v3081, %v3078
        %v3184 = vpack.c.b16 %v3082, %v3079
        %v3185 = vpack.c.b16 %v3083, %v3080
        %v3186 = vpack.c.b16 %v3087, %v3084
        %v3187 = vpack.c.b16 %v3088, %v3085
        %v3188 = vpack.c.b16 %v3089, %v3086
        %v3189 = vpack.c.b16 %v3093, %v3090
        %v3190 = vpack.c.b16 %v3094, %v3091
        %v3191 = vpack.c.b16 %v3095, %v3092
        %v3192 = vpack.c.b16 %v3099, %v3096
        %v3193 = vpack.c.b16 %v3100, %v3097
        %v3194 = vpack.c.b16 %v3101, %v3098
        %v3195 = vpack.c.b16 %v3105, %v3102
        %v3196 = vpack.c.b16 %v3106, %v3103
        %v3197 = vpack.c.b16 %v3107, %v3104
        %v3198 = vpack.c.b16 %v3111, %v3108
        %v3199 = vpack.c.b16 %v3112, %v3109
        %v3200 = vpack.c.b16 %v3113, %v3110
        %v3201 = vpack.c.b16 %v3117, %v3114
        %v3202 = vpack.c.b16 %v3118, %v3115
        %v3203 = vpack.c.b16 %v3119, %v3116
        %v3204 = vpack.c.b16 %v3123, %v3120
        %v3205 = vpack.c.b16 %v3124, %v3121
        %v3206 = vpack.c.b16 %v3125, %v3122
        %v3207 = vpack.c.b16 %v3129, %v3126
        %v3208 = vpack.c.b16 %v3130, %v3127
        %v3209 = vpack.c.b16 %v3131, %v3128
        %v3210 = vpack.c.b16 %v3135, %v3132
        %v3211 = vpack.c.b16 %v3136, %v3133
        %v3212 = vpack.c.b16 %v3137, %v3134
        %v3213 = vpack.c.b16 %v3141, %v3138
        %v3214 = vpack.c.b16 %v3142, %v3139
        %v3215 = vpack.c.b16 %v3143, %v3140
        %3288 = vmatpush.bf16.msra.mxu0 %v3165
        %3289 = vmatpush.bf16.msra.mxu0 %v3162
        %3290 = vmatpush.bf16.msra.mxu0 %v3159
        %3291 = vmatpush.bf16.msra.mxu0 %v3156
        %3292 = vmatpush.bf16.msra.mxu0 %v3153
        %3293 = vmatpush.bf16.msra.mxu0 %v3150
        %3294 = vmatpush.bf16.msra.mxu0 %v3147
        %3295 = vmatpush.bf16.msra.mxu0 %v3144
        %3296 = vmatmul.bf16.gmra.mxu0 %v2760
        %v3297 = vpop.f32.mrf.mxu0
        %v3298 = vadd.f32 0.0, %v3297
        %v3299 = vpop.f32.mrf.mxu0
        %v3300 = vadd.f32 0.0, %v3299
        %3301 = vmatmul.bf16.gmra.mxu0 %v2763
        %v3302 = vpop.f32.mrf.mxu0
        %v3303 = vadd.f32 0.0, %v3302
        %v3304 = vpop.f32.mrf.mxu0
        %v3305 = vadd.f32 0.0, %v3304
        %3306 = vmatmul.bf16.gmra.mxu0 %v2766
        %v3307 = vpop.f32.mrf.mxu0
        %v3308 = vadd.f32 0.0, %v3307
        %v3309 = vpop.f32.mrf.mxu0
        %v3310 = vadd.f32 0.0, %v3309
        %3311 = vmatmul.bf16.gmra.mxu0 %v2769
        %v3312 = vpop.f32.mrf.mxu0
        %v3313 = vadd.f32 0.0, %v3312
        %v3314 = vpop.f32.mrf.mxu0
        %v3315 = vadd.f32 0.0, %v3314
        %3316 = vmatmul.bf16.gmra.mxu0 %v2772
        %v3317 = vpop.f32.mrf.mxu0
        %v3318 = vadd.f32 0.0, %v3317
        %v3319 = vpop.f32.mrf.mxu0
        %v3320 = vadd.f32 0.0, %v3319
        %3321 = vmatmul.bf16.gmra.mxu0 %v2775
        %v3322 = vpop.f32.mrf.mxu0
        %v3323 = vadd.f32 0.0, %v3322
        %v3324 = vpop.f32.mrf.mxu0
        %v3325 = vadd.f32 0.0, %v3324
        %3326 = vmatmul.bf16.gmra.mxu0 %v2778
        %v3327 = vpop.f32.mrf.mxu0
        %v3328 = vadd.f32 0.0, %v3327
        %v3329 = vpop.f32.mrf.mxu0
        %v3330 = vadd.f32 0.0, %v3329
        %3331 = vmatmul.bf16.gmra.mxu0 %v2781
        %v3332 = vpop.f32.mrf.mxu0
        %v3333 = vadd.f32 0.0, %v3332
        %v3334 = vpop.f32.mrf.mxu0
        %v3335 = vadd.f32 0.0, %v3334
        %3336 = vmatmul.bf16.gmra.mxu0 %v2784
        %v3337 = vpop.f32.mrf.mxu0
        %v3338 = vadd.f32 0.0, %v3337
        %v3339 = vpop.f32.mrf.mxu0
        %v3340 = vadd.f32 0.0, %v3339
        %3341 = vmatmul.bf16.gmra.mxu0 %v2787
        %v3342 = vpop.f32.mrf.mxu0
        %v3343 = vadd.f32 0.0, %v3342
        %v3344 = vpop.f32.mrf.mxu0
        %v3345 = vadd.f32 0.0, %v3344
        %3346 = vmatmul.bf16.gmra.mxu0 %v2790
        %v3347 = vpop.f32.mrf.mxu0
        %v3348 = vadd.f32 0.0, %v3347
        %v3349 = vpop.f32.mrf.mxu0
        %v3350 = vadd.f32 0.0, %v3349
        %3351 = vmatmul.bf16.gmra.mxu0 %v2793
        %v3352 = vpop.f32.mrf.mxu0
        %v3353 = vadd.f32 0.0, %v3352
        %v3354 = vpop.f32.mrf.mxu0
        %v3355 = vadd.f32 0.0, %v3354
        %3356 = vmatmul.bf16.gmra.mxu0 %v2796
        %v3357 = vpop.f32.mrf.mxu0
        %v3358 = vadd.f32 0.0, %v3357
        %v3359 = vpop.f32.mrf.mxu0
        %v3360 = vadd.f32 0.0, %v3359
        %3361 = vmatmul.bf16.gmra.mxu0 %v2799
        %v3362 = vpop.f32.mrf.mxu0
        %v3363 = vadd.f32 0.0, %v3362
        %v3364 = vpop.f32.mrf.mxu0
        %v3365 = vadd.f32 0.0, %v3364
        %3366 = vmatmul.bf16.gmra.mxu0 %v2802
        %v3367 = vpop.f32.mrf.mxu0
        %v3368 = vadd.f32 0.0, %v3367
        %v3369 = vpop.f32.mrf.mxu0
        %v3370 = vadd.f32 0.0, %v3369
        %3371 = vmatmul.bf16.gmra.mxu0 %v2805
        %v3372 = vpop.f32.mrf.mxu0
        %v3373 = vadd.f32 0.0, %v3372
        %v3374 = vpop.f32.mrf.mxu0
        %v3375 = vadd.f32 0.0, %v3374
        %3376 = vdwg.mxu0
        %3377 = vmatpush.bf16.msra.mxu0 %v3189
        %3378 = vmatpush.bf16.msra.mxu0 %v3186
        %3379 = vmatpush.bf16.msra.mxu0 %v3183
        %3380 = vmatpush.bf16.msra.mxu0 %v3180
        %3381 = vmatpush.bf16.msra.mxu0 %v3177
        %3382 = vmatpush.bf16.msra.mxu0 %v3174
        %3383 = vmatpush.bf16.msra.mxu0 %v3171
        %3384 = vmatpush.bf16.msra.mxu0 %v3168
        %3385 = vmatmul.bf16.gmra.mxu0 %v2761
        %v3386 = vpop.f32.mrf.mxu0
        %v3387 = vadd.f32 %v3298, %v3386
        %v3388 = vpop.f32.mrf.mxu0
        %v3389 = vadd.f32 %v3300, %v3388
        %3390 = vmatmul.bf16.gmra.mxu0 %v2764
        %v3391 = vpop.f32.mrf.mxu0
        %v3392 = vadd.f32 %v3303, %v3391
        %v3393 = vpop.f32.mrf.mxu0
        %v3394 = vadd.f32 %v3305, %v3393
        %3395 = vmatmul.bf16.gmra.mxu0 %v2767
        %v3396 = vpop.f32.mrf.mxu0
        %v3397 = vadd.f32 %v3308, %v3396
        %v3398 = vpop.f32.mrf.mxu0
        %v3399 = vadd.f32 %v3310, %v3398
        %3400 = vmatmul.bf16.gmra.mxu0 %v2770
        %v3401 = vpop.f32.mrf.mxu0
        %v3402 = vadd.f32 %v3313, %v3401
        %v3403 = vpop.f32.mrf.mxu0
        %v3404 = vadd.f32 %v3315, %v3403
        %3405 = vmatmul.bf16.gmra.mxu0 %v2773
        %v3406 = vpop.f32.mrf.mxu0
        %v3407 = vadd.f32 %v3318, %v3406
        %v3408 = vpop.f32.mrf.mxu0
        %v3409 = vadd.f32 %v3320, %v3408
        %3410 = vmatmul.bf16.gmra.mxu0 %v2776
        %v3411 = vpop.f32.mrf.mxu0
        %v3412 = vadd.f32 %v3323, %v3411
        %v3413 = vpop.f32.mrf.mxu0
        %v3414 = vadd.f32 %v3325, %v3413
        %3415 = vmatmul.bf16.gmra.mxu0 %v2779
        %v3416 = vpop.f32.mrf.mxu0
        %v3417 = vadd.f32 %v3328, %v3416
        %v3418 = vpop.f32.mrf.mxu0
        %v3419 = vadd.f32 %v3330, %v3418
        %3420 = vmatmul.bf16.gmra.mxu0 %v2782
        %v3421 = vpop.f32.mrf.mxu0
        %v3422 = vadd.f32 %v3333, %v3421
        %v3423 = vpop.f32.mrf.mxu0
        %v3424 = vadd.f32 %v3335, %v3423
        %3425 = vmatmul.bf16.gmra.mxu0 %v2785
        %v3426 = vpop.f32.mrf.mxu0
        %v3427 = vadd.f32 %v3338, %v3426
        %v3428 = vpop.f32.mrf.mxu0
        %v3429 = vadd.f32 %v3340, %v3428
        %3430 = vmatmul.bf16.gmra.mxu0 %v2788
        %v3431 = vpop.f32.mrf.mxu0
        %v3432 = vadd.f32 %v3343, %v3431
        %v3433 = vpop.f32.mrf.mxu0
        %v3434 = vadd.f32 %v3345, %v3433
        %3435 = vmatmul.bf16.gmra.mxu0 %v2791
        %v3436 = vpop.f32.mrf.mxu0
        %v3437 = vadd.f32 %v3348, %v3436
        %v3438 = vpop.f32.mrf.mxu0
        %v3439 = vadd.f32 %v3350, %v3438
        %3440 = vmatmul.bf16.gmra.mxu0 %v2794
        %v3441 = vpop.f32.mrf.mxu0
        %v3442 = vadd.f32 %v3353, %v3441
        %v3443 = vpop.f32.mrf.mxu0
        %v3444 = vadd.f32 %v3355, %v3443
        %3445 = vmatmul.bf16.gmra.mxu0 %v2797
        %v3446 = vpop.f32.mrf.mxu0
        %v3447 = vadd.f32 %v3358, %v3446
        %v3448 = vpop.f32.mrf.mxu0
        %v3449 = vadd.f32 %v3360, %v3448
        %3450 = vmatmul.bf16.gmra.mxu0 %v2800
        %v3451 = vpop.f32.mrf.mxu0
        %v3452 = vadd.f32 %v3363, %v3451
        %v3453 = vpop.f32.mrf.mxu0
        %v3454 = vadd.f32 %v3365, %v3453
        %3455 = vmatmul.bf16.gmra.mxu0 %v2803
        %v3456 = vpop.f32.mrf.mxu0
        %v3457 = vadd.f32 %v3368, %v3456
        %v3458 = vpop.f32.mrf.mxu0
        %v3459 = vadd.f32 %v3370, %v3458
        %3460 = vmatmul.bf16.gmra.mxu0 %v2806
        %v3461 = vpop.f32.mrf.mxu0
        %v3462 = vadd.f32 %v3373, %v3461
        %v3463 = vpop.f32.mrf.mxu0
        %v3464 = vadd.f32 %v3375, %v3463
        %3465 = vdwg.mxu0
        %3466 = vmatpush.bf16.msra.mxu0 %v3213
        %3467 = vmatpush.bf16.msra.mxu0 %v3210
        %3468 = vmatpush.bf16.msra.mxu0 %v3207
        %3469 = vmatpush.bf16.msra.mxu0 %v3204
        %3470 = vmatpush.bf16.msra.mxu0 %v3201
        %3471 = vmatpush.bf16.msra.mxu0 %v3198
        %3472 = vmatpush.bf16.msra.mxu0 %v3195
        %3473 = vmatpush.bf16.msra.mxu0 %v3192
        %3474 = vmatmul.bf16.gmra.mxu0 %v2762
        %v3475 = vpop.f32.mrf.mxu0
        %v3476 = vadd.f32 %v3387, %v3475
        %v3477 = vpop.f32.mrf.mxu0
        %v3478 = vadd.f32 %v3389, %v3477
        %3479 = vmatmul.bf16.gmra.mxu0 %v2765
        %v3480 = vpop.f32.mrf.mxu0
        %v3481 = vadd.f32 %v3392, %v3480
        %v3482 = vpop.f32.mrf.mxu0
        %v3483 = vadd.f32 %v3394, %v3482
        %3484 = vmatmul.bf16.gmra.mxu0 %v2768
        %v3485 = vpop.f32.mrf.mxu0
        %v3486 = vadd.f32 %v3397, %v3485
        %v3487 = vpop.f32.mrf.mxu0
        %v3488 = vadd.f32 %v3399, %v3487
        %3489 = vmatmul.bf16.gmra.mxu0 %v2771
        %v3490 = vpop.f32.mrf.mxu0
        %v3491 = vadd.f32 %v3402, %v3490
        %v3492 = vpop.f32.mrf.mxu0
        %v3493 = vadd.f32 %v3404, %v3492
        %3494 = vmatmul.bf16.gmra.mxu0 %v2774
        %v3495 = vpop.f32.mrf.mxu0
        %v3496 = vadd.f32 %v3407, %v3495
        %v3497 = vpop.f32.mrf.mxu0
        %v3498 = vadd.f32 %v3409, %v3497
        %3499 = vmatmul.bf16.gmra.mxu0 %v2777
        %v3500 = vpop.f32.mrf.mxu0
        %v3501 = vadd.f32 %v3412, %v3500
        %v3502 = vpop.f32.mrf.mxu0
        %v3503 = vadd.f32 %v3414, %v3502
        %3504 = vmatmul.bf16.gmra.mxu0 %v2780
        %v3505 = vpop.f32.mrf.mxu0
        %v3506 = vadd.f32 %v3417, %v3505
        %v3507 = vpop.f32.mrf.mxu0
        %v3508 = vadd.f32 %v3419, %v3507
        %3509 = vmatmul.bf16.gmra.mxu0 %v2783
        %v3510 = vpop.f32.mrf.mxu0
        %v3511 = vadd.f32 %v3422, %v3510
        %v3512 = vpop.f32.mrf.mxu0
        %v3513 = vadd.f32 %v3424, %v3512
        %3514 = vmatmul.bf16.gmra.mxu0 %v2786
        %v3515 = vpop.f32.mrf.mxu0
        %v3516 = vadd.f32 %v3427, %v3515
        %v3517 = vpop.f32.mrf.mxu0
        %v3518 = vadd.f32 %v3429, %v3517
        %3519 = vmatmul.bf16.gmra.mxu0 %v2789
        %v3520 = vpop.f32.mrf.mxu0
        %v3521 = vadd.f32 %v3432, %v3520
        %v3522 = vpop.f32.mrf.mxu0
        %v3523 = vadd.f32 %v3434, %v3522
        %3524 = vmatmul.bf16.gmra.mxu0 %v2792
        %v3525 = vpop.f32.mrf.mxu0
        %v3526 = vadd.f32 %v3437, %v3525
        %v3527 = vpop.f32.mrf.mxu0
        %v3528 = vadd.f32 %v3439, %v3527
        %3529 = vmatmul.bf16.gmra.mxu0 %v2795
        %v3530 = vpop.f32.mrf.mxu0
        %v3531 = vadd.f32 %v3442, %v3530
        %v3532 = vpop.f32.mrf.mxu0
        %v3533 = vadd.f32 %v3444, %v3532
        %3534 = vmatmul.bf16.gmra.mxu0 %v2798
        %v3535 = vpop.f32.mrf.mxu0
        %v3536 = vadd.f32 %v3447, %v3535
        %v3537 = vpop.f32.mrf.mxu0
        %v3538 = vadd.f32 %v3449, %v3537
        %3539 = vmatmul.bf16.gmra.mxu0 %v2801
        %v3540 = vpop.f32.mrf.mxu0
        %v3541 = vadd.f32 %v3452, %v3540
        %v3542 = vpop.f32.mrf.mxu0
        %v3543 = vadd.f32 %v3454, %v3542
        %3544 = vmatmul.bf16.gmra.mxu0 %v2804
        %v3545 = vpop.f32.mrf.mxu0
        %v3546 = vadd.f32 %v3457, %v3545
        %v3547 = vpop.f32.mrf.mxu0
        %v3548 = vadd.f32 %v3459, %v3547
        %3549 = vmatmul.bf16.gmra.mxu0 %v2807
        %v3550 = vpop.f32.mrf.mxu0
        %v3551 = vadd.f32 %v3462, %v3550
        %v3552 = vpop.f32.mrf.mxu0
        %v3553 = vadd.f32 %v3464, %v3552
        %3554 = vdwg.mxu0
        %3555 = vmatpush.bf16.msra.mxu0 %v3166
        %3556 = vmatpush.bf16.msra.mxu0 %v3163
        %3557 = vmatpush.bf16.msra.mxu0 %v3160
        %3558 = vmatpush.bf16.msra.mxu0 %v3157
        %3559 = vmatpush.bf16.msra.mxu0 %v3154
        %3560 = vmatpush.bf16.msra.mxu0 %v3151
        %3561 = vmatpush.bf16.msra.mxu0 %v3148
        %3562 = vmatpush.bf16.msra.mxu0 %v3145
        %3563 = vmatmul.bf16.gmra.mxu0 %v2760
        %v3564 = vpop.f32.mrf.mxu0
        %v3565 = vadd.f32 0.0, %v3564
        %v3566 = vpop.f32.mrf.mxu0
        %v3567 = vadd.f32 0.0, %v3566
        %3568 = vmatmul.bf16.gmra.mxu0 %v2763
        %v3569 = vpop.f32.mrf.mxu0
        %v3570 = vadd.f32 0.0, %v3569
        %v3571 = vpop.f32.mrf.mxu0
        %v3572 = vadd.f32 0.0, %v3571
        %3573 = vmatmul.bf16.gmra.mxu0 %v2766
        %v3574 = vpop.f32.mrf.mxu0
        %v3575 = vadd.f32 0.0, %v3574
        %v3576 = vpop.f32.mrf.mxu0
        %v3577 = vadd.f32 0.0, %v3576
        %3578 = vmatmul.bf16.gmra.mxu0 %v2769
        %v3579 = vpop.f32.mrf.mxu0
        %v3580 = vadd.f32 0.0, %v3579
        %v3581 = vpop.f32.mrf.mxu0
        %v3582 = vadd.f32 0.0, %v3581
        %3583 = vmatmul.bf16.gmra.mxu0 %v2772
        %v3584 = vpop.f32.mrf.mxu0
        %v3585 = vadd.f32 0.0, %v3584
        %v3586 = vpop.f32.mrf.mxu0
        %v3587 = vadd.f32 0.0, %v3586
        %3588 = vmatmul.bf16.gmra.mxu0 %v2775
        %v3589 = vpop.f32.mrf.mxu0
        %v3590 = vadd.f32 0.0, %v3589
        %v3591 = vpop.f32.mrf.mxu0
        %v3592 = vadd.f32 0.0, %v3591
        %3593 = vmatmul.bf16.gmra.mxu0 %v2778
        %v3594 = vpop.f32.mrf.mxu0
        %v3595 = vadd.f32 0.0, %v3594
        %v3596 = vpop.f32.mrf.mxu0
        %v3597 = vadd.f32 0.0, %v3596
        %3598 = vmatmul.bf16.gmra.mxu0 %v2781
        %v3599 = vpop.f32.mrf.mxu0
        %v3600 = vadd.f32 0.0, %v3599
        %v3601 = vpop.f32.mrf.mxu0
        %v3602 = vadd.f32 0.0, %v3601
        %3603 = vmatmul.bf16.gmra.mxu0 %v2784
        %v3604 = vpop.f32.mrf.mxu0
        %v3605 = vadd.f32 0.0, %v3604
        %v3606 = vpop.f32.mrf.mxu0
        %v3607 = vadd.f32 0.0, %v3606
        %3608 = vmatmul.bf16.gmra.mxu0 %v2787
        %v3609 = vpop.f32.mrf.mxu0
        %v3610 = vadd.f32 0.0, %v3609
        %v3611 = vpop.f32.mrf.mxu0
        %v3612 = vadd.f32 0.0, %v3611
        %3613 = vmatmul.bf16.gmra.mxu0 %v2790
        %v3614 = vpop.f32.mrf.mxu0
        %v3615 = vadd.f32 0.0, %v3614
        %v3616 = vpop.f32.mrf.mxu0
        %v3617 = vadd.f32 0.0, %v3616
        %3618 = vmatmul.bf16.gmra.mxu0 %v2793
        %v3619 = vpop.f32.mrf.mxu0
        %v3620 = vadd.f32 0.0, %v3619
        %v3621 = vpop.f32.mrf.mxu0
        %v3622 = vadd.f32 0.0, %v3621
        %3623 = vmatmul.bf16.gmra.mxu0 %v2796
        %v3624 = vpop.f32.mrf.mxu0
        %v3625 = vadd.f32 0.0, %v3624
        %v3626 = vpop.f32.mrf.mxu0
        %v3627 = vadd.f32 0.0, %v3626
        %3628 = vmatmul.bf16.gmra.mxu0 %v2799
        %v3629 = vpop.f32.mrf.mxu0
        %v3630 = vadd.f32 0.0, %v3629
        %v3631 = vpop.f32.mrf.mxu0
        %v3632 = vadd.f32 0.0, %v3631
        %3633 = vmatmul.bf16.gmra.mxu0 %v2802
        %v3634 = vpop.f32.mrf.mxu0
        %v3635 = vadd.f32 0.0, %v3634
        %v3636 = vpop.f32.mrf.mxu0
        %v3637 = vadd.f32 0.0, %v3636
        %3638 = vmatmul.bf16.gmra.mxu0 %v2805
        %v3639 = vpop.f32.mrf.mxu0
        %v3640 = vadd.f32 0.0, %v3639
        %v3641 = vpop.f32.mrf.mxu0
        %v3642 = vadd.f32 0.0, %v3641
        %3643 = vdwg.mxu0
        %3644 = vmatpush.bf16.msra.mxu0 %v3190
        %3645 = vmatpush.bf16.msra.mxu0 %v3187
        %3646 = vmatpush.bf16.msra.mxu0 %v3184
        %3647 = vmatpush.bf16.msra.mxu0 %v3181
        %3648 = vmatpush.bf16.msra.mxu0 %v3178
        %3649 = vmatpush.bf16.msra.mxu0 %v3175
        %3650 = vmatpush.bf16.msra.mxu0 %v3172
        %3651 = vmatpush.bf16.msra.mxu0 %v3169
        %3652 = vmatmul.bf16.gmra.mxu0 %v2761
        %v3653 = vpop.f32.mrf.mxu0
        %v3654 = vadd.f32 %v3565, %v3653
        %v3655 = vpop.f32.mrf.mxu0
        %v3656 = vadd.f32 %v3567, %v3655
        %3657 = vmatmul.bf16.gmra.mxu0 %v2764
        %v3658 = vpop.f32.mrf.mxu0
        %v3659 = vadd.f32 %v3570, %v3658
        %v3660 = vpop.f32.mrf.mxu0
        %v3661 = vadd.f32 %v3572, %v3660
        %3662 = vmatmul.bf16.gmra.mxu0 %v2767
        %v3663 = vpop.f32.mrf.mxu0
        %v3664 = vadd.f32 %v3575, %v3663
        %v3665 = vpop.f32.mrf.mxu0
        %v3666 = vadd.f32 %v3577, %v3665
        %3667 = vmatmul.bf16.gmra.mxu0 %v2770
        %v3668 = vpop.f32.mrf.mxu0
        %v3669 = vadd.f32 %v3580, %v3668
        %v3670 = vpop.f32.mrf.mxu0
        %v3671 = vadd.f32 %v3582, %v3670
        %3672 = vmatmul.bf16.gmra.mxu0 %v2773
        %v3673 = vpop.f32.mrf.mxu0
        %v3674 = vadd.f32 %v3585, %v3673
        %v3675 = vpop.f32.mrf.mxu0
        %v3676 = vadd.f32 %v3587, %v3675
        %3677 = vmatmul.bf16.gmra.mxu0 %v2776
        %v3678 = vpop.f32.mrf.mxu0
        %v3679 = vadd.f32 %v3590, %v3678
        %v3680 = vpop.f32.mrf.mxu0
        %v3681 = vadd.f32 %v3592, %v3680
        %3682 = vmatmul.bf16.gmra.mxu0 %v2779
        %v3683 = vpop.f32.mrf.mxu0
        %v3684 = vadd.f32 %v3595, %v3683
        %v3685 = vpop.f32.mrf.mxu0
        %v3686 = vadd.f32 %v3597, %v3685
        %3687 = vmatmul.bf16.gmra.mxu0 %v2782
        %v3688 = vpop.f32.mrf.mxu0
        %v3689 = vadd.f32 %v3600, %v3688
        %v3690 = vpop.f32.mrf.mxu0
        %v3691 = vadd.f32 %v3602, %v3690
        %3692 = vmatmul.bf16.gmra.mxu0 %v2785
        %v3693 = vpop.f32.mrf.mxu0
        %v3694 = vadd.f32 %v3605, %v3693
        %v3695 = vpop.f32.mrf.mxu0
        %v3696 = vadd.f32 %v3607, %v3695
        %3697 = vmatmul.bf16.gmra.mxu0 %v2788
        %v3698 = vpop.f32.mrf.mxu0
        %v3699 = vadd.f32 %v3610, %v3698
        %v3700 = vpop.f32.mrf.mxu0
        %v3701 = vadd.f32 %v3612, %v3700
        %3702 = vmatmul.bf16.gmra.mxu0 %v2791
        %v3703 = vpop.f32.mrf.mxu0
        %v3704 = vadd.f32 %v3615, %v3703
        %v3705 = vpop.f32.mrf.mxu0
        %v3706 = vadd.f32 %v3617, %v3705
        %3707 = vmatmul.bf16.gmra.mxu0 %v2794
        %v3708 = vpop.f32.mrf.mxu0
        %v3709 = vadd.f32 %v3620, %v3708
        %v3710 = vpop.f32.mrf.mxu0
        %v3711 = vadd.f32 %v3622, %v3710
        %3712 = vmatmul.bf16.gmra.mxu0 %v2797
        %v3713 = vpop.f32.mrf.mxu0
        %v3714 = vadd.f32 %v3625, %v3713
        %v3715 = vpop.f32.mrf.mxu0
        %v3716 = vadd.f32 %v3627, %v3715
        %3717 = vmatmul.bf16.gmra.mxu0 %v2800
        %v3718 = vpop.f32.mrf.mxu0
        %v3719 = vadd.f32 %v3630, %v3718
        %v3720 = vpop.f32.mrf.mxu0
        %v3721 = vadd.f32 %v3632, %v3720
        %3722 = vmatmul.bf16.gmra.mxu0 %v2803
        %v3723 = vpop.f32.mrf.mxu0
        %v3724 = vadd.f32 %v3635, %v3723
        %v3725 = vpop.f32.mrf.mxu0
        %v3726 = vadd.f32 %v3637, %v3725
        %3727 = vmatmul.bf16.gmra.mxu0 %v2806
        %v3728 = vpop.f32.mrf.mxu0
        %v3729 = vadd.f32 %v3640, %v3728
        %v3730 = vpop.f32.mrf.mxu0
        %v3731 = vadd.f32 %v3642, %v3730
        %3732 = vdwg.mxu0
        %3733 = vmatpush.bf16.msra.mxu0 %v3214
        %3734 = vmatpush.bf16.msra.mxu0 %v3211
        %3735 = vmatpush.bf16.msra.mxu0 %v3208
        %3736 = vmatpush.bf16.msra.mxu0 %v3205
        %3737 = vmatpush.bf16.msra.mxu0 %v3202
        %3738 = vmatpush.bf16.msra.mxu0 %v3199
        %3739 = vmatpush.bf16.msra.mxu0 %v3196
        %3740 = vmatpush.bf16.msra.mxu0 %v3193
        %3741 = vmatmul.bf16.gmra.mxu0 %v2762
        %v3742 = vpop.f32.mrf.mxu0
        %v3743 = vadd.f32 %v3654, %v3742
        %v3744 = vpop.f32.mrf.mxu0
        %v3745 = vadd.f32 %v3656, %v3744
        %3746 = vmatmul.bf16.gmra.mxu0 %v2765
        %v3747 = vpop.f32.mrf.mxu0
        %v3748 = vadd.f32 %v3659, %v3747
        %v3749 = vpop.f32.mrf.mxu0
        %v3750 = vadd.f32 %v3661, %v3749
        %3751 = vmatmul.bf16.gmra.mxu0 %v2768
        %v3752 = vpop.f32.mrf.mxu0
        %v3753 = vadd.f32 %v3664, %v3752
        %v3754 = vpop.f32.mrf.mxu0
        %v3755 = vadd.f32 %v3666, %v3754
        %3756 = vmatmul.bf16.gmra.mxu0 %v2771
        %v3757 = vpop.f32.mrf.mxu0
        %v3758 = vadd.f32 %v3669, %v3757
        %v3759 = vpop.f32.mrf.mxu0
        %v3760 = vadd.f32 %v3671, %v3759
        %3761 = vmatmul.bf16.gmra.mxu0 %v2774
        %v3762 = vpop.f32.mrf.mxu0
        %v3763 = vadd.f32 %v3674, %v3762
        %v3764 = vpop.f32.mrf.mxu0
        %v3765 = vadd.f32 %v3676, %v3764
        %3766 = vmatmul.bf16.gmra.mxu0 %v2777
        %v3767 = vpop.f32.mrf.mxu0
        %v3768 = vadd.f32 %v3679, %v3767
        %v3769 = vpop.f32.mrf.mxu0
        %v3770 = vadd.f32 %v3681, %v3769
        %3771 = vmatmul.bf16.gmra.mxu0 %v2780
        %v3772 = vpop.f32.mrf.mxu0
        %v3773 = vadd.f32 %v3684, %v3772
        %v3774 = vpop.f32.mrf.mxu0
        %v3775 = vadd.f32 %v3686, %v3774
        %3776 = vmatmul.bf16.gmra.mxu0 %v2783
        %v3777 = vpop.f32.mrf.mxu0
        %v3778 = vadd.f32 %v3689, %v3777
        %v3779 = vpop.f32.mrf.mxu0
        %v3780 = vadd.f32 %v3691, %v3779
        %3781 = vmatmul.bf16.gmra.mxu0 %v2786
        %v3782 = vpop.f32.mrf.mxu0
        %v3783 = vadd.f32 %v3694, %v3782
        %v3784 = vpop.f32.mrf.mxu0
        %v3785 = vadd.f32 %v3696, %v3784
        %3786 = vmatmul.bf16.gmra.mxu0 %v2789
        %v3787 = vpop.f32.mrf.mxu0
        %v3788 = vadd.f32 %v3699, %v3787
        %v3789 = vpop.f32.mrf.mxu0
        %v3790 = vadd.f32 %v3701, %v3789
        %3791 = vmatmul.bf16.gmra.mxu0 %v2792
        %v3792 = vpop.f32.mrf.mxu0
        %v3793 = vadd.f32 %v3704, %v3792
        %v3794 = vpop.f32.mrf.mxu0
        %v3795 = vadd.f32 %v3706, %v3794
        %3796 = vmatmul.bf16.gmra.mxu0 %v2795
        %v3797 = vpop.f32.mrf.mxu0
        %v3798 = vadd.f32 %v3709, %v3797
        %v3799 = vpop.f32.mrf.mxu0
        %v3800 = vadd.f32 %v3711, %v3799
        %3801 = vmatmul.bf16.gmra.mxu0 %v2798
        %v3802 = vpop.f32.mrf.mxu0
        %v3803 = vadd.f32 %v3714, %v3802
        %v3804 = vpop.f32.mrf.mxu0
        %v3805 = vadd.f32 %v3716, %v3804
        %3806 = vmatmul.bf16.gmra.mxu0 %v2801
        %v3807 = vpop.f32.mrf.mxu0
        %v3808 = vadd.f32 %v3719, %v3807
        %v3809 = vpop.f32.mrf.mxu0
        %v3810 = vadd.f32 %v3721, %v3809
        %3811 = vmatmul.bf16.gmra.mxu0 %v2804
        %v3812 = vpop.f32.mrf.mxu0
        %v3813 = vadd.f32 %v3724, %v3812
        %v3814 = vpop.f32.mrf.mxu0
        %v3815 = vadd.f32 %v3726, %v3814
        %3816 = vmatmul.bf16.gmra.mxu0 %v2807
        %v3817 = vpop.f32.mrf.mxu0
        %v3818 = vadd.f32 %v3729, %v3817
        %v3819 = vpop.f32.mrf.mxu0
        %v3820 = vadd.f32 %v3731, %v3819
        %3821 = vdwg.mxu0
        %3822 = vmatpush.bf16.msra.mxu0 %v3167
        %3823 = vmatpush.bf16.msra.mxu0 %v3164
        %3824 = vmatpush.bf16.msra.mxu0 %v3161
        %3825 = vmatpush.bf16.msra.mxu0 %v3158
        %3826 = vmatpush.bf16.msra.mxu0 %v3155
        %3827 = vmatpush.bf16.msra.mxu0 %v3152
        %3828 = vmatpush.bf16.msra.mxu0 %v3149
        %3829 = vmatpush.bf16.msra.mxu0 %v3146
        %3830 = vmatmul.bf16.gmra.mxu0 %v2760
        %v3831 = vpop.f32.mrf.mxu0
        %v3832 = vadd.f32 0.0, %v3831
        %v3833 = vpop.f32.mrf.mxu0
        %v3834 = vadd.f32 0.0, %v3833
        %3835 = vmatmul.bf16.gmra.mxu0 %v2763
        %v3836 = vpop.f32.mrf.mxu0
        %v3837 = vadd.f32 0.0, %v3836
        %v3838 = vpop.f32.mrf.mxu0
        %v3839 = vadd.f32 0.0, %v3838
        %3840 = vmatmul.bf16.gmra.mxu0 %v2766
        %v3841 = vpop.f32.mrf.mxu0
        %v3842 = vadd.f32 0.0, %v3841
        %v3843 = vpop.f32.mrf.mxu0
        %v3844 = vadd.f32 0.0, %v3843
        %3845 = vmatmul.bf16.gmra.mxu0 %v2769
        %v3846 = vpop.f32.mrf.mxu0
        %v3847 = vadd.f32 0.0, %v3846
        %v3848 = vpop.f32.mrf.mxu0
        %v3849 = vadd.f32 0.0, %v3848
        %3850 = vmatmul.bf16.gmra.mxu0 %v2772
        %v3851 = vpop.f32.mrf.mxu0
        %v3852 = vadd.f32 0.0, %v3851
        %v3853 = vpop.f32.mrf.mxu0
        %v3854 = vadd.f32 0.0, %v3853
        %3855 = vmatmul.bf16.gmra.mxu0 %v2775
        %v3856 = vpop.f32.mrf.mxu0
        %v3857 = vadd.f32 0.0, %v3856
        %v3858 = vpop.f32.mrf.mxu0
        %v3859 = vadd.f32 0.0, %v3858
        %3860 = vmatmul.bf16.gmra.mxu0 %v2778
        %v3861 = vpop.f32.mrf.mxu0
        %v3862 = vadd.f32 0.0, %v3861
        %v3863 = vpop.f32.mrf.mxu0
        %v3864 = vadd.f32 0.0, %v3863
        %3865 = vmatmul.bf16.gmra.mxu0 %v2781
        %v3866 = vpop.f32.mrf.mxu0
        %v3867 = vadd.f32 0.0, %v3866
        %v3868 = vpop.f32.mrf.mxu0
        %v3869 = vadd.f32 0.0, %v3868
        %3870 = vmatmul.bf16.gmra.mxu0 %v2784
        %v3871 = vpop.f32.mrf.mxu0
        %v3872 = vadd.f32 0.0, %v3871
        %v3873 = vpop.f32.mrf.mxu0
        %v3874 = vadd.f32 0.0, %v3873
        %3875 = vmatmul.bf16.gmra.mxu0 %v2787
        %v3876 = vpop.f32.mrf.mxu0
        %v3877 = vadd.f32 0.0, %v3876
        %v3878 = vpop.f32.mrf.mxu0
        %v3879 = vadd.f32 0.0, %v3878
        %3880 = vmatmul.bf16.gmra.mxu0 %v2790
        %v3881 = vpop.f32.mrf.mxu0
        %v3882 = vadd.f32 0.0, %v3881
        %v3883 = vpop.f32.mrf.mxu0
        %v3884 = vadd.f32 0.0, %v3883
        %3885 = vmatmul.bf16.gmra.mxu0 %v2793
        %v3886 = vpop.f32.mrf.mxu0
        %v3887 = vadd.f32 0.0, %v3886
        %v3888 = vpop.f32.mrf.mxu0
        %v3889 = vadd.f32 0.0, %v3888
        %3890 = vmatmul.bf16.gmra.mxu0 %v2796
        %v3891 = vpop.f32.mrf.mxu0
        %v3892 = vadd.f32 0.0, %v3891
        %v3893 = vpop.f32.mrf.mxu0
        %v3894 = vadd.f32 0.0, %v3893
        %3895 = vmatmul.bf16.gmra.mxu0 %v2799
        %v3896 = vpop.f32.mrf.mxu0
        %v3897 = vadd.f32 0.0, %v3896
        %v3898 = vpop.f32.mrf.mxu0
        %v3899 = vadd.f32 0.0, %v3898
        %3900 = vmatmul.bf16.gmra.mxu0 %v2802
        %v3901 = vpop.f32.mrf.mxu0
        %v3902 = vadd.f32 0.0, %v3901
        %v3903 = vpop.f32.mrf.mxu0
        %v3904 = vadd.f32 0.0, %v3903
        %3905 = vmatmul.bf16.gmra.mxu0 %v2805
        %v3906 = vpop.f32.mrf.mxu0
        %v3907 = vadd.f32 0.0, %v3906
        %v3908 = vpop.f32.mrf.mxu0
        %v3909 = vadd.f32 0.0, %v3908
        %3910 = vdwg.mxu0
        %3911 = vmatpush.bf16.msra.mxu0 %v3191
        %3912 = vmatpush.bf16.msra.mxu0 %v3188
        %3913 = vmatpush.bf16.msra.mxu0 %v3185
        %3914 = vmatpush.bf16.msra.mxu0 %v3182
        %3915 = vmatpush.bf16.msra.mxu0 %v3179
        %3916 = vmatpush.bf16.msra.mxu0 %v3176
        %3917 = vmatpush.bf16.msra.mxu0 %v3173
        %3918 = vmatpush.bf16.msra.mxu0 %v3170
        %3919 = vmatmul.bf16.gmra.mxu0 %v2761
        %v3920 = vpop.f32.mrf.mxu0
        %v3921 = vadd.f32 %v3832, %v3920
        %v3922 = vpop.f32.mrf.mxu0
        %v3923 = vadd.f32 %v3834, %v3922
        %3924 = vmatmul.bf16.gmra.mxu0 %v2764
        %v3925 = vpop.f32.mrf.mxu0
        %v3926 = vadd.f32 %v3837, %v3925
        %v3927 = vpop.f32.mrf.mxu0
        %v3928 = vadd.f32 %v3839, %v3927
        %3929 = vmatmul.bf16.gmra.mxu0 %v2767
        %v3930 = vpop.f32.mrf.mxu0
        %v3931 = vadd.f32 %v3842, %v3930
        %v3932 = vpop.f32.mrf.mxu0
        %v3933 = vadd.f32 %v3844, %v3932
        %3934 = vmatmul.bf16.gmra.mxu0 %v2770
        %v3935 = vpop.f32.mrf.mxu0
        %v3936 = vadd.f32 %v3847, %v3935
        %v3937 = vpop.f32.mrf.mxu0
        %v3938 = vadd.f32 %v3849, %v3937
        %3939 = vmatmul.bf16.gmra.mxu0 %v2773
        %v3940 = vpop.f32.mrf.mxu0
        %v3941 = vadd.f32 %v3852, %v3940
        %v3942 = vpop.f32.mrf.mxu0
        %v3943 = vadd.f32 %v3854, %v3942
        %3944 = vmatmul.bf16.gmra.mxu0 %v2776
        %v3945 = vpop.f32.mrf.mxu0
        %v3946 = vadd.f32 %v3857, %v3945
        %v3947 = vpop.f32.mrf.mxu0
        %v3948 = vadd.f32 %v3859, %v3947
        %3949 = vmatmul.bf16.gmra.mxu0 %v2779
        %v3950 = vpop.f32.mrf.mxu0
        %v3951 = vadd.f32 %v3862, %v3950
        %v3952 = vpop.f32.mrf.mxu0
        %v3953 = vadd.f32 %v3864, %v3952
        %3954 = vmatmul.bf16.gmra.mxu0 %v2782
        %v3955 = vpop.f32.mrf.mxu0
        %v3956 = vadd.f32 %v3867, %v3955
        %v3957 = vpop.f32.mrf.mxu0
        %v3958 = vadd.f32 %v3869, %v3957
        %3959 = vmatmul.bf16.gmra.mxu0 %v2785
        %v3960 = vpop.f32.mrf.mxu0
        %v3961 = vadd.f32 %v3872, %v3960
        %v3962 = vpop.f32.mrf.mxu0
        %v3963 = vadd.f32 %v3874, %v3962
        %3964 = vmatmul.bf16.gmra.mxu0 %v2788
        %v3965 = vpop.f32.mrf.mxu0
        %v3966 = vadd.f32 %v3877, %v3965
        %v3967 = vpop.f32.mrf.mxu0
        %v3968 = vadd.f32 %v3879, %v3967
        %3969 = vmatmul.bf16.gmra.mxu0 %v2791
        %v3970 = vpop.f32.mrf.mxu0
        %v3971 = vadd.f32 %v3882, %v3970
        %v3972 = vpop.f32.mrf.mxu0
        %v3973 = vadd.f32 %v3884, %v3972
        %3974 = vmatmul.bf16.gmra.mxu0 %v2794
        %v3975 = vpop.f32.mrf.mxu0
        %v3976 = vadd.f32 %v3887, %v3975
        %v3977 = vpop.f32.mrf.mxu0
        %v3978 = vadd.f32 %v3889, %v3977
        %3979 = vmatmul.bf16.gmra.mxu0 %v2797
        %v3980 = vpop.f32.mrf.mxu0
        %v3981 = vadd.f32 %v3892, %v3980
        %v3982 = vpop.f32.mrf.mxu0
        %v3983 = vadd.f32 %v3894, %v3982
        %3984 = vmatmul.bf16.gmra.mxu0 %v2800
        %v3985 = vpop.f32.mrf.mxu0
        %v3986 = vadd.f32 %v3897, %v3985
        %v3987 = vpop.f32.mrf.mxu0
        %v3988 = vadd.f32 %v3899, %v3987
        %3989 = vmatmul.bf16.gmra.mxu0 %v2803
        %v3990 = vpop.f32.mrf.mxu0
        %v3991 = vadd.f32 %v3902, %v3990
        %v3992 = vpop.f32.mrf.mxu0
        %v3993 = vadd.f32 %v3904, %v3992
        %3994 = vmatmul.bf16.gmra.mxu0 %v2806
        %v3995 = vpop.f32.mrf.mxu0
        %v3996 = vadd.f32 %v3907, %v3995
        %v3997 = vpop.f32.mrf.mxu0
        %v3998 = vadd.f32 %v3909, %v3997
        %3999 = vdwg.mxu0
        %4000 = vmatpush.bf16.msra.mxu0 %v3215
        %4001 = vmatpush.bf16.msra.mxu0 %v3212
        %4002 = vmatpush.bf16.msra.mxu0 %v3209
        %4003 = vmatpush.bf16.msra.mxu0 %v3206
        %4004 = vmatpush.bf16.msra.mxu0 %v3203
        %4005 = vmatpush.bf16.msra.mxu0 %v3200
        %4006 = vmatpush.bf16.msra.mxu0 %v3197
        %4007 = vmatpush.bf16.msra.mxu0 %v3194
        %4008 = vmatmul.bf16.gmra.mxu0 %v2762
        %v4009 = vpop.f32.mrf.mxu0
        %v4010 = vadd.f32 %v3921, %v4009
        %v4011 = vpop.f32.mrf.mxu0
        %v4012 = vadd.f32 %v3923, %v4011
        %4013 = vmatmul.bf16.gmra.mxu0 %v2765
        %v4014 = vpop.f32.mrf.mxu0
        %v4015 = vadd.f32 %v3926, %v4014
        %v4016 = vpop.f32.mrf.mxu0
        %v4017 = vadd.f32 %v3928, %v4016
        %4018 = vmatmul.bf16.gmra.mxu0 %v2768
        %v4019 = vpop.f32.mrf.mxu0
        %v4020 = vadd.f32 %v3931, %v4019
        %v4021 = vpop.f32.mrf.mxu0
        %v4022 = vadd.f32 %v3933, %v4021
        %4023 = vmatmul.bf16.gmra.mxu0 %v2771
        %v4024 = vpop.f32.mrf.mxu0
        %v4025 = vadd.f32 %v3936, %v4024
        %v4026 = vpop.f32.mrf.mxu0
        %v4027 = vadd.f32 %v3938, %v4026
        %4028 = vmatmul.bf16.gmra.mxu0 %v2774
        %v4029 = vpop.f32.mrf.mxu0
        %v4030 = vadd.f32 %v3941, %v4029
        %v4031 = vpop.f32.mrf.mxu0
        %v4032 = vadd.f32 %v3943, %v4031
        %4033 = vmatmul.bf16.gmra.mxu0 %v2777
        %v4034 = vpop.f32.mrf.mxu0
        %v4035 = vadd.f32 %v3946, %v4034
        %v4036 = vpop.f32.mrf.mxu0
        %v4037 = vadd.f32 %v3948, %v4036
        %4038 = vmatmul.bf16.gmra.mxu0 %v2780
        %v4039 = vpop.f32.mrf.mxu0
        %v4040 = vadd.f32 %v3951, %v4039
        %v4041 = vpop.f32.mrf.mxu0
        %v4042 = vadd.f32 %v3953, %v4041
        %4043 = vmatmul.bf16.gmra.mxu0 %v2783
        %v4044 = vpop.f32.mrf.mxu0
        %v4045 = vadd.f32 %v3956, %v4044
        %v4046 = vpop.f32.mrf.mxu0
        %v4047 = vadd.f32 %v3958, %v4046
        %4048 = vmatmul.bf16.gmra.mxu0 %v2786
        %v4049 = vpop.f32.mrf.mxu0
        %v4050 = vadd.f32 %v3961, %v4049
        %v4051 = vpop.f32.mrf.mxu0
        %v4052 = vadd.f32 %v3963, %v4051
        %4053 = vmatmul.bf16.gmra.mxu0 %v2789
        %v4054 = vpop.f32.mrf.mxu0
        %v4055 = vadd.f32 %v3966, %v4054
        %v4056 = vpop.f32.mrf.mxu0
        %v4057 = vadd.f32 %v3968, %v4056
        %4058 = vmatmul.bf16.gmra.mxu0 %v2792
        %v4059 = vpop.f32.mrf.mxu0
        %v4060 = vadd.f32 %v3971, %v4059
        %v4061 = vpop.f32.mrf.mxu0
        %v4062 = vadd.f32 %v3973, %v4061
        %4063 = vmatmul.bf16.gmra.mxu0 %v2795
        %v4064 = vpop.f32.mrf.mxu0
        %v4065 = vadd.f32 %v3976, %v4064
        %v4066 = vpop.f32.mrf.mxu0
        %v4067 = vadd.f32 %v3978, %v4066
        %4068 = vmatmul.bf16.gmra.mxu0 %v2798
        %v4069 = vpop.f32.mrf.mxu0
        %v4070 = vadd.f32 %v3981, %v4069
        %v4071 = vpop.f32.mrf.mxu0
        %v4072 = vadd.f32 %v3983, %v4071
        %4073 = vmatmul.bf16.gmra.mxu0 %v2801
        %v4074 = vpop.f32.mrf.mxu0
        %v4075 = vadd.f32 %v3986, %v4074
        %v4076 = vpop.f32.mrf.mxu0
        %v4077 = vadd.f32 %v3988, %v4076
        %4078 = vmatmul.bf16.gmra.mxu0 %v2804
        %v4079 = vpop.f32.mrf.mxu0
        %v4080 = vadd.f32 %v3991, %v4079
        %v4081 = vpop.f32.mrf.mxu0
        %v4082 = vadd.f32 %v3993, %v4081
        %4083 = vmatmul.bf16.gmra.mxu0 %v2807
        %v4084 = vpop.f32.mrf.mxu0
        %v4085 = vadd.f32 %v3996, %v4084
        %v4086 = vpop.f32.mrf.mxu0
        %v4087 = vadd.f32 %v3998, %v4086
        %4088 = vdwg.mxu0
        %v4089 = vsel %vm2240, %v3551, 0.0
        %v4090 = vsel %vm2241, %v3553, 0.0
        %v4091 = vsel %vm2242, %v3476, 0.0
        %v4092 = vsel %vm2243, %v3478, 0.0
        %v4093 = vsel %vm2244, %v3481, 0.0
        %v4094 = vsel %vm2245, %v3483, 0.0
        %v4095 = vsel %vm2246, %v3486, 0.0
        %v4096 = vsel %vm2247, %v3488, 0.0
        %v4097 = vsel %vm2248, %v3491, 0.0
        %v4098 = vsel %vm2249, %v3493, 0.0
        %v4099 = vsel %vm2250, %v3496, 0.0
        %v4100 = vsel %vm2251, %v3498, 0.0
        %v4101 = vsel %vm2252, %v3501, 0.0
        %v4102 = vsel %vm2253, %v3503, 0.0
        %v4103 = vsel %vm2254, %v3506, 0.0
        %v4104 = vsel %vm2255, %v3508, 0.0
        %v4105 = vsel %vm2256, %v3511, 0.0
        %v4106 = vsel %vm2257, %v3513, 0.0
        %v4107 = vsel %vm2258, %v3516, 0.0
        %v4108 = vsel %vm2259, %v3518, 0.0
        %v4109 = vsel %vm2260, %v3521, 0.0
        %v4110 = vsel %vm2261, %v3523, 0.0
        %v4111 = vsel %vm2262, %v3526, 0.0
        %v4112 = vsel %vm2263, %v3528, 0.0
        %v4113 = vsel %vm2264, %v3531, 0.0
        %v4114 = vsel %vm2265, %v3533, 0.0
        %v4115 = vsel %vm2266, %v3536, 0.0
        %v4116 = vsel %vm2267, %v3538, 0.0
        %v4117 = vsel %vm2268, %v3541, 0.0
        %v4118 = vsel %vm2269, %v3543, 0.0
        %v4119 = vsel %vm2270, %v3546, 0.0
        %v4120 = vsel %vm2271, %v3548, 0.0
        %v4121 = vsel %vm2336, %v4015, 0.0
        %v4122 = vsel %vm2337, %v4017, 0.0
        %v4123 = vsel %vm2338, %v4020, 0.0
        %v4124 = vsel %vm2339, %v4022, 0.0
        %v4125 = vsel %vm2340, %v4025, 0.0
        %v4126 = vsel %vm2341, %v4027, 0.0
        %v4127 = vsel %vm2342, %v4030, 0.0
        %v4128 = vsel %vm2343, %v4032, 0.0
        %v4129 = vsel %vm2344, %v4035, 0.0
        %v4130 = vsel %vm2345, %v4037, 0.0
        %v4131 = vsel %vm2346, %v4040, 0.0
        %v4132 = vsel %vm2347, %v4042, 0.0
        %v4133 = vsel %vm2348, %v4045, 0.0
        %v4134 = vsel %vm2349, %v4047, 0.0
        %v4135 = vsel %vm2350, %v4050, 0.0
        %v4136 = vsel %vm2351, %v4052, 0.0
        %v4137 = vsel %vm2352, %v4055, 0.0
        %v4138 = vsel %vm2353, %v4057, 0.0
        %v4139 = vsel %vm2354, %v4060, 0.0
        %v4140 = vsel %vm2355, %v4062, 0.0
        %v4141 = vsel %vm2356, %v4065, 0.0
        %v4142 = vsel %vm2357, %v4067, 0.0
        %v4143 = vsel %vm2358, %v4070, 0.0
        %v4144 = vsel %vm2359, %v4072, 0.0
        %v4145 = vsel %vm2360, %v4075, 0.0
        %v4146 = vsel %vm2361, %v4077, 0.0
        %v4147 = vsel %vm2362, %v4080, 0.0
        %v4148 = vsel %vm2363, %v4082, 0.0
        %v4149 = vsel %vm2364, %v4085, 0.0
        %v4150 = vsel %vm2365, %v4087, 0.0
        %v4151 = vsel %vm2366, %v4010, 0.0
        %v4152 = vsel %vm2367, %v4012, 0.0
        %v4153 = vadd.f32 %v4089, %v3743
        %v4154 = vadd.f32 %v4090, %v3745
        %v4155 = vadd.f32 %v4091, %v3748
        %v4156 = vadd.f32 %v4092, %v3750
        %v4157 = vadd.f32 %v4093, %v3753
        %v4158 = vadd.f32 %v4094, %v3755
        %v4159 = vadd.f32 %v4095, %v3758
        %v4160 = vadd.f32 %v4096, %v3760
        %v4161 = vadd.f32 %v4097, %v3763
        %v4162 = vadd.f32 %v4098, %v3765
        %v4163 = vadd.f32 %v4099, %v3768
        %v4164 = vadd.f32 %v4100, %v3770
        %v4165 = vadd.f32 %v4101, %v3773
        %v4166 = vadd.f32 %v4102, %v3775
        %v4167 = vadd.f32 %v4103, %v3778
        %v4168 = vadd.f32 %v4104, %v3780
        %v4169 = vadd.f32 %v4105, %v3783
        %v4170 = vadd.f32 %v4106, %v3785
        %v4171 = vadd.f32 %v4107, %v3788
        %v4172 = vadd.f32 %v4108, %v3790
        %v4173 = vadd.f32 %v4109, %v3793
        %v4174 = vadd.f32 %v4110, %v3795
        %v4175 = vadd.f32 %v4111, %v3798
        %v4176 = vadd.f32 %v4112, %v3800
        %v4177 = vadd.f32 %v4113, %v3803
        %v4178 = vadd.f32 %v4114, %v3805
        %v4179 = vadd.f32 %v4115, %v3808
        %v4180 = vadd.f32 %v4116, %v3810
        %v4181 = vadd.f32 %v4117, %v3813
        %v4182 = vadd.f32 %v4118, %v3815
        %v4183 = vadd.f32 %v4119, %v3818
        %v4184 = vadd.f32 %v4120, %v3820
        %v4185 = vadd.f32 %v4153, %v4121
        %v4186 = vadd.f32 %v4154, %v4122
        %v4187 = vadd.f32 %v4155, %v4123
        %v4188 = vadd.f32 %v4156, %v4124
        %v4189 = vadd.f32 %v4157, %v4125
        %v4190 = vadd.f32 %v4158, %v4126
        %v4191 = vadd.f32 %v4159, %v4127
        %v4192 = vadd.f32 %v4160, %v4128
        %v4193 = vadd.f32 %v4161, %v4129
        %v4194 = vadd.f32 %v4162, %v4130
        %v4195 = vadd.f32 %v4163, %v4131
        %v4196 = vadd.f32 %v4164, %v4132
        %v4197 = vadd.f32 %v4165, %v4133
        %v4198 = vadd.f32 %v4166, %v4134
        %v4199 = vadd.f32 %v4167, %v4135
        %v4200 = vadd.f32 %v4168, %v4136
        %v4201 = vadd.f32 %v4169, %v4137
        %v4202 = vadd.f32 %v4170, %v4138
        %v4203 = vadd.f32 %v4171, %v4139
        %v4204 = vadd.f32 %v4172, %v4140
        %v4205 = vadd.f32 %v4173, %v4141
        %v4206 = vadd.f32 %v4174, %v4142
        %v4207 = vadd.f32 %v4175, %v4143
        %v4208 = vadd.f32 %v4176, %v4144
        %v4209 = vadd.f32 %v4177, %v4145
        %v4210 = vadd.f32 %v4178, %v4146
        %v4211 = vadd.f32 %v4179, %v4147
        %v4212 = vadd.f32 %v4180, %v4148
        %v4213 = vadd.f32 %v4181, %v4149
        %v4214 = vadd.f32 %v4182, %v4150
        %v4215 = vadd.f32 %v4183, %v4151
        %v4216 = vadd.f32 %v4184, %v4152
        %v4217 = vld [vmem:[%s5] sm:$0x1]
        %v4219 = vperm.slane %v4217, 0
        %v4221 = vmul.f32 %v4185, %v4219
        %v4222 = vmul.f32 %v4186, %v4219
        %v4223 = vmul.f32 %v4187, %v4219
        %v4224 = vmul.f32 %v4188, %v4219
        %v4225 = vmul.f32 %v4189, %v4219
        %v4226 = vmul.f32 %v4190, %v4219
        %v4227 = vmul.f32 %v4191, %v4219
        %v4228 = vmul.f32 %v4192, %v4219
        %v4229 = vmul.f32 %v4193, %v4219
        %v4230 = vmul.f32 %v4194, %v4219
        %v4231 = vmul.f32 %v4195, %v4219
        %v4232 = vmul.f32 %v4196, %v4219
        %v4233 = vmul.f32 %v4197, %v4219
        %v4234 = vmul.f32 %v4198, %v4219
        %v4235 = vmul.f32 %v4199, %v4219
        %v4236 = vmul.f32 %v4200, %v4219
        %v4237 = vmul.f32 %v4201, %v4219
        %v4238 = vmul.f32 %v4202, %v4219
        %v4239 = vmul.f32 %v4203, %v4219
        %v4240 = vmul.f32 %v4204, %v4219
        %v4241 = vmul.f32 %v4205, %v4219
        %v4242 = vmul.f32 %v4206, %v4219
        %v4243 = vmul.f32 %v4207, %v4219
        %v4244 = vmul.f32 %v4208, %v4219
        %v4245 = vmul.f32 %v4209, %v4219
        %v4246 = vmul.f32 %v4210, %v4219
        %v4247 = vmul.f32 %v4211, %v4219
        %v4248 = vmul.f32 %v4212, %v4219
        %v4249 = vmul.f32 %v4213, %v4219
        %v4250 = vmul.f32 %v4214, %v4219
        %v4251 = vmul.f32 %v4215, %v4219
        %v4252 = vmul.f32 %v4216, %v4219
        %v4253 = vld [vmem:[%s6] sm:$0x1]
        %v4255 = vperm.slane %v4253, 0
        %v4257 = vadd.f32 %v4221, %v4255
        %v4258 = vadd.f32 %v4222, %v4255
        %v4259 = vadd.f32 %v4223, %v4255
        %v4260 = vadd.f32 %v4224, %v4255
        %v4261 = vadd.f32 %v4225, %v4255
        %v4262 = vadd.f32 %v4226, %v4255
        %v4263 = vadd.f32 %v4227, %v4255
        %v4264 = vadd.f32 %v4228, %v4255
        %v4265 = vadd.f32 %v4229, %v4255
        %v4266 = vadd.f32 %v4230, %v4255
        %v4267 = vadd.f32 %v4231, %v4255
        %v4268 = vadd.f32 %v4232, %v4255
        %v4269 = vadd.f32 %v4233, %v4255
        %v4270 = vadd.f32 %v4234, %v4255
        %v4271 = vadd.f32 %v4235, %v4255
        %v4272 = vadd.f32 %v4236, %v4255
        %v4273 = vadd.f32 %v4237, %v4255
        %v4274 = vadd.f32 %v4238, %v4255
        %v4275 = vadd.f32 %v4239, %v4255
        %v4276 = vadd.f32 %v4240, %v4255
        %v4277 = vadd.f32 %v4241, %v4255
        %v4278 = vadd.f32 %v4242, %v4255
        %v4279 = vadd.f32 %v4243, %v4255
        %v4280 = vadd.f32 %v4244, %v4255
        %v4281 = vadd.f32 %v4245, %v4255
        %v4282 = vadd.f32 %v4246, %v4255
        %v4283 = vadd.f32 %v4247, %v4255
        %v4284 = vadd.f32 %v4248, %v4255
        %v4285 = vadd.f32 %v4249, %v4255
        %v4286 = vadd.f32 %v4250, %v4255
        %v4287 = vadd.f32 %v4251, %v4255
        %v4288 = vadd.f32 %v4252, %v4255
        %v4289 = vadd.f32 %v4257, %v525
        %v4290 = vadd.f32 %v4258, %v526
        %v4291 = vadd.f32 %v4259, %v527
        %v4292 = vadd.f32 %v4260, %v528
        %v4293 = vadd.f32 %v4261, %v529
        %v4294 = vadd.f32 %v4262, %v530
        %v4295 = vadd.f32 %v4263, %v531
        %v4296 = vadd.f32 %v4264, %v532
        %v4297 = vadd.f32 %v4265, %v533
        %v4298 = vadd.f32 %v4266, %v534
        %v4299 = vadd.f32 %v4267, %v535
        %v4300 = vadd.f32 %v4268, %v536
        %v4301 = vadd.f32 %v4269, %v537
        %v4302 = vadd.f32 %v4270, %v538
        %v4303 = vadd.f32 %v4271, %v539
        %v4304 = vadd.f32 %v4272, %v540
        %v4305 = vadd.f32 %v4273, %v541
        %v4306 = vadd.f32 %v4274, %v542
        %v4307 = vadd.f32 %v4275, %v543
        %v4308 = vadd.f32 %v4276, %v544
        %v4309 = vadd.f32 %v4277, %v545
        %v4310 = vadd.f32 %v4278, %v546
        %v4311 = vadd.f32 %v4279, %v547
        %v4312 = vadd.f32 %v4280, %v548
        %v4313 = vadd.f32 %v4281, %v549
        %v4314 = vadd.f32 %v4282, %v550
        %v4315 = vadd.f32 %v4283, %v551
        %v4316 = vadd.f32 %v4284, %v552
        %v4317 = vadd.f32 %v4285, %v553
        %v4318 = vadd.f32 %v4286, %v554
        %v4319 = vadd.f32 %v4287, %v555
        %v4320 = vadd.f32 %v4288, %v556
        %v4321 = vmax.f32 %v4289, 0.0
        %v4322 = vmax.f32 %v4290, 0.0
        %v4323 = vmax.f32 %v4291, 0.0
        %v4324 = vmax.f32 %v4292, 0.0
        %v4325 = vmax.f32 %v4293, 0.0
        %v4326 = vmax.f32 %v4294, 0.0
        %v4327 = vmax.f32 %v4295, 0.0
        %v4328 = vmax.f32 %v4296, 0.0
        %v4329 = vmax.f32 %v4297, 0.0
        %v4330 = vmax.f32 %v4298, 0.0
        %v4331 = vmax.f32 %v4299, 0.0
        %v4332 = vmax.f32 %v4300, 0.0
        %v4333 = vmax.f32 %v4301, 0.0
        %v4334 = vmax.f32 %v4302, 0.0
        %v4335 = vmax.f32 %v4303, 0.0
        %v4336 = vmax.f32 %v4304, 0.0
        %v4337 = vmax.f32 %v4305, 0.0
        %v4338 = vmax.f32 %v4306, 0.0
        %v4339 = vmax.f32 %v4307, 0.0
        %v4340 = vmax.f32 %v4308, 0.0
        %v4341 = vmax.f32 %v4309, 0.0
        %v4342 = vmax.f32 %v4310, 0.0
        %v4343 = vmax.f32 %v4311, 0.0
        %v4344 = vmax.f32 %v4312, 0.0
        %v4345 = vmax.f32 %v4313, 0.0
        %v4346 = vmax.f32 %v4314, 0.0
        %v4347 = vmax.f32 %v4315, 0.0
        %v4348 = vmax.f32 %v4316, 0.0
        %v4349 = vmax.f32 %v4317, 0.0
        %v4350 = vmax.f32 %v4318, 0.0
        %v4351 = vmax.f32 %v4319, 0.0
        %v4352 = vmax.f32 %v4320, 0.0
        %4353 = vst [vmem:[%s331] sm:$0xff] %v4321
        %4354 = vst [vmem:[%s331 + $0x8] sm:$0xff] %v4322
        %4355 = vst [vmem:[%s331 + $0x10] sm:$0xff] %v4323
        %4356 = vst [vmem:[%s331 + $0x18] sm:$0xff] %v4324
        %4357 = vst [vmem:[%s331 + $0x20] sm:$0xff] %v4325
        %4358 = vst [vmem:[%s331 + $0x28] sm:$0xff] %v4326
        %4359 = vst [vmem:[%s331 + $0x30] sm:$0xff] %v4327
        %4360 = vst [vmem:[%s331 + $0x38] sm:$0xff] %v4328
        %4361 = vst [vmem:[%s331 + $0x40] sm:$0xff] %v4329
        %4362 = vst [vmem:[%s331 + $0x48] sm:$0xff] %v4330
        %4363 = vst [vmem:[%s331 + $0x50] sm:$0xff] %v4331
        %4364 = vst [vmem:[%s331 + $0x58] sm:$0xff] %v4332
        %4365 = vst [vmem:[%s331 + $0x60] sm:$0xff] %v4333
        %4366 = vst [vmem:[%s331 + $0x68] sm:$0xff] %v4334
        %4367 = vst [vmem:[%s331 + $0x70] sm:$0xff] %v4335
        %4368 = vst [vmem:[%s331 + $0x78] sm:$0xff] %v4336
        %4369 = vst [vmem:[%s331 + $0x80] sm:$0xff] %v4337
        %4370 = vst [vmem:[%s331 + $0x88] sm:$0xff] %v4338
        %4371 = vst [vmem:[%s331 + $0x90] sm:$0xff] %v4339
        %4372 = vst [vmem:[%s331 + $0x98] sm:$0xff] %v4340
        %4373 = vst [vmem:[%s331 + $0xa0] sm:$0xff] %v4341
        %4374 = vst [vmem:[%s331 + $0xa8] sm:$0xff] %v4342
        %4375 = vst [vmem:[%s331 + $0xb0] sm:$0xff] %v4343
        %4376 = vst [vmem:[%s331 + $0xb8] sm:$0xff] %v4344
        %4377 = vst [vmem:[%s331 + $0xc0] sm:$0xff] %v4345
        %4378 = vst [vmem:[%s331 + $0xc8] sm:$0xff] %v4346
        %4379 = vst [vmem:[%s331 + $0xd0] sm:$0xff] %v4347
        %4380 = vst [vmem:[%s331 + $0xd8] sm:$0xff] %v4348
        %4381 = vst [vmem:[%s331 + $0xe0] sm:$0xff] %v4349
        %4382 = vst [vmem:[%s331 + $0xe8] sm:$0xff] %v4350
        %4383 = vst [vmem:[%s331 + $0xf0] sm:$0xff] %v4351
        %4384 = vst [vmem:[%s331 + $0xf8] sm:$0xff] %v4352
        %s4385 = sand.u32 %s185, 1
        %s4386 = scalar_lea.sflag [#allocation4], %s4385
        %s4387 = sand.u32 %s185, 1
        %s4388 = smul.addr %s4387, 256
        %s4389 = scalar_lea.vmem [#allocation8], %s4388
        // Predicated region
        $region61: #{tpu_custom_call.1} parent=47 // pred_check
          %p4390 = pneg %p195
        $region62: #{tpu_custom_call.1} parent=47 // pred_check_branch
          %4392 = sbr.rel (%p4390) target = $region64
        $region63: #{tpu_custom_call.1} parent=47 // pred_region
          %4394 = vsyncadd %s4386, 0
          %s4395 = smul.addr %s25, 32
          %s4396 = smul.addr %s4395, 8
          %s4397 = scalar_lea.hbm %s7, %s4396
          %s4398 = sshll.u32 %s4389, 4
          %s4399 = int_to_ptr.vmem [resolvable:$true] %s4398
          %s4400 = sshll.u32 %s4397, 4
          %s4401 = int_to_ptr.hbm [resolvable:$true] %s4400
          %4406 = dma.vmem_to_hbm [thread:$0]  %s4399, 4096, %s4401, %s4386, 128, 128, 8
        $region64: #{tpu_custom_call.1} parent=47 // pred_fallthru
          _
      $region48: #{tpu_custom_call.1} parent=5 // pred_fallthru
        _
      %p4407 = scmp.le.s32.totalorder 2, %s20
      // Predicated region
      $region65: #{tpu_custom_call.1} parent=5 // pred_check
        %p4408 = pneg %p4407
      $region66: #{tpu_custom_call.1} parent=5 // pred_check_branch
        %4410 = sbr.rel (%p4408) target = $region68
      $region67: #{tpu_custom_call.1} parent=5 // pred_region
        %s4411 = ssub.s32 %s20, 2
        // Predicated region
        $region69: #{tpu_custom_call.1} parent=67 // pred_check
          %p4412 = pneg %p201
        $region70: #{tpu_custom_call.1} parent=67 // pred_check_branch
          %4414 = sbr.rel (%p4412) target = $region72
        $region71: #{tpu_custom_call.1} parent=67 // pred_region
          %s4415 = sand.u32 %s186, 1
          %s4416 = scalar_lea.sflag [#allocation4], %s4415
          %s4417 = sand.u32 %s186, 1
          %s4418 = smul.addr %s4417, 256
          %s4419 = scalar_lea.vmem [#allocation8], %s4418
          %4421 = dma.done %s4416, 4096
        $region72: #{tpu_custom_call.1} parent=67 // pred_fallthru
          _
      $region68: #{tpu_custom_call.1} parent=5 // pred_fallthru
        _
    $region6: #{tpu_custom_call.1} parent=1 // loop_footer
      %s24 = sadd.s32 1, %s20
    $region7: #{tpu_custom_call.1} parent=1 // loop_footer_branch
      %19 = sbr.rel target = $region3
    $region8: #{tpu_custom_call.1} parent=1 // loop_exit
      _
    %4422 = vsyncpa [#allocation3], 1
    %s4423 = scalar_lea.sflag [#allocation3], 1
    %4424 = vsyncpa %s4423, 1
    %4425 = vsyncpa [#allocation6], 1
    %4426 = vsyncpa [#allocation4], 1
    %s4427 = scalar_lea.sflag [#allocation4], 1
    %4428 = vsyncpa %s4427, 1

</llo_original>
